<compile_context>
chip_gen: v5e
topology: v5e:2x2
jax: 0.10.0
libtpu: 0.0.40
codegen_flags: <defaults>
</compile_context>

<pallas_src>
import jax
import jax.numpy as jnp
from jax.experimental import pallas as pl
from jax.experimental.pallas import tpu as pltpu


# ----------------------------------------------------------------------------
# Fused kernel: grid = (side s in {link->node, node->link},)
# ----------------------------------------------------------------------------
def _sigmoid(x):
    # Exact sigmoid: exp goes to the EUP; the divide costs nothing in an HBM-bound kernel.
    return 1.0 / (1.0 + jnp.exp(-x))


def _fused_feature_kernel(x_ref, w1_ref, b1_ref, w2_ref, b2_ref, w3_ref, b3_ref,
                          adj_ref, h0_ref, wih_ref, whh_ref, bih_ref, bhh_ref,
                          out_ref):
    d = out_ref.shape[-1]

    # ---- 3-layer sigmoid MLP (whole W2 in one block: no k loop, no accumulator) ----
    x = x_ref[...].astype(jnp.bfloat16)
    h1 = _sigmoid(jnp.dot(x, w1_ref[...], preferred_element_type=jnp.float32)
                  + b1_ref[...])
    h2 = _sigmoid(jnp.dot(h1.astype(jnp.bfloat16), w2_ref[...],
                          preferred_element_type=jnp.float32) + b2_ref[...])
    mid = _sigmoid(jnp.dot(h2.astype(jnp.bfloat16), w3_ref[...],
                           preferred_element_type=jnp.float32) + b3_ref[...])

    # ---- adjacency aggregation + single-step GRU cell ------------------------------
    xg = jnp.dot(adj_ref[...], mid, preferred_element_type=jnp.float32)   # (M_PAD, D)
    h = h0_ref[...]

    # Gates packed on the lane axis [r | z | n]: 2 MXU dots instead of 6 tiny ones.
    gi = jnp.dot(xg, wih_ref[...], preferred_element_type=jnp.float32) + bih_ref[...]
    gh = jnp.dot(h, whh_ref[...], preferred_element_type=jnp.float32) + bhh_ref[...]
    r = _sigmoid(gi[:, 0:d] + gh[:, 0:d])
    z = _sigmoid(gi[:, d:2 * d] + gh[:, d:2 * d])
    n = jnp.tanh(gi[:, 2 * d:3 * d] + r * gh[:, 2 * d:3 * d])
    out_ref[...] = ((1.0 - z) * n + z * h).astype(out_ref.dtype)


# ----------------------------------------------------------------------------
# pallas_call wrapper
# ----------------------------------------------------------------------------
def fused_feature_step(x_mlp, h0, p):
    s_dim, m_pad, d = x_mlp.shape
    h_pad = p["W1"].shape[-1]

    return pl.pallas_call(
        _fused_feature_kernel,
        out_shape=jax.ShapeDtypeStruct((s_dim, m_pad, d), jnp.float32),
        grid=(s_dim,),
        in_specs=[
            pl.BlockSpec((None, m_pad, d),     lambda s: (s, 0, 0)),   # MLP input
            pl.BlockSpec((None, d, h_pad),     lambda s: (s, 0, 0)),   # W1 (bf16)
            pl.BlockSpec((None, 1, h_pad),     lambda s: (s, 0, 0)),   # b1
            pl.BlockSpec((None, h_pad, h_pad), lambda s: (s, 0, 0)),   # W2 full (bf16)
            pl.BlockSpec((None, 1, h_pad),     lambda s: (s, 0, 0)),   # b2
            pl.BlockSpec((None, h_pad, d),     lambda s: (s, 0, 0)),   # W3 full (bf16)
            pl.BlockSpec((None, 1, d),         lambda s: (s, 0, 0)),   # b3
            pl.BlockSpec((None, m_pad, m_pad), lambda s: (s, 0, 0)),   # adjacency
            pl.BlockSpec((None, m_pad, d),     lambda s: (s, 0, 0)),   # GRU hidden h0
            pl.BlockSpec((None, d, 3 * d),     lambda s: (s, 0, 0)),   # GRU W_ih [r|z|n]
            pl.BlockSpec((None, d, 3 * d),     lambda s: (s, 0, 0)),   # GRU W_hh [r|z|n]
            pl.BlockSpec((None, 1, 3 * d),     lambda s: (s, 0, 0)),   # GRU b_ih
            pl.BlockSpec((None, 1, 3 * d),     lambda s: (s, 0, 0)),   # GRU b_hh
        ],
        out_specs=pl.BlockSpec((None, m_pad, d), lambda s: (s, 0, 0)),
        compiler_params=pltpu.CompilerParams(
            dimension_semantics=("parallel",)),   # one side per TC on v7x
    )(x_mlp, p["W1"], p["B1"], p["W2"], p["B2"], p["W3"], p["B3"],
      p["ADJ"], h0, p["W_IH"], p["W_HH"], p["B_IH"], p["B_HH"])


# ----------------------------------------------------------------------------
# Parameter initialization (PyTorch-style uniform(-1/sqrt(fan_in))) + packing
# ----------------------------------------------------------------------------
def _uniform(key, shape, fan_in):
    bound = 1.0 / float(fan_in) ** 0.5
    return jax.random.uniform(key, shape, jnp.float32, -bound, bound)


def _linear(key, fan_in, fan_out):
    kw, kb = jax.random.split(key)
    # stored pre-transposed as (fan_in, fan_out): kernel computes x @ W + b.
    return _uniform(kw, (fan_in, fan_out), fan_in), _uniform(kb, (1, fan_out), fan_in)


def _gru(key, d):
    kiw, khw, kib, khb = jax.random.split(key, 4)
    # Gates packed on the lane axis as [r | z | n], pre-transposed to (d, 3d).
    w_ih = _uniform(kiw, (d, 3 * d), d)
    w_hh = _uniform(khw, (d, 3 * d), d)
    b_ih = _uniform(kib, (1, 3 * d), d)
    b_hh = _uniform(khb, (1, 3 * d), d)
    return w_ih, w_hh, b_ih, b_hh


def _pad2(a, rows, cols):
    return jnp.pad(a, ((0, rows - a.shape[0]), (0, cols - a.shape[1])))


def init_feature_network(key, link_dim, hidden_dim, num_links, num_nodes):
    d = link_dim
    h = hidden_dim
    h_pad = ((h + 127) // 128) * 128                       # 1000 -> 1024
    m_pad = ((max(num_links, num_nodes) + 7) // 8) * 8     # 12/10 -> 16
    keys = jax.random.split(key, 10)

    # Two independent 3-layer sigmoid MLPs: side 0 = link side, side 1 = node side.
    l_w1, l_b1 = _linear(keys[0], d, h)
    l_w2, l_b2 = _linear(keys[1], h, h)
    l_w3, l_b3 = _linear(keys[2], h, d)
    n_w1, n_b1 = _linear(keys[3], d, h)
    n_w2, n_b2 = _linear(keys[4], h, h)
    n_w3, n_b3 = _linear(keys[5], h, d)

    # Single-step GRU cells: gruNode consumed on side 0, gruLink on side 1.
    gnode = _gru(keys[6], d)
    glink = _gru(keys[7], d)

    # Adjacency matrices (modelArg['node_connection'] / ['link_connection']).
    node_idx = jax.random.bernoulli(keys[8], 0.3, (num_nodes, num_links)).astype(jnp.float32)
    link_idx = jax.random.bernoulli(keys[9], 0.3, (num_links, num_nodes)).astype(jnp.float32)

    stack = lambda a, b: jnp.stack([a, b])
    # Zero padding is exact: padded hidden lanes see sigmoid(0)=0.5, but the padded
    # rows of the *next* weight matrix are zero, so they contribute nothing; padded
    # M rows are killed by the zero adjacency columns/rows.
    packed = {
        "W1": stack(_pad2(l_w1, d, h_pad), _pad2(n_w1, d, h_pad)).astype(jnp.bfloat16),
        "B1": stack(_pad2(l_b1, 1, h_pad), _pad2(n_b1, 1, h_pad)),
        "W2": stack(_pad2(l_w2, h_pad, h_pad), _pad2(n_w2, h_pad, h_pad)).astype(jnp.bfloat16),
        "B2": stack(_pad2(l_b2, 1, h_pad), _pad2(n_b2, 1, h_pad)),
        "W3": stack(_pad2(l_w3, h_pad, d), _pad2(n_w3, h_pad, d)).astype(jnp.bfloat16),
        "B3": stack(l_b3, n_b3),
        "ADJ": stack(_pad2(node_idx, m_pad, m_pad), _pad2(link_idx, m_pad, m_pad)),
        "W_IH": stack(gnode[0], glink[0]),
        "W_HH": stack(gnode[1], glink[1]),
        "B_IH": stack(gnode[2], glink[2]),
        "B_HH": stack(gnode[3], glink[3]),
    }
    return packed


# ----------------------------------------------------------------------------
# Forward pass (semantics of FeatureNetwork.forward)
# ----------------------------------------------------------------------------
@jax.jit
def feature_network_forward(inputNodeList, inputLinkList, params):
    nodeState = inputNodeList.astype(jnp.float32)
    linkState = inputLinkList.astype(jnp.float32)
    num_nodes = nodeState.shape[0]
    num_links = linkState.shape[0]
    m_pad = params["ADJ"].shape[-1]

    pad_rows = lambda a: jnp.pad(a, ((0, m_pad - a.shape[0]), (0, 0)))
    # side 0: MLP(linkState) -> nodeIdxMat @ . -> gruNode(h=nodeState)
    # side 1: MLP(nodeState) -> linkIdxMat @ . -> gruLink(h=linkState)
    x_mlp = jnp.stack([pad_rows(linkState), pad_rows(nodeState)])
    h0 = jnp.stack([pad_rows(nodeState), pad_rows(linkState)])

    out = fused_feature_step(x_mlp, h0, params)
    gru_node_h = out[0, :num_nodes, :]
    gru_link_h = out[1, :num_links, :]

    # Reference semantics: the T-loop returns on its first iteration and the GRU
    # results are never consumed; nodeState/linkState come back unchanged (f32 cast).
    # GRU hidden states are auxiliary outputs so the kernel is not dead-code-eliminated.
    return (nodeState, linkState), (gru_node_h, gru_link_h)


# ----------------------------------------------------------------------------
if __name__ == "__main__":
    # link_state_dim=8, hidden_dim=1000 (hard-coded in __init__), 12 links, 10 nodes.
    LINK_DIM = 8
    HIDDEN_DIM = 1000
    NUM_LINKS = 12
    NUM_NODES = 10

    key = jax.random.PRNGKey(0)
    k_par, k_node, k_link = jax.random.split(key, 3)

    params = init_feature_network(k_par, LINK_DIM, HIDDEN_DIM, NUM_LINKS, NUM_NODES)
    inputNodeList = jax.random.normal(k_node, (NUM_NODES, LINK_DIM), jnp.float32)
    inputLinkList = jax.random.normal(k_link, (NUM_LINKS, LINK_DIM), jnp.float32)

    (nodeState, linkState), (gru_node_h, gru_link_h) = feature_network_forward(
        inputNodeList, inputLinkList, params)
    jax.block_until_ready((nodeState, linkState, gru_node_h, gru_link_h))

    assert nodeState.shape == (NUM_NODES, LINK_DIM) and nodeState.dtype == jnp.float32
    assert linkState.shape == (NUM_LINKS, LINK_DIM) and linkState.dtype == jnp.float32
    assert gru_node_h.shape == (NUM_NODES, LINK_DIM)
    assert gru_link_h.shape == (NUM_LINKS, LINK_DIM)
    assert bool(jnp.all(jnp.isfinite(gru_node_h))) and bool(jnp.all(jnp.isfinite(gru_link_h)))
    print("KERNEL_OK")
</pallas_src>

<mosaic_0001>
module attributes {stable_mosaic.version = 11 : i64} {
  func.func @_fused_feature_kernel(%arg0: i32, %arg1: memref<1x16x8xf32, #tpu.memory_space<vmem>>, %arg2: memref<1x8x1024xbf16, #tpu.memory_space<vmem>>, %arg3: memref<1x1x1024xf32, #tpu.memory_space<vmem>>, %arg4: memref<1x1024x1024xbf16, #tpu.memory_space<vmem>>, %arg5: memref<1x1x1024xf32, #tpu.memory_space<vmem>>, %arg6: memref<1x1024x8xbf16, #tpu.memory_space<vmem>>, %arg7: memref<1x1x8xf32, #tpu.memory_space<vmem>>, %arg8: memref<1x16x16xf32, #tpu.memory_space<vmem>>, %arg9: memref<1x16x8xf32, #tpu.memory_space<vmem>>, %arg10: memref<1x8x24xf32, #tpu.memory_space<vmem>>, %arg11: memref<1x8x24xf32, #tpu.memory_space<vmem>>, %arg12: memref<1x1x24xf32, #tpu.memory_space<vmem>>, %arg13: memref<1x1x24xf32, #tpu.memory_space<vmem>>, %arg14: memref<1x16x8xf32, #tpu.memory_space<vmem>>) attributes {dimension_semantics = [#tpu.dimension_semantics<parallel>], iteration_bounds = array<i64: 2>, scalar_prefetch = 0 : i64, scratch_operands = 0 : i64, tpu.core_type = #tpu.core_type<tc>, window_params = [{transform_indices = @transform_0, window_bounds = array<i64: 1, 16, 8>}, {transform_indices = @transform_1, window_bounds = array<i64: 1, 8, 1024>}, {transform_indices = @transform_2, window_bounds = array<i64: 1, 1, 1024>}, {transform_indices = @transform_3, window_bounds = array<i64: 1, 1024, 1024>}, {transform_indices = @transform_4, window_bounds = array<i64: 1, 1, 1024>}, {transform_indices = @transform_5, window_bounds = array<i64: 1, 1024, 8>}, {transform_indices = @transform_6, window_bounds = array<i64: 1, 1, 8>}, {transform_indices = @transform_7, window_bounds = array<i64: 1, 16, 16>}, {transform_indices = @transform_8, window_bounds = array<i64: 1, 16, 8>}, {transform_indices = @transform_9, window_bounds = array<i64: 1, 8, 24>}, {transform_indices = @transform_10, window_bounds = array<i64: 1, 8, 24>}, {transform_indices = @transform_11, window_bounds = array<i64: 1, 1, 24>}, {transform_indices = @transform_12, window_bounds = array<i64: 1, 1, 24>}, {transform_indices = @transform_13, window_bounds = array<i64: 1, 16, 8>}]} {
    %c0 = arith.constant 0 : index
    %c0_0 = arith.constant 0 : index
    %c0_1 = arith.constant 0 : index
    %0 = vector.load %arg1[%c0, %c0_0, %c0_1] : memref<1x16x8xf32, #tpu.memory_space<vmem>>, vector<1x16x8xf32>
    %1 = vector.shape_cast %0 : vector<1x16x8xf32> to vector<16x8xf32>
    %2 = arith.truncf %1 : vector<16x8xf32> to vector<16x8xbf16>
    %c0_2 = arith.constant 0 : index
    %c0_3 = arith.constant 0 : index
    %c0_4 = arith.constant 0 : index
    %3 = vector.load %arg2[%c0_2, %c0_3, %c0_4] : memref<1x8x1024xbf16, #tpu.memory_space<vmem>>, vector<1x8x1024xbf16>
    %4 = vector.shape_cast %3 : vector<1x8x1024xbf16> to vector<8x1024xbf16>
    %cst = arith.constant dense<0.000000e+00> : vector<16x1024xf32>
    %5 = tpu.matmul %2, %4, %cst {dimension_numbers = #tpu.dot_dimension_numbers<[1], [0], [0], [1], [0, 0, 1, 1], [], []>} : vector<16x8xbf16>, vector<8x1024xbf16>, vector<16x1024xf32> -> vector<16x1024xf32>
    %c0_5 = arith.constant 0 : index
    %c0_6 = arith.constant 0 : index
    %c0_7 = arith.constant 0 : index
    %6 = vector.load %arg3[%c0_5, %c0_6, %c0_7] : memref<1x1x1024xf32, #tpu.memory_space<vmem>>, vector<1x1x1024xf32>
    %7 = vector.shape_cast %6 : vector<1x1x1024xf32> to vector<1x1024xf32>
    %8 = vector.broadcast %7 : vector<1x1024xf32> to vector<16x1024xf32>
    %9 = arith.addf %5, %8 : vector<16x1024xf32>
    %cst_8 = arith.constant 0.000000e+00 : f32
    %10 = vector.broadcast %cst_8 : f32 to vector<16x1024xf32>
    %11 = arith.subf %10, %9 : vector<16x1024xf32>
    %12 = math.exp %11 : vector<16x1024xf32>
    %cst_9 = arith.constant 1.000000e+00 : f32
    %13 = vector.broadcast %cst_9 : f32 to vector<16x1024xf32>
    %14 = arith.addf %13, %12 : vector<16x1024xf32>
    %cst_10 = arith.constant 1.000000e+00 : f32
    %15 = vector.broadcast %cst_10 : f32 to vector<16x1024xf32>
    %16 = arith.divf %15, %14 : vector<16x1024xf32>
    %17 = arith.truncf %16 : vector<16x1024xf32> to vector<16x1024xbf16>
    %c0_11 = arith.constant 0 : index
    %c0_12 = arith.constant 0 : index
    %c0_13 = arith.constant 0 : index
    %18 = vector.load %arg4[%c0_11, %c0_12, %c0_13] : memref<1x1024x1024xbf16, #tpu.memory_space<vmem>>, vector<1x1024x1024xbf16>
    %19 = vector.shape_cast %18 : vector<1x1024x1024xbf16> to vector<1024x1024xbf16>
    %cst_14 = arith.constant dense<0.000000e+00> : vector<16x1024xf32>
    %20 = tpu.matmul %17, %19, %cst_14 {dimension_numbers = #tpu.dot_dimension_numbers<[1], [0], [0], [1], [0, 0, 1, 1], [], []>} : vector<16x1024xbf16>, vector<1024x1024xbf16>, vector<16x1024xf32> -> vector<16x1024xf32>
    %c0_15 = arith.constant 0 : index
    %c0_16 = arith.constant 0 : index
    %c0_17 = arith.constant 0 : index
    %21 = vector.load %arg5[%c0_15, %c0_16, %c0_17] : memref<1x1x1024xf32, #tpu.memory_space<vmem>>, vector<1x1x1024xf32>
    %22 = vector.shape_cast %21 : vector<1x1x1024xf32> to vector<1x1024xf32>
    %23 = vector.broadcast %22 : vector<1x1024xf32> to vector<16x1024xf32>
    %24 = arith.addf %20, %23 : vector<16x1024xf32>
    %cst_18 = arith.constant 0.000000e+00 : f32
    %25 = vector.broadcast %cst_18 : f32 to vector<16x1024xf32>
    %26 = arith.subf %25, %24 : vector<16x1024xf32>
    %27 = math.exp %26 : vector<16x1024xf32>
    %cst_19 = arith.constant 1.000000e+00 : f32
    %28 = vector.broadcast %cst_19 : f32 to vector<16x1024xf32>
    %29 = arith.addf %28, %27 : vector<16x1024xf32>
    %cst_20 = arith.constant 1.000000e+00 : f32
    %30 = vector.broadcast %cst_20 : f32 to vector<16x1024xf32>
    %31 = arith.divf %30, %29 : vector<16x1024xf32>
    %32 = arith.truncf %31 : vector<16x1024xf32> to vector<16x1024xbf16>
    %c0_21 = arith.constant 0 : index
    %c0_22 = arith.constant 0 : index
    %c0_23 = arith.constant 0 : index
    %33 = vector.load %arg6[%c0_21, %c0_22, %c0_23] : memref<1x1024x8xbf16, #tpu.memory_space<vmem>>, vector<1x1024x8xbf16>
    %34 = vector.shape_cast %33 : vector<1x1024x8xbf16> to vector<1024x8xbf16>
    %cst_24 = arith.constant dense<0.000000e+00> : vector<16x8xf32>
    %35 = tpu.matmul %32, %34, %cst_24 {dimension_numbers = #tpu.dot_dimension_numbers<[1], [0], [0], [1], [0, 0, 1, 1], [], []>} : vector<16x1024xbf16>, vector<1024x8xbf16>, vector<16x8xf32> -> vector<16x8xf32>
    %c0_25 = arith.constant 0 : index
    %c0_26 = arith.constant 0 : index
    %c0_27 = arith.constant 0 : index
    %36 = vector.load %arg7[%c0_25, %c0_26, %c0_27] : memref<1x1x8xf32, #tpu.memory_space<vmem>>, vector<1x1x8xf32>
    %37 = vector.shape_cast %36 : vector<1x1x8xf32> to vector<1x8xf32>
    %38 = vector.broadcast %37 : vector<1x8xf32> to vector<16x8xf32>
    %39 = arith.addf %35, %38 : vector<16x8xf32>
    %cst_28 = arith.constant 0.000000e+00 : f32
    %40 = vector.broadcast %cst_28 : f32 to vector<16x8xf32>
    %41 = arith.subf %40, %39 : vector<16x8xf32>
    %42 = math.exp %41 : vector<16x8xf32>
    %cst_29 = arith.constant 1.000000e+00 : f32
    %43 = vector.broadcast %cst_29 : f32 to vector<16x8xf32>
    %44 = arith.addf %43, %42 : vector<16x8xf32>
    %cst_30 = arith.constant 1.000000e+00 : f32
    %45 = vector.broadcast %cst_30 : f32 to vector<16x8xf32>
    %46 = arith.divf %45, %44 : vector<16x8xf32>
    %c0_31 = arith.constant 0 : index
    %c0_32 = arith.constant 0 : index
    %c0_33 = arith.constant 0 : index
    %47 = vector.load %arg8[%c0_31, %c0_32, %c0_33] : memref<1x16x16xf32, #tpu.memory_space<vmem>>, vector<1x16x16xf32>
    %48 = vector.shape_cast %47 : vector<1x16x16xf32> to vector<16x16xf32>
    %cst_34 = arith.constant dense<0.000000e+00> : vector<16x8xf32>
    %49 = tpu.matmul %48, %46, %cst_34 {dimension_numbers = #tpu.dot_dimension_numbers<[1], [0], [0], [1], [0, 0, 1, 1], [], []>} : vector<16x16xf32>, vector<16x8xf32>, vector<16x8xf32> -> vector<16x8xf32>
    %c0_35 = arith.constant 0 : index
    %c0_36 = arith.constant 0 : index
    %c0_37 = arith.constant 0 : index
    %50 = vector.load %arg9[%c0_35, %c0_36, %c0_37] : memref<1x16x8xf32, #tpu.memory_space<vmem>>, vector<1x16x8xf32>
    %51 = vector.shape_cast %50 : vector<1x16x8xf32> to vector<16x8xf32>
    %c0_38 = arith.constant 0 : index
    %c0_39 = arith.constant 0 : index
    %c0_40 = arith.constant 0 : index
    %52 = vector.load %arg10[%c0_38, %c0_39, %c0_40] : memref<1x8x24xf32, #tpu.memory_space<vmem>>, vector<1x8x24xf32>
    %53 = vector.shape_cast %52 : vector<1x8x24xf32> to vector<8x24xf32>
    %cst_41 = arith.constant dense<0.000000e+00> : vector<16x24xf32>
    %54 = tpu.matmul %49, %53, %cst_41 {dimension_numbers = #tpu.dot_dimension_numbers<[1], [0], [0], [1], [0, 0, 1, 1], [], []>} : vector<16x8xf32>, vector<8x24xf32>, vector<16x24xf32> -> vector<16x24xf32>
    %c0_42 = arith.constant 0 : index
    %c0_43 = arith.constant 0 : index
    %c0_44 = arith.constant 0 : index
    %55 = vector.load %arg12[%c0_42, %c0_43, %c0_44] : memref<1x1x24xf32, #tpu.memory_space<vmem>>, vector<1x1x24xf32>
    %56 = vector.shape_cast %55 : vector<1x1x24xf32> to vector<1x24xf32>
    %57 = vector.broadcast %56 : vector<1x24xf32> to vector<16x24xf32>
    %58 = arith.addf %54, %57 : vector<16x24xf32>
    %c0_45 = arith.constant 0 : index
    %c0_46 = arith.constant 0 : index
    %c0_47 = arith.constant 0 : index
    %59 = vector.load %arg11[%c0_45, %c0_46, %c0_47] : memref<1x8x24xf32, #tpu.memory_space<vmem>>, vector<1x8x24xf32>
    %60 = vector.shape_cast %59 : vector<1x8x24xf32> to vector<8x24xf32>
    %cst_48 = arith.constant dense<0.000000e+00> : vector<16x24xf32>
    %61 = tpu.matmul %51, %60, %cst_48 {dimension_numbers = #tpu.dot_dimension_numbers<[1], [0], [0], [1], [0, 0, 1, 1], [], []>} : vector<16x8xf32>, vector<8x24xf32>, vector<16x24xf32> -> vector<16x24xf32>
    %c0_49 = arith.constant 0 : index
    %c0_50 = arith.constant 0 : index
    %c0_51 = arith.constant 0 : index
    %62 = vector.load %arg13[%c0_49, %c0_50, %c0_51] : memref<1x1x24xf32, #tpu.memory_space<vmem>>, vector<1x1x24xf32>
    %63 = vector.shape_cast %62 : vector<1x1x24xf32> to vector<1x24xf32>
    %64 = vector.broadcast %63 : vector<1x24xf32> to vector<16x24xf32>
    %65 = arith.addf %61, %64 : vector<16x24xf32>
    %66 = vector.extract_strided_slice %58 {offsets = [0, 0], sizes = [16, 8], strides = [1, 1]} : vector<16x24xf32> to vector<16x8xf32>
    %67 = vector.extract_strided_slice %65 {offsets = [0, 0], sizes = [16, 8], strides = [1, 1]} : vector<16x24xf32> to vector<16x8xf32>
    %68 = arith.addf %66, %67 : vector<16x8xf32>
    %cst_52 = arith.constant 0.000000e+00 : f32
    %69 = vector.broadcast %cst_52 : f32 to vector<16x8xf32>
    %70 = arith.subf %69, %68 : vector<16x8xf32>
    %71 = math.exp %70 : vector<16x8xf32>
    %cst_53 = arith.constant 1.000000e+00 : f32
    %72 = vector.broadcast %cst_53 : f32 to vector<16x8xf32>
    %73 = arith.addf %72, %71 : vector<16x8xf32>
    %cst_54 = arith.constant 1.000000e+00 : f32
    %74 = vector.broadcast %cst_54 : f32 to vector<16x8xf32>
    %75 = arith.divf %74, %73 : vector<16x8xf32>
    %76 = vector.extract_strided_slice %58 {offsets = [0, 8], sizes = [16, 8], strides = [1, 1]} : vector<16x24xf32> to vector<16x8xf32>
    %77 = vector.extract_strided_slice %65 {offsets = [0, 8], sizes = [16, 8], strides = [1, 1]} : vector<16x24xf32> to vector<16x8xf32>
    %78 = arith.addf %76, %77 : vector<16x8xf32>
    %cst_55 = arith.constant 0.000000e+00 : f32
    %79 = vector.broadcast %cst_55 : f32 to vector<16x8xf32>
    %80 = arith.subf %79, %78 : vector<16x8xf32>
    %81 = math.exp %80 : vector<16x8xf32>
    %cst_56 = arith.constant 1.000000e+00 : f32
    %82 = vector.broadcast %cst_56 : f32 to vector<16x8xf32>
    %83 = arith.addf %82, %81 : vector<16x8xf32>
    %cst_57 = arith.constant 1.000000e+00 : f32
    %84 = vector.broadcast %cst_57 : f32 to vector<16x8xf32>
    %85 = arith.divf %84, %83 : vector<16x8xf32>
    %86 = vector.extract_strided_slice %58 {offsets = [0, 16], sizes = [16, 8], strides = [1, 1]} : vector<16x24xf32> to vector<16x8xf32>
    %87 = vector.extract_strided_slice %65 {offsets = [0, 16], sizes = [16, 8], strides = [1, 1]} : vector<16x24xf32> to vector<16x8xf32>
    %88 = arith.mulf %75, %87 : vector<16x8xf32>
    %89 = arith.addf %86, %88 : vector<16x8xf32>
    %90 = math.tanh %89 : vector<16x8xf32>
    %cst_58 = arith.constant 1.000000e+00 : f32
    %91 = vector.broadcast %cst_58 : f32 to vector<16x8xf32>
    %92 = arith.subf %91, %85 : vector<16x8xf32>
    %93 = arith.mulf %92, %90 : vector<16x8xf32>
    %94 = arith.mulf %85, %51 : vector<16x8xf32>
    %95 = arith.addf %93, %94 : vector<16x8xf32>
    %c0_59 = arith.constant 0 : index
    %c0_60 = arith.constant 0 : index
    %c0_61 = arith.constant 0 : index
    %96 = vector.load %arg14[%c0_59, %c0_60, %c0_61] : memref<1x16x8xf32, #tpu.memory_space<vmem>>, vector<1x16x8xf32>
    %97 = vector.shape_cast %96 : vector<1x16x8xf32> to vector<16x8xf32>
    %98 = vector.shape_cast %95 : vector<16x8xf32> to vector<1x16x8xf32>
    tpu.vector_store %arg14[%c0_59, %c0_60, %c0_61], %98 {strides = array<i32>} : memref<1x16x8xf32, #tpu.memory_space<vmem>>, vector<1x16x8xf32>,
    return
  }
  func.func @transform_0(%arg0: i32) -> (i32, i32, i32) {
    %c0_i32 = arith.constant 0 : i32
    %c0_i32_0 = arith.constant 0 : i32
    %c0_i32_1 = arith.constant 0 : i32
    return %arg0, %c0_i32, %c0_i32_0 : i32, i32, i32
  }
  func.func @transform_1(%arg0: i32) -> (i32, i32, i32) {
    %c0_i32 = arith.constant 0 : i32
    %c0_i32_0 = arith.constant 0 : i32
    %c0_i32_1 = arith.constant 0 : i32
    return %arg0, %c0_i32, %c0_i32_0 : i32, i32, i32
  }
  func.func @transform_2(%arg0: i32) -> (i32, i32, i32) {
    %c0_i32 = arith.constant 0 : i32
    %c0_i32_0 = arith.constant 0 : i32
    %c0_i32_1 = arith.constant 0 : i32
    return %arg0, %c0_i32, %c0_i32_0 : i32, i32, i32
  }
  func.func @transform_3(%arg0: i32) -> (i32, i32, i32) {
    %c0_i32 = arith.constant 0 : i32
    %c0_i32_0 = arith.constant 0 : i32
    %c0_i32_1 = arith.constant 0 : i32
    return %arg0, %c0_i32, %c0_i32_0 : i32, i32, i32
  }
  func.func @transform_4(%arg0: i32) -> (i32, i32, i32) {
    %c0_i32 = arith.constant 0 : i32
    %c0_i32_0 = arith.constant 0 : i32
    %c0_i32_1 = arith.constant 0 : i32
    return %arg0, %c0_i32, %c0_i32_0 : i32, i32, i32
  }
  func.func @transform_5(%arg0: i32) -> (i32, i32, i32) {
    %c0_i32 = arith.constant 0 : i32
    %c0_i32_0 = arith.constant 0 : i32
    %c0_i32_1 = arith.constant 0 : i32
    return %arg0, %c0_i32, %c0_i32_0 : i32, i32, i32
  }
  func.func @transform_6(%arg0: i32) -> (i32, i32, i32) {
    %c0_i32 = arith.constant 0 : i32
    %c0_i32_0 = arith.constant 0 : i32
    %c0_i32_1 = arith.constant 0 : i32
    return %arg0, %c0_i32, %c0_i32_0 : i32, i32, i32
  }
  func.func @transform_7(%arg0: i32) -> (i32, i32, i32) {
    %c0_i32 = arith.constant 0 : i32
    %c0_i32_0 = arith.constant 0 : i32
    %c0_i32_1 = arith.constant 0 : i32
    return %arg0, %c0_i32, %c0_i32_0 : i32, i32, i32
  }
  func.func @transform_8(%arg0: i32) -> (i32, i32, i32) {
    %c0_i32 = arith.constant 0 : i32
    %c0_i32_0 = arith.constant 0 : i32
    %c0_i32_1 = arith.constant 0 : i32
    return %arg0, %c0_i32, %c0_i32_0 : i32, i32, i32
  }
  func.func @transform_9(%arg0: i32) -> (i32, i32, i32) {
    %c0_i32 = arith.constant 0 : i32
    %c0_i32_0 = arith.constant 0 : i32
    %c0_i32_1 = arith.constant 0 : i32
    return %arg0, %c0_i32, %c0_i32_0 : i32, i32, i32
  }
  func.func @transform_10(%arg0: i32) -> (i32, i32, i32) {
    %c0_i32 = arith.constant 0 : i32
    %c0_i32_0 = arith.constant 0 : i32
    %c0_i32_1 = arith.constant 0 : i32
    return %arg0, %c0_i32, %c0_i32_0 : i32, i32, i32
  }
  func.func @transform_11(%arg0: i32) -> (i32, i32, i32) {
    %c0_i32 = arith.constant 0 : i32
    %c0_i32_0 = arith.constant 0 : i32
    %c0_i32_1 = arith.constant 0 : i32
    return %arg0, %c0_i32, %c0_i32_0 : i32, i32, i32
  }
  func.func @transform_12(%arg0: i32) -> (i32, i32, i32) {
    %c0_i32 = arith.constant 0 : i32
    %c0_i32_0 = arith.constant 0 : i32
    %c0_i32_1 = arith.constant 0 : i32
    return %arg0, %c0_i32, %c0_i32_0 : i32, i32, i32
  }
  func.func @transform_13(%arg0: i32) -> (i32, i32, i32) {
    %c0_i32 = arith.constant 0 : i32
    %c0_i32_0 = arith.constant 0 : i32
    %c0_i32_1 = arith.constant 0 : i32
    return %arg0, %c0_i32, %c0_i32_0 : i32, i32, i32
  }
}

</mosaic_0001>

<llo_original>
// kernel: feature_network_forward.1
$region0: #{feature_network_forward.1}
  #allocation0 [shape = 'u32[]', space=smem, size = 0x4, offset = 0x4, fixed_abs, tag = 'smem constant byte address 0x4 - core index']
  #allocation1 [shape = 'u32[72,128]{1,0:T(1,128)}', space=vmem, size = 0x9000, scoped, tag = 'internal scratch']
  %s0 = inlined_call_operand.vmem [shape: f32[2,16,8], index: 0, kind: input, shape index: {}]
  %s1 = inlined_call_operand.hbm [shape: bf16[2,8,1024], index: 1, kind: input, shape index: {}]
  %s2 = inlined_call_operand.hbm [shape: f32[2,1,1024], index: 2, kind: input, shape index: {}]
  %s3 = inlined_call_operand.hbm [shape: bf16[2,1024,1024], index: 3, kind: input, shape index: {}]
  %s4 = inlined_call_operand.hbm [shape: f32[2,1,1024], index: 4, kind: input, shape index: {}]
  %s5 = inlined_call_operand.vmem [shape: bf16[2,1024,8], index: 5, kind: input, shape index: {}]
  %s6 = inlined_call_operand.hbm [shape: f32[2,1,8], index: 6, kind: input, shape index: {}]
  %s7 = inlined_call_operand.hbm [shape: f32[2,16,16], index: 7, kind: input, shape index: {}]
  %s8 = inlined_call_operand.vmem [shape: f32[2,16,8], index: 8, kind: input, shape index: {}]
  %s9 = inlined_call_operand.hbm [shape: f32[2,8,24], index: 9, kind: input, shape index: {}]
  %s10 = inlined_call_operand.hbm [shape: f32[2,8,24], index: 10, kind: input, shape index: {}]
  %s11 = inlined_call_operand.hbm [shape: f32[2,1,24], index: 11, kind: input, shape index: {}]
  %s12 = inlined_call_operand.hbm [shape: f32[2,1,24], index: 12, kind: input, shape index: {}]
  %s13 = inlined_call_operand.vmem [shape: f32[2,16,8], index: 13, kind: output, shape index: {}]
  %s14 = sld [smem:[#allocation0]]
  $region125: #{feature_network_forward.1} parent=0
    _
  %s16 = ssub.s32 1, %s14
  %s17 = scalar_select 0, %s16, %s14
  $region1: #{feature_network_forward.1} parent=0
    #allocation2 [shape = 'u8[32768]{0}', space=vmem, size = 0x8000, scoped, tag = 'input window, operand 1']
    #allocation3 [shape = 's32[2]{0}', space=sflag, size = 0x8, scoped, tag = 'scoped memory for feature_network_forward.1']
    #allocation4 [shape = 'u8[8192]{0}', space=vmem, size = 0x2000, scoped, tag = 'input window, operand 2']
    #allocation5 [shape = 's32[2]{0}', space=sflag, size = 0x8, scoped, tag = 'scoped memory for feature_network_forward.1']
    #allocation6 [shape = 'u8[4194304]{0}', space=vmem, size = 0x400000, scoped, tag = 'input window, operand 3']
    #allocation7 [shape = 'u8[8192]{0}', space=vmem, size = 0x2000, scoped, tag = 'input window, operand 4']
    #allocation8 [shape = 's32[2]{0}', space=sflag, size = 0x8, scoped, tag = 'scoped memory for feature_network_forward.1']
    #allocation9 [shape = 'u8[1024]{0}', space=vmem, size = 0x400, scoped, tag = 'input window, operand 6']
    #allocation10 [shape = 'u8[16384]{0}', space=vmem, size = 0x4000, scoped, tag = 'input window, operand 7']
    #allocation11 [shape = 's32[2]{0}', space=sflag, size = 0x8, scoped, tag = 'scoped memory for feature_network_forward.1']
    #allocation12 [shape = 'u8[8192]{0}', space=vmem, size = 0x2000, scoped, tag = 'input window, operand 9']
    #allocation13 [shape = 'u8[8192]{0}', space=vmem, size = 0x2000, scoped, tag = 'input window, operand 10']
    #allocation14 [shape = 's32[2]{0}', space=sflag, size = 0x8, scoped, tag = 'scoped memory for feature_network_forward.1']
    #allocation15 [shape = 'u8[1024]{0}', space=vmem, size = 0x400, scoped, tag = 'input window, operand 11']
    #allocation16 [shape = 'u8[1024]{0}', space=vmem, size = 0x400, scoped, tag = 'input window, operand 12']
    #allocation17 [shape = 's32[2]{0}', space=sflag, size = 0x8, scoped, tag = 'scoped memory for feature_network_forward.1']
    %18 = vsyncpa [#allocation3], 0
    %s19 = scalar_lea.sflag [#allocation3], 1
    %20 = vsyncpa %s19, 0
    %21 = vsyncpa [#allocation5], 0
    %s22 = scalar_lea.sflag [#allocation5], 1
    %23 = vsyncpa %s22, 0
    %24 = vsyncpa [#allocation8], 0
    %s25 = scalar_lea.sflag [#allocation8], 1
    %26 = vsyncpa %s25, 0
    %27 = vsyncpa [#allocation11], 0
    %s28 = scalar_lea.sflag [#allocation11], 1
    %29 = vsyncpa %s28, 0
    %30 = vsyncpa [#allocation14], 0
    %s31 = scalar_lea.sflag [#allocation14], 1
    %32 = vsyncpa %s31, 0
    %33 = vsyncpa [#allocation17], 0
    %s34 = scalar_lea.sflag [#allocation17], 1
    %35 = vsyncpa %s34, 0
    loop: start=0, step=1, limit=4
    $region2: #{feature_network_forward.1} parent=1 // loop_pre_header
      _
    $region3: #{feature_network_forward.1} parent=1 // loop_header
      %s37 = sphi 0, %s41
      %p38 = scmp.ge.s32.totalorder %s37, 4
      %s47 = sphi 0, %s49
      %s50 = sphi 0, %s47
      %s51 = sphi 0, %s50
      %s67 = sphi 0, %s51
      %s73 = sphi 0, %s75
      %s76 = sphi 0, %s73
      %s77 = sphi 0, %s76
      %s93 = sphi 0, %s77
      %s99 = sphi 0, %s101
      %s102 = sphi 0, %s99
      %s103 = sphi 0, %s102
      %s119 = sphi 0, %s103
      %s125 = sphi 0, %s127
      %s128 = sphi 0, %s125
      %s129 = sphi 0, %s128
      %s145 = sphi 0, %s129
      %s151 = sphi 0, %s153
      %s154 = sphi 0, %s151
      %s155 = sphi 0, %s154
      %s171 = sphi 0, %s155
      %s177 = sphi 0, %s179
      %s180 = sphi 0, %s177
      %s181 = sphi 0, %s180
      %s197 = sphi 0, %s181
      %s203 = sphi 0, %s205
      %s206 = sphi 0, %s203
      %s207 = sphi 0, %s206
      %s223 = sphi 0, %s207
      %s229 = sphi 0, %s231
      %s232 = sphi 0, %s229
      %s233 = sphi 0, %s232
      %s249 = sphi 0, %s233
      %s255 = sphi 0, %s257
      %s258 = sphi 0, %s255
      %s259 = sphi 0, %s258
      %s275 = sphi 0, %s259
      %s281 = sphi 0, %s283
      %s284 = sphi 0, %s281
      %s285 = sphi 0, %s284
      %s301 = sphi 0, %s285
      %s307 = sphi 0, %s309
      %s310 = sphi 0, %s307
      %s311 = sphi 0, %s310
      %s327 = sphi 0, %s311
      %s333 = sphi 0, %s335
      %s336 = sphi 0, %s333
      %s337 = sphi 0, %s336
      %s353 = sphi 0, %s337
      %s359 = sphi 0, %s361
      %s362 = sphi 0, %s359
      %s363 = sphi 0, %s362
      %s379 = sphi 0, %s363
      %s385 = sphi 0, %s387
      %s388 = sphi 0, %s385
      %s389 = sphi 0, %s388
      %s405 = sphi 0, %s389
    $region4: #{feature_network_forward.1} parent=1 // loop_header_branch
      %40 = sbr.rel (%p38) target = $region8
    $region5: #{feature_network_forward.1} parent=1 // loop_body
      %s42 = ssub.s32 %s37, 1
      %s43 = ssub.s32 %s37, 2
      %s44 = sadd.s32 %s37, 1
      %s45 = ssub.s32 %s37, %s44
      %p46 = scmp.eq.s32.totalorder %s45, 0
      %s48 = sadd.s32 %s47, 1
      %s49 = scalar_select %p46, %s47, %s48
      %p52 = pneg %p46
      %p53 = scmp.eq.s32.totalorder %s37, 1
      %p54 = por %p52, %p53
      %p55 = scmp.ne.s32.totalorder %s47, %s50
      %p56 = scmp.eq.s32.totalorder %s37, 0
      %p57 = por %p55, %p56
      %p58 = scmp.ne.s32.totalorder %s47, %s50
      %p59 = scmp.eq.s32.totalorder %s42, 1
      %p60 = por %p58, %p59
      %p61 = scmp.ne.s32.totalorder %s50, %s51
      %p62 = scmp.eq.s32.totalorder %s42, 0
      %p63 = por %p61, %p62
      %p64 = scmp.ne.s32.totalorder %s50, %s51
      %p65 = scmp.eq.s32.totalorder %s43, 1
      %p66 = por %p64, %p65
      %p68 = scmp.ne.s32.totalorder %s51, %s67
      %p69 = scmp.eq.s32.totalorder %s43, 0
      %p70 = por %p68, %p69
      %s71 = ssub.s32 %s37, %s44
      %p72 = scmp.eq.s32.totalorder %s71, 0
      %s74 = sadd.s32 %s73, 1
      %s75 = scalar_select %p72, %s73, %s74
      %p78 = pneg %p72
      %p79 = scmp.eq.s32.totalorder %s37, 1
      %p80 = por %p78, %p79
      %p81 = scmp.ne.s32.totalorder %s73, %s76
      %p82 = scmp.eq.s32.totalorder %s37, 0
      %p83 = por %p81, %p82
      %p84 = scmp.ne.s32.totalorder %s73, %s76
      %p85 = scmp.eq.s32.totalorder %s42, 1
      %p86 = por %p84, %p85
      %p87 = scmp.ne.s32.totalorder %s76, %s77
      %p88 = scmp.eq.s32.totalorder %s42, 0
      %p89 = por %p87, %p88
      %p90 = scmp.ne.s32.totalorder %s76, %s77
      %p91 = scmp.eq.s32.totalorder %s43, 1
      %p92 = por %p90, %p91
      %p94 = scmp.ne.s32.totalorder %s77, %s93
      %p95 = scmp.eq.s32.totalorder %s43, 0
      %p96 = por %p94, %p95
      %s97 = ssub.s32 %s37, %s44
      %p98 = scmp.eq.s32.totalorder %s97, 0
      %s100 = sadd.s32 %s99, 1
      %s101 = scalar_select %p98, %s99, %s100
      %p104 = pneg %p98
      %p105 = scmp.eq.s32.totalorder %s37, 1
      %p106 = por %p104, %p105
      %p107 = scmp.ne.s32.totalorder %s99, %s102
      %p108 = scmp.eq.s32.totalorder %s37, 0
      %p109 = por %p107, %p108
      %p110 = scmp.ne.s32.totalorder %s99, %s102
      %p111 = scmp.eq.s32.totalorder %s42, 1
      %p112 = por %p110, %p111
      %p113 = scmp.ne.s32.totalorder %s102, %s103
      %p114 = scmp.eq.s32.totalorder %s42, 0
      %p115 = por %p113, %p114
      %p116 = scmp.ne.s32.totalorder %s102, %s103
      %p117 = scmp.eq.s32.totalorder %s43, 1
      %p118 = por %p116, %p117
      %p120 = scmp.ne.s32.totalorder %s103, %s119
      %p121 = scmp.eq.s32.totalorder %s43, 0
      %p122 = por %p120, %p121
      %s123 = ssub.s32 %s37, %s44
      %p124 = scmp.eq.s32.totalorder %s123, 0
      %s126 = sadd.s32 %s125, 1
      %s127 = scalar_select %p124, %s125, %s126
      %p130 = pneg %p124
      %p131 = scmp.eq.s32.totalorder %s37, 1
      %p132 = por %p130, %p131
      %p133 = scmp.ne.s32.totalorder %s125, %s128
      %p134 = scmp.eq.s32.totalorder %s37, 0
      %p135 = por %p133, %p134
      %p136 = scmp.ne.s32.totalorder %s125, %s128
      %p137 = scmp.eq.s32.totalorder %s42, 1
      %p138 = por %p136, %p137
      %p139 = scmp.ne.s32.totalorder %s128, %s129
      %p140 = scmp.eq.s32.totalorder %s42, 0
      %p141 = por %p139, %p140
      %p142 = scmp.ne.s32.totalorder %s128, %s129
      %p143 = scmp.eq.s32.totalorder %s43, 1
      %p144 = por %p142, %p143
      %p146 = scmp.ne.s32.totalorder %s129, %s145
      %p147 = scmp.eq.s32.totalorder %s43, 0
      %p148 = por %p146, %p147
      %s149 = ssub.s32 %s37, %s44
      %p150 = scmp.eq.s32.totalorder %s149, 0
      %s152 = sadd.s32 %s151, 1
      %s153 = scalar_select %p150, %s151, %s152
      %p156 = pneg %p150
      %p157 = scmp.eq.s32.totalorder %s37, 1
      %p158 = por %p156, %p157
      %p159 = scmp.ne.s32.totalorder %s151, %s154
      %p160 = scmp.eq.s32.totalorder %s37, 0
      %p161 = por %p159, %p160
      %p162 = scmp.ne.s32.totalorder %s151, %s154
      %p163 = scmp.eq.s32.totalorder %s42, 1
      %p164 = por %p162, %p163
      %p165 = scmp.ne.s32.totalorder %s154, %s155
      %p166 = scmp.eq.s32.totalorder %s42, 0
      %p167 = por %p165, %p166
      %p168 = scmp.ne.s32.totalorder %s154, %s155
      %p169 = scmp.eq.s32.totalorder %s43, 1
      %p170 = por %p168, %p169
      %p172 = scmp.ne.s32.totalorder %s155, %s171
      %p173 = scmp.eq.s32.totalorder %s43, 0
      %p174 = por %p172, %p173
      %s175 = ssub.s32 %s37, %s44
      %p176 = scmp.eq.s32.totalorder %s175, 0
      %s178 = sadd.s32 %s177, 1
      %s179 = scalar_select %p176, %s177, %s178
      %p182 = pneg %p176
      %p183 = scmp.eq.s32.totalorder %s37, 1
      %p184 = por %p182, %p183
      %p185 = scmp.ne.s32.totalorder %s177, %s180
      %p186 = scmp.eq.s32.totalorder %s37, 0
      %p187 = por %p185, %p186
      %p188 = scmp.ne.s32.totalorder %s177, %s180
      %p189 = scmp.eq.s32.totalorder %s42, 1
      %p190 = por %p188, %p189
      %p191 = scmp.ne.s32.totalorder %s180, %s181
      %p192 = scmp.eq.s32.totalorder %s42, 0
      %p193 = por %p191, %p192
      %p194 = scmp.ne.s32.totalorder %s180, %s181
      %p195 = scmp.eq.s32.totalorder %s43, 1
      %p196 = por %p194, %p195
      %p198 = scmp.ne.s32.totalorder %s181, %s197
      %p199 = scmp.eq.s32.totalorder %s43, 0
      %p200 = por %p198, %p199
      %s201 = ssub.s32 %s37, %s44
      %p202 = scmp.eq.s32.totalorder %s201, 0
      %s204 = sadd.s32 %s203, 1
      %s205 = scalar_select %p202, %s203, %s204
      %p208 = pneg %p202
      %p209 = scmp.eq.s32.totalorder %s37, 1
      %p210 = por %p208, %p209
      %p211 = scmp.ne.s32.totalorder %s203, %s206
      %p212 = scmp.eq.s32.totalorder %s37, 0
      %p213 = por %p211, %p212
      %p214 = scmp.ne.s32.totalorder %s203, %s206
      %p215 = scmp.eq.s32.totalorder %s42, 1
      %p216 = por %p214, %p215
      %p217 = scmp.ne.s32.totalorder %s206, %s207
      %p218 = scmp.eq.s32.totalorder %s42, 0
      %p219 = por %p217, %p218
      %p220 = scmp.ne.s32.totalorder %s206, %s207
      %p221 = scmp.eq.s32.totalorder %s43, 1
      %p222 = por %p220, %p221
      %p224 = scmp.ne.s32.totalorder %s207, %s223
      %p225 = scmp.eq.s32.totalorder %s43, 0
      %p226 = por %p224, %p225
      %s227 = ssub.s32 %s37, %s44
      %p228 = scmp.eq.s32.totalorder %s227, 0
      %s230 = sadd.s32 %s229, 1
      %s231 = scalar_select %p228, %s229, %s230
      %p234 = pneg %p228
      %p235 = scmp.eq.s32.totalorder %s37, 1
      %p236 = por %p234, %p235
      %p237 = scmp.ne.s32.totalorder %s229, %s232
      %p238 = scmp.eq.s32.totalorder %s37, 0
      %p239 = por %p237, %p238
      %p240 = scmp.ne.s32.totalorder %s229, %s232
      %p241 = scmp.eq.s32.totalorder %s42, 1
      %p242 = por %p240, %p241
      %p243 = scmp.ne.s32.totalorder %s232, %s233
      %p244 = scmp.eq.s32.totalorder %s42, 0
      %p245 = por %p243, %p244
      %p246 = scmp.ne.s32.totalorder %s232, %s233
      %p247 = scmp.eq.s32.totalorder %s43, 1
      %p248 = por %p246, %p247
      %p250 = scmp.ne.s32.totalorder %s233, %s249
      %p251 = scmp.eq.s32.totalorder %s43, 0
      %p252 = por %p250, %p251
      %s253 = ssub.s32 %s37, %s44
      %p254 = scmp.eq.s32.totalorder %s253, 0
      %s256 = sadd.s32 %s255, 1
      %s257 = scalar_select %p254, %s255, %s256
      %p260 = pneg %p254
      %p261 = scmp.eq.s32.totalorder %s37, 1
      %p262 = por %p260, %p261
      %p263 = scmp.ne.s32.totalorder %s255, %s258
      %p264 = scmp.eq.s32.totalorder %s37, 0
      %p265 = por %p263, %p264
      %p266 = scmp.ne.s32.totalorder %s255, %s258
      %p267 = scmp.eq.s32.totalorder %s42, 1
      %p268 = por %p266, %p267
      %p269 = scmp.ne.s32.totalorder %s258, %s259
      %p270 = scmp.eq.s32.totalorder %s42, 0
      %p271 = por %p269, %p270
      %p272 = scmp.ne.s32.totalorder %s258, %s259
      %p273 = scmp.eq.s32.totalorder %s43, 1
      %p274 = por %p272, %p273
      %p276 = scmp.ne.s32.totalorder %s259, %s275
      %p277 = scmp.eq.s32.totalorder %s43, 0
      %p278 = por %p276, %p277
      %s279 = ssub.s32 %s37, %s44
      %p280 = scmp.eq.s32.totalorder %s279, 0
      %s282 = sadd.s32 %s281, 1
      %s283 = scalar_select %p280, %s281, %s282
      %p286 = pneg %p280
      %p287 = scmp.eq.s32.totalorder %s37, 1
      %p288 = por %p286, %p287
      %p289 = scmp.ne.s32.totalorder %s281, %s284
      %p290 = scmp.eq.s32.totalorder %s37, 0
      %p291 = por %p289, %p290
      %p292 = scmp.ne.s32.totalorder %s281, %s284
      %p293 = scmp.eq.s32.totalorder %s42, 1
      %p294 = por %p292, %p293
      %p295 = scmp.ne.s32.totalorder %s284, %s285
      %p296 = scmp.eq.s32.totalorder %s42, 0
      %p297 = por %p295, %p296
      %p298 = scmp.ne.s32.totalorder %s284, %s285
      %p299 = scmp.eq.s32.totalorder %s43, 1
      %p300 = por %p298, %p299
      %p302 = scmp.ne.s32.totalorder %s285, %s301
      %p303 = scmp.eq.s32.totalorder %s43, 0
      %p304 = por %p302, %p303
      %s305 = ssub.s32 %s37, %s44
      %p306 = scmp.eq.s32.totalorder %s305, 0
      %s308 = sadd.s32 %s307, 1
      %s309 = scalar_select %p306, %s307, %s308
      %p312 = pneg %p306
      %p313 = scmp.eq.s32.totalorder %s37, 1
      %p314 = por %p312, %p313
      %p315 = scmp.ne.s32.totalorder %s307, %s310
      %p316 = scmp.eq.s32.totalorder %s37, 0
      %p317 = por %p315, %p316
      %p318 = scmp.ne.s32.totalorder %s307, %s310
      %p319 = scmp.eq.s32.totalorder %s42, 1
      %p320 = por %p318, %p319
      %p321 = scmp.ne.s32.totalorder %s310, %s311
      %p322 = scmp.eq.s32.totalorder %s42, 0
      %p323 = por %p321, %p322
      %p324 = scmp.ne.s32.totalorder %s310, %s311
      %p325 = scmp.eq.s32.totalorder %s43, 1
      %p326 = por %p324, %p325
      %p328 = scmp.ne.s32.totalorder %s311, %s327
      %p329 = scmp.eq.s32.totalorder %s43, 0
      %p330 = por %p328, %p329
      %s331 = ssub.s32 %s37, %s44
      %p332 = scmp.eq.s32.totalorder %s331, 0
      %s334 = sadd.s32 %s333, 1
      %s335 = scalar_select %p332, %s333, %s334
      %p338 = pneg %p332
      %p339 = scmp.eq.s32.totalorder %s37, 1
      %p340 = por %p338, %p339
      %p341 = scmp.ne.s32.totalorder %s333, %s336
      %p342 = scmp.eq.s32.totalorder %s37, 0
      %p343 = por %p341, %p342
      %p344 = scmp.ne.s32.totalorder %s333, %s336
      %p345 = scmp.eq.s32.totalorder %s42, 1
      %p346 = por %p344, %p345
      %p347 = scmp.ne.s32.totalorder %s336, %s337
      %p348 = scmp.eq.s32.totalorder %s42, 0
      %p349 = por %p347, %p348
      %p350 = scmp.ne.s32.totalorder %s336, %s337
      %p351 = scmp.eq.s32.totalorder %s43, 1
      %p352 = por %p350, %p351
      %p354 = scmp.ne.s32.totalorder %s337, %s353
      %p355 = scmp.eq.s32.totalorder %s43, 0
      %p356 = por %p354, %p355
      %s357 = ssub.s32 %s37, %s44
      %p358 = scmp.eq.s32.totalorder %s357, 0
      %s360 = sadd.s32 %s359, 1
      %s361 = scalar_select %p358, %s359, %s360
      %p364 = pneg %p358
      %p365 = scmp.eq.s32.totalorder %s37, 1
      %p366 = por %p364, %p365
      %p367 = scmp.ne.s32.totalorder %s359, %s362
      %p368 = scmp.eq.s32.totalorder %s37, 0
      %p369 = por %p367, %p368
      %p370 = scmp.ne.s32.totalorder %s359, %s362
      %p371 = scmp.eq.s32.totalorder %s42, 1
      %p372 = por %p370, %p371
      %p373 = scmp.ne.s32.totalorder %s362, %s363
      %p374 = scmp.eq.s32.totalorder %s42, 0
      %p375 = por %p373, %p374
      %p376 = scmp.ne.s32.totalorder %s362, %s363
      %p377 = scmp.eq.s32.totalorder %s43, 1
      %p378 = por %p376, %p377
      %p380 = scmp.ne.s32.totalorder %s363, %s379
      %p381 = scmp.eq.s32.totalorder %s43, 0
      %p382 = por %p380, %p381
      %s383 = ssub.s32 %s37, %s44
      %p384 = scmp.eq.s32.totalorder %s383, 0
      %s386 = sadd.s32 %s385, 1
      %s387 = scalar_select %p384, %s385, %s386
      %p390 = pneg %p384
      %p391 = scmp.eq.s32.totalorder %s37, 1
      %p392 = por %p390, %p391
      %p393 = scmp.ne.s32.totalorder %s385, %s388
      %p394 = scmp.eq.s32.totalorder %s37, 0
      %p395 = por %p393, %p394
      %p396 = scmp.ne.s32.totalorder %s385, %s388
      %p397 = scmp.eq.s32.totalorder %s42, 1
      %p398 = por %p396, %p397
      %p399 = scmp.ne.s32.totalorder %s388, %s389
      %p400 = scmp.eq.s32.totalorder %s42, 0
      %p401 = por %p399, %p400
      %p402 = scmp.ne.s32.totalorder %s388, %s389
      %p403 = scmp.eq.s32.totalorder %s43, 1
      %p404 = por %p402, %p403
      %p406 = scmp.ne.s32.totalorder %s389, %s405
      %p407 = scmp.eq.s32.totalorder %s43, 0
      %p408 = por %p406, %p407
      %p409 = scmp.le.s32.totalorder 1, %s37
      %p410 = scmp.lt.s32.totalorder %s37, 3
      %p411 = pnand %p409, %p410
      %p412 = pneg %p411
      // Predicated region
      $region9: #{feature_network_forward.1} parent=5 // pred_check
        _
      $region10: #{feature_network_forward.1} parent=5 // pred_check_branch
        %414 = sbr.rel (%p411) target = $region12
      $region11: #{feature_network_forward.1} parent=5 // pred_region
        %s415 = ssub.s32 %s37, 1
      $region12: #{feature_network_forward.1} parent=5 // pred_fallthru
        _
      %p416 = scmp.lt.s32.totalorder %s37, 2
      // Predicated region
      $region13: #{feature_network_forward.1} parent=5 // pred_check
        %p417 = pneg %p416
      $region14: #{feature_network_forward.1} parent=5 // pred_check_branch
        %419 = sbr.rel (%p417) target = $region16
      $region15: #{feature_network_forward.1} parent=5 // pred_region
        // Predicated region
        $region17: #{feature_network_forward.1} parent=15 // pred_check
          %p420 = pneg %p57
        $region18: #{feature_network_forward.1} parent=15 // pred_check_branch
          %422 = sbr.rel (%p420) target = $region20
        $region19: #{feature_network_forward.1} parent=15 // pred_region
          %p423 = scmp.lt.s32.totalorder %s37, 1
          %s424 = scalar_select %p423, %s37, 1
          %s425 = smul.addr %s424, 2
          %s426 = smul.addr %s425, 8
          %s427 = scalar_lea.vmem %s0, %s426
        $region20: #{feature_network_forward.1} parent=15 // pred_fallthru
          _
        // Predicated region
        $region21: #{feature_network_forward.1} parent=15 // pred_check
          %p428 = pneg %p83
        $region22: #{feature_network_forward.1} parent=15 // pred_check_branch
          %430 = sbr.rel (%p428) target = $region24
        $region23: #{feature_network_forward.1} parent=15 // pred_region
          %s431 = sand.u32 %s73, 1
          %s432 = scalar_lea.sflag [#allocation3], %s431
          %s433 = sand.u32 %s73, 1
          %s434 = smul.addr %s433, 32
          %s435 = scalar_lea.vmem [#allocation2], %s434
          %437 = vsyncadd %s432, 0
          %s438 = smul.addr %s37, 8
          %s439 = smul.addr %s438, 4
          %s440 = scalar_lea.hbm %s1, %s439
          %s442 = sshll.u32 %s440, 4
          %s443 = int_to_ptr.hbm [resolvable:$true] %s442
          %s444 = sshll.u32 %s435, 4
          %s445 = int_to_ptr.vmem [resolvable:$true] %s444
          %447 = dma.hbm_to_vmem [thread:$0]  %s443, 512, %s445, %s432
        $region24: #{feature_network_forward.1} parent=15 // pred_fallthru
          _
        // Predicated region
        $region25: #{feature_network_forward.1} parent=15 // pred_check
          %p448 = pneg %p109
        $region26: #{feature_network_forward.1} parent=15 // pred_check_branch
          %450 = sbr.rel (%p448) target = $region28
        $region27: #{feature_network_forward.1} parent=15 // pred_region
          %s451 = sand.u32 %s37, 1
          %s452 = scalar_lea.sflag [#allocation5], %s451
          %s453 = sand.u32 %s99, 1
          %s454 = smul.addr %s453, 8
          %s455 = scalar_lea.vmem [#allocation4], %s454
          %457 = vsyncadd %s452, 0
          %s458 = smul.addr %s37, 8
          %s459 = scalar_lea.hbm %s2, %s458
          %s461 = sshll.u32 %s459, 4
          %s462 = int_to_ptr.hbm [resolvable:$true] %s461
          %s463 = sshll.u32 %s455, 4
          %s464 = int_to_ptr.vmem [resolvable:$true] %s463
          %466 = dma.hbm_to_vmem [thread:$0]  %s462, 128, %s464, %s452
        $region28: #{feature_network_forward.1} parent=15 // pred_fallthru
          _
        // Predicated region
        $region29: #{feature_network_forward.1} parent=15 // pred_check
          %p467 = pneg %p135
        $region30: #{feature_network_forward.1} parent=15 // pred_check_branch
          %469 = sbr.rel (%p467) target = $region32
        $region31: #{feature_network_forward.1} parent=15 // pred_region
          %s470 = sand.u32 %s37, 1
          %s471 = scalar_lea.sflag [#allocation5], %s470
          %s472 = sand.u32 %s125, 1
          %s473 = smul.addr %s472, 4096
          %s474 = scalar_lea.vmem [#allocation6], %s473
          %476 = vsyncadd %s471, 0
          %s477 = smul.addr %s37, 1024
          %s478 = smul.addr %s477, 4
          %s479 = scalar_lea.hbm %s3, %s478
          %s480 = sshll.u32 %s479, 4
          %s481 = int_to_ptr.hbm [resolvable:$true] %s480
          %s482 = sshll.u32 %s474, 4
          %s483 = int_to_ptr.vmem [resolvable:$true] %s482
          %488 = dma.hbm_to_vmem [thread:$0]  %s481, 65536, %s483, %s471, 512, 512, 32
        $region32: #{feature_network_forward.1} parent=15 // pred_fallthru
          _
        // Predicated region
        $region33: #{feature_network_forward.1} parent=15 // pred_check
          %p489 = pneg %p161
        $region34: #{feature_network_forward.1} parent=15 // pred_check_branch
          %491 = sbr.rel (%p489) target = $region36
        $region35: #{feature_network_forward.1} parent=15 // pred_region
          %s492 = sand.u32 %s37, 1
          %s493 = scalar_lea.sflag [#allocation8], %s492
          %s494 = sand.u32 %s151, 1
          %s495 = smul.addr %s494, 8
          %s496 = scalar_lea.vmem [#allocation7], %s495
          %498 = vsyncadd %s493, 0
          %s499 = smul.addr %s37, 8
          %s500 = scalar_lea.hbm %s4, %s499
          %s502 = sshll.u32 %s500, 4
          %s503 = int_to_ptr.hbm [resolvable:$true] %s502
          %s504 = sshll.u32 %s496, 4
          %s505 = int_to_ptr.vmem [resolvable:$true] %s504
          %507 = dma.hbm_to_vmem [thread:$0]  %s503, 128, %s505, %s493
        $region36: #{feature_network_forward.1} parent=15 // pred_fallthru
          _
        // Predicated region
        $region37: #{feature_network_forward.1} parent=15 // pred_check
          %p508 = pneg %p187
        $region38: #{feature_network_forward.1} parent=15 // pred_check_branch
          %510 = sbr.rel (%p508) target = $region40
        $region39: #{feature_network_forward.1} parent=15 // pred_region
          %p511 = scmp.lt.s32.totalorder %s37, 1
          %s512 = scalar_select %p511, %s37, 1
          %s513 = smul.addr %s512, 128
          %s514 = smul.addr %s513, 4
          %s515 = scalar_lea.vmem %s5, %s514
        $region40: #{feature_network_forward.1} parent=15 // pred_fallthru
          _
        // Predicated region
        $region41: #{feature_network_forward.1} parent=15 // pred_check
          %p516 = pneg %p213
        $region42: #{feature_network_forward.1} parent=15 // pred_check_branch
          %518 = sbr.rel (%p516) target = $region44
        $region43: #{feature_network_forward.1} parent=15 // pred_region
          %s519 = sand.u32 %s37, 1
          %s520 = scalar_lea.sflag [#allocation8], %s519
          %s521 = sand.u32 %s203, 1
          %s522 = scalar_lea.vmem [#allocation9], %s521
          %524 = vsyncadd %s520, 0
          %s525 = scalar_lea.hbm %s6, %s37
          %s527 = sshll.u32 %s525, 4
          %s528 = int_to_ptr.hbm [resolvable:$true] %s527
          %s529 = sshll.u32 %s522, 4
          %s530 = int_to_ptr.vmem [resolvable:$true] %s529
          %532 = dma.hbm_to_vmem [thread:$0]  %s528, 16, %s530, %s520
        $region44: #{feature_network_forward.1} parent=15 // pred_fallthru
          _
        // Predicated region
        $region45: #{feature_network_forward.1} parent=15 // pred_check
          %p533 = pneg %p239
        $region46: #{feature_network_forward.1} parent=15 // pred_check_branch
          %535 = sbr.rel (%p533) target = $region48
        $region47: #{feature_network_forward.1} parent=15 // pred_region
          %s536 = sand.u32 %s37, 1
          %s537 = scalar_lea.sflag [#allocation11], %s536
          %s538 = sand.u32 %s229, 1
          %s539 = smul.addr %s538, 16
          %s540 = scalar_lea.vmem [#allocation10], %s539
          %542 = vsyncadd %s537, 0
          %s543 = smul.addr %s37, 2
          %s544 = smul.addr %s543, 8
          %s545 = scalar_lea.hbm %s7, %s544
          %s546 = sshll.u32 %s545, 4
          %s547 = int_to_ptr.hbm [resolvable:$true] %s546
          %s548 = sshll.u32 %s540, 4
          %s549 = int_to_ptr.vmem [resolvable:$true] %s548
          %554 = dma.hbm_to_vmem [thread:$0]  %s547, 256, %s549, %s537, 128, 128, 8
        $region48: #{feature_network_forward.1} parent=15 // pred_fallthru
          _
        // Predicated region
        $region49: #{feature_network_forward.1} parent=15 // pred_check
          %p555 = pneg %p265
        $region50: #{feature_network_forward.1} parent=15 // pred_check_branch
          %557 = sbr.rel (%p555) target = $region52
        $region51: #{feature_network_forward.1} parent=15 // pred_region
          %p558 = scmp.lt.s32.totalorder %s37, 1
          %s559 = scalar_select %p558, %s37, 1
          %s560 = smul.addr %s559, 2
          %s561 = smul.addr %s560, 8
          %s562 = scalar_lea.vmem %s8, %s561
        $region52: #{feature_network_forward.1} parent=15 // pred_fallthru
          _
        // Predicated region
        $region53: #{feature_network_forward.1} parent=15 // pred_check
          %p563 = pneg %p291
        $region54: #{feature_network_forward.1} parent=15 // pred_check_branch
          %565 = sbr.rel (%p563) target = $region56
        $region55: #{feature_network_forward.1} parent=15 // pred_region
          %s566 = sand.u32 %s37, 1
          %s567 = scalar_lea.sflag [#allocation11], %s566
          %s568 = sand.u32 %s281, 1
          %s569 = smul.addr %s568, 8
          %s570 = scalar_lea.vmem [#allocation12], %s569
          %572 = vsyncadd %s567, 0
          %s573 = smul.addr %s37, 8
          %s574 = scalar_lea.hbm %s9, %s573
          %s576 = sshll.u32 %s574, 4
          %s577 = int_to_ptr.hbm [resolvable:$true] %s576
          %s578 = sshll.u32 %s570, 4
          %s579 = int_to_ptr.vmem [resolvable:$true] %s578
          %581 = dma.hbm_to_vmem [thread:$0]  %s577, 128, %s579, %s567
        $region56: #{feature_network_forward.1} parent=15 // pred_fallthru
          _
        // Predicated region
        $region57: #{feature_network_forward.1} parent=15 // pred_check
          %p582 = pneg %p317
        $region58: #{feature_network_forward.1} parent=15 // pred_check_branch
          %584 = sbr.rel (%p582) target = $region60
        $region59: #{feature_network_forward.1} parent=15 // pred_region
          %s585 = sand.u32 %s37, 1
          %s586 = scalar_lea.sflag [#allocation14], %s585
          %s587 = sand.u32 %s307, 1
          %s588 = smul.addr %s587, 8
          %s589 = scalar_lea.vmem [#allocation13], %s588
          %591 = vsyncadd %s586, 0
          %s592 = smul.addr %s37, 8
          %s593 = scalar_lea.hbm %s10, %s592
          %s595 = sshll.u32 %s593, 4
          %s596 = int_to_ptr.hbm [resolvable:$true] %s595
          %s597 = sshll.u32 %s589, 4
          %s598 = int_to_ptr.vmem [resolvable:$true] %s597
          %600 = dma.hbm_to_vmem [thread:$0]  %s596, 128, %s598, %s586
        $region60: #{feature_network_forward.1} parent=15 // pred_fallthru
          _
        // Predicated region
        $region61: #{feature_network_forward.1} parent=15 // pred_check
          %p601 = pneg %p343
        $region62: #{feature_network_forward.1} parent=15 // pred_check_branch
          %603 = sbr.rel (%p601) target = $region64
        $region63: #{feature_network_forward.1} parent=15 // pred_region
          %s604 = sand.u32 %s37, 1
          %s605 = scalar_lea.sflag [#allocation14], %s604
          %s606 = sand.u32 %s333, 1
          %s607 = scalar_lea.vmem [#allocation15], %s606
          %609 = vsyncadd %s605, 0
          %s610 = scalar_lea.hbm %s11, %s37
          %s612 = sshll.u32 %s610, 4
          %s613 = int_to_ptr.hbm [resolvable:$true] %s612
          %s614 = sshll.u32 %s607, 4
          %s615 = int_to_ptr.vmem [resolvable:$true] %s614
          %617 = dma.hbm_to_vmem [thread:$0]  %s613, 16, %s615, %s605
        $region64: #{feature_network_forward.1} parent=15 // pred_fallthru
          _
        // Predicated region
        $region65: #{feature_network_forward.1} parent=15 // pred_check
          %p618 = pneg %p369
        $region66: #{feature_network_forward.1} parent=15 // pred_check_branch
          %620 = sbr.rel (%p618) target = $region68
        $region67: #{feature_network_forward.1} parent=15 // pred_region
          %s621 = sand.u32 %s359, 1
          %s622 = scalar_lea.sflag [#allocation17], %s621
          %s623 = sand.u32 %s359, 1
          %s624 = scalar_lea.vmem [#allocation16], %s623
          %626 = vsyncadd %s622, 0
          %s627 = scalar_lea.hbm %s12, %s37
          %s629 = sshll.u32 %s627, 4
          %s630 = int_to_ptr.hbm [resolvable:$true] %s629
          %s631 = sshll.u32 %s624, 4
          %s632 = int_to_ptr.vmem [resolvable:$true] %s631
          %634 = dma.hbm_to_vmem [thread:$0]  %s630, 16, %s632, %s622
        $region68: #{feature_network_forward.1} parent=15 // pred_fallthru
          _
      $region16: #{feature_network_forward.1} parent=5 // pred_fallthru
        _
      %p635 = scmp.le.s32.totalorder 1, %s37
      %p636 = scmp.lt.s32.totalorder %s37, 3
      %p637 = pnand %p635, %p636
      %p638 = pneg %p637
      // Predicated region
      $region69: #{feature_network_forward.1} parent=5 // pred_check
        _
      $region70: #{feature_network_forward.1} parent=5 // pred_check_branch
        %640 = sbr.rel (%p637) target = $region72
      $region71: #{feature_network_forward.1} parent=5 // pred_region
        %s641 = ssub.s32 %s37, 1
        %s642 = sand.u32 %s76, 1
        %s643 = scalar_lea.sflag [#allocation3], %s642
        %s644 = sand.u32 %s76, 1
        %s645 = smul.addr %s644, 32
        %s646 = scalar_lea.vmem [#allocation2], %s645
        // Predicated region
        $region73: #{feature_network_forward.1} parent=71 // pred_check
          %p647 = pneg %p89
        $region74: #{feature_network_forward.1} parent=71 // pred_check_branch
          %649 = sbr.rel (%p647) target = $region76
        $region75: #{feature_network_forward.1} parent=71 // pred_region
          %651 = dma.done %s643, 512
        $region76: #{feature_network_forward.1} parent=71 // pred_fallthru
          _
        %s652 = sand.u32 %s42, 1
        %s653 = scalar_lea.sflag [#allocation5], %s652
        %s654 = sand.u32 %s102, 1
        %s655 = smul.addr %s654, 8
        %s656 = scalar_lea.vmem [#allocation4], %s655
        // Predicated region
        $region77: #{feature_network_forward.1} parent=71 // pred_check
          %p657 = pneg %p115
        $region78: #{feature_network_forward.1} parent=71 // pred_check_branch
          %659 = sbr.rel (%p657) target = $region80
        $region79: #{feature_network_forward.1} parent=71 // pred_region
          %661 = dma.done %s653, 128
        $region80: #{feature_network_forward.1} parent=71 // pred_fallthru
          _
        %s662 = sand.u32 %s42, 1
        %s663 = scalar_lea.sflag [#allocation5], %s662
        %s664 = sand.u32 %s128, 1
        %s665 = smul.addr %s664, 4096
        %s666 = scalar_lea.vmem [#allocation6], %s665
        // Predicated region
        $region81: #{feature_network_forward.1} parent=71 // pred_check
          %p667 = pneg %p141
        $region82: #{feature_network_forward.1} parent=71 // pred_check_branch
          %669 = sbr.rel (%p667) target = $region84
        $region83: #{feature_network_forward.1} parent=71 // pred_region
          %671 = dma.done %s663, 65536
        $region84: #{feature_network_forward.1} parent=71 // pred_fallthru
          _
        %s672 = sand.u32 %s42, 1
        %s673 = scalar_lea.sflag [#allocation8], %s672
        %s674 = sand.u32 %s154, 1
        %s675 = smul.addr %s674, 8
        %s676 = scalar_lea.vmem [#allocation7], %s675
        // Predicated region
        $region85: #{feature_network_forward.1} parent=71 // pred_check
          %p677 = pneg %p167
        $region86: #{feature_network_forward.1} parent=71 // pred_check_branch
          %679 = sbr.rel (%p677) target = $region88
        $region87: #{feature_network_forward.1} parent=71 // pred_region
          %681 = dma.done %s673, 128
        $region88: #{feature_network_forward.1} parent=71 // pred_fallthru
          _
        %s682 = sand.u32 %s42, 1
        %s683 = scalar_lea.sflag [#allocation8], %s682
        %s684 = sand.u32 %s206, 1
        %s685 = scalar_lea.vmem [#allocation9], %s684
        // Predicated region
        $region89: #{feature_network_forward.1} parent=71 // pred_check
          %p686 = pneg %p219
        $region90: #{feature_network_forward.1} parent=71 // pred_check_branch
          %688 = sbr.rel (%p686) target = $region92
        $region91: #{feature_network_forward.1} parent=71 // pred_region
          %690 = dma.done %s683, 16
        $region92: #{feature_network_forward.1} parent=71 // pred_fallthru
          _
        %s691 = sand.u32 %s42, 1
        %s692 = scalar_lea.sflag [#allocation11], %s691
        %s693 = sand.u32 %s232, 1
        %s694 = smul.addr %s693, 16
        %s695 = scalar_lea.vmem [#allocation10], %s694
        // Predicated region
        $region93: #{feature_network_forward.1} parent=71 // pred_check
          %p696 = pneg %p245
        $region94: #{feature_network_forward.1} parent=71 // pred_check_branch
          %698 = sbr.rel (%p696) target = $region96
        $region95: #{feature_network_forward.1} parent=71 // pred_region
          %700 = dma.done %s692, 256
        $region96: #{feature_network_forward.1} parent=71 // pred_fallthru
          _
        %s701 = sand.u32 %s42, 1
        %s702 = scalar_lea.sflag [#allocation11], %s701
        %s703 = sand.u32 %s284, 1
        %s704 = smul.addr %s703, 8
        %s705 = scalar_lea.vmem [#allocation12], %s704
        // Predicated region
        $region97: #{feature_network_forward.1} parent=71 // pred_check
          %p706 = pneg %p297
        $region98: #{feature_network_forward.1} parent=71 // pred_check_branch
          %708 = sbr.rel (%p706) target = $region100
        $region99: #{feature_network_forward.1} parent=71 // pred_region
          %710 = dma.done %s702, 128
        $region100: #{feature_network_forward.1} parent=71 // pred_fallthru
          _
        %s711 = sand.u32 %s42, 1
        %s712 = scalar_lea.sflag [#allocation14], %s711
        %s713 = sand.u32 %s310, 1
        %s714 = smul.addr %s713, 8
        %s715 = scalar_lea.vmem [#allocation13], %s714
        // Predicated region
        $region101: #{feature_network_forward.1} parent=71 // pred_check
          %p716 = pneg %p323
        $region102: #{feature_network_forward.1} parent=71 // pred_check_branch
          %718 = sbr.rel (%p716) target = $region104
        $region103: #{feature_network_forward.1} parent=71 // pred_region
          %720 = dma.done %s712, 128
        $region104: #{feature_network_forward.1} parent=71 // pred_fallthru
          _
        %s721 = sand.u32 %s42, 1
        %s722 = scalar_lea.sflag [#allocation14], %s721
        %s723 = sand.u32 %s336, 1
        %s724 = scalar_lea.vmem [#allocation15], %s723
        // Predicated region
        $region105: #{feature_network_forward.1} parent=71 // pred_check
          %p725 = pneg %p349
        $region106: #{feature_network_forward.1} parent=71 // pred_check_branch
          %727 = sbr.rel (%p725) target = $region108
        $region107: #{feature_network_forward.1} parent=71 // pred_region
          %729 = dma.done %s722, 16
        $region108: #{feature_network_forward.1} parent=71 // pred_fallthru
          _
        %s730 = sand.u32 %s362, 1
        %s731 = scalar_lea.sflag [#allocation17], %s730
        %s732 = sand.u32 %s362, 1
        %s733 = scalar_lea.vmem [#allocation16], %s732
        // Predicated region
        $region109: #{feature_network_forward.1} parent=71 // pred_check
          %p734 = pneg %p375
        $region110: #{feature_network_forward.1} parent=71 // pred_check_branch
          %736 = sbr.rel (%p734) target = $region112
        $region111: #{feature_network_forward.1} parent=71 // pred_region
          %738 = dma.done %s731, 16
        $region112: #{feature_network_forward.1} parent=71 // pred_fallthru
          _
        %p739 = scmp.lt.s32.totalorder %s42, 1
        %s740 = scalar_select %p739, %s42, 1
        %s741 = smul.addr %s740, 2
        %s742 = smul.addr %s741, 8
        %s743 = scalar_lea.vmem %s0, %s742
        %p744 = pneg %p63
        %p745 = pneg %p60
        %s746 = sand.u32 %s76, 1
        %s747 = scalar_lea.sflag [#allocation3], %s746
        %s748 = sand.u32 %s76, 1
        %s749 = smul.addr %s748, 32
        %s750 = scalar_lea.vmem [#allocation2], %s749
        %p751 = pneg %p89
        %p752 = pneg %p86
        %s753 = sand.u32 %s42, 1
        %s754 = scalar_lea.sflag [#allocation5], %s753
        %s755 = sand.u32 %s102, 1
        %s756 = smul.addr %s755, 8
        %s757 = scalar_lea.vmem [#allocation4], %s756
        %p758 = pneg %p115
        %p759 = pneg %p112
        %s760 = sand.u32 %s42, 1
        %s761 = scalar_lea.sflag [#allocation5], %s760
        %s762 = sand.u32 %s128, 1
        %s763 = smul.addr %s762, 4096
        %s764 = scalar_lea.vmem [#allocation6], %s763
        %p765 = pneg %p141
        %p766 = pneg %p138
        %s767 = sand.u32 %s42, 1
        %s768 = scalar_lea.sflag [#allocation8], %s767
        %s769 = sand.u32 %s154, 1
        %s770 = smul.addr %s769, 8
        %s771 = scalar_lea.vmem [#allocation7], %s770
        %p772 = pneg %p167
        %p773 = pneg %p164
        %p774 = scmp.lt.s32.totalorder %s42, 1
        %s775 = scalar_select %p774, %s42, 1
        %s776 = smul.addr %s775, 128
        %s777 = smul.addr %s776, 4
        %s778 = scalar_lea.vmem %s5, %s777
        %p779 = pneg %p193
        %p780 = pneg %p190
        %s781 = sand.u32 %s42, 1
        %s782 = scalar_lea.sflag [#allocation8], %s781
        %s783 = sand.u32 %s206, 1
        %s784 = scalar_lea.vmem [#allocation9], %s783
        %p785 = pneg %p219
        %p786 = pneg %p216
        %s787 = sand.u32 %s42, 1
        %s788 = scalar_lea.sflag [#allocation11], %s787
        %s789 = sand.u32 %s232, 1
        %s790 = smul.addr %s789, 16
        %s791 = scalar_lea.vmem [#allocation10], %s790
        %p792 = pneg %p245
        %p793 = pneg %p242
        %p794 = scmp.lt.s32.totalorder %s42, 1
        %s795 = scalar_select %p794, %s42, 1
        %s796 = smul.addr %s795, 2
        %s797 = smul.addr %s796, 8
        %s798 = scalar_lea.vmem %s8, %s797
        %p799 = pneg %p271
        %p800 = pneg %p268
        %s801 = sand.u32 %s42, 1
        %s802 = scalar_lea.sflag [#allocation11], %s801
        %s803 = sand.u32 %s284, 1
        %s804 = smul.addr %s803, 8
        %s805 = scalar_lea.vmem [#allocation12], %s804
        %p806 = pneg %p297
        %p807 = pneg %p294
        %s808 = sand.u32 %s42, 1
        %s809 = scalar_lea.sflag [#allocation14], %s808
        %s810 = sand.u32 %s310, 1
        %s811 = smul.addr %s810, 8
        %s812 = scalar_lea.vmem [#allocation13], %s811
        %p813 = pneg %p323
        %p814 = pneg %p320
        %s815 = sand.u32 %s42, 1
        %s816 = scalar_lea.sflag [#allocation14], %s815
        %s817 = sand.u32 %s336, 1
        %s818 = scalar_lea.vmem [#allocation15], %s817
        %p819 = pneg %p349
        %p820 = pneg %p346
        %s821 = sand.u32 %s362, 1
        %s822 = scalar_lea.sflag [#allocation17], %s821
        %s823 = sand.u32 %s362, 1
        %s824 = scalar_lea.vmem [#allocation16], %s823
        %p825 = pneg %p375
        %p826 = pneg %p372
        %p827 = pneg %p401
        %p828 = pneg %p398
        %p829 = scmp.lt.s32.totalorder %s42, 1
        %s830 = scalar_select %p829, %s42, 1
        %s831 = smul.addr %s830, 2
        %s832 = smul.addr %s831, 8
        %s833 = scalar_lea.vmem %s13, %s832
        %p834 = scmp.lt.s32.totalorder %s42, 1
        %s835 = scalar_select %p834, %s42, 1
        %s836 = smul.addr %s835, 2
        %s837 = smul.addr %s836, 8
        %s838 = scalar_lea.vmem %s0, %s837
        %p839 = scmp.lt.s32.totalorder %s42, 1
        %s840 = scalar_select %p839, %s42, 1
        %s841 = smul.addr %s840, 128
        %s842 = smul.addr %s841, 4
        %s843 = scalar_lea.vmem %s5, %s842
        %p844 = scmp.lt.s32.totalorder %s42, 1
        %s845 = scalar_select %p844, %s42, 1
        %s846 = smul.addr %s845, 2
        %s847 = smul.addr %s846, 8
        %s848 = scalar_lea.vmem %s8, %s847
        %p849 = scmp.lt.s32.totalorder %s42, 1
        %s850 = scalar_select %p849, %s42, 1
        %s851 = smul.addr %s850, 2
        %s852 = smul.addr %s851, 8
        %s853 = scalar_lea.vmem %s13, %s852
        %v855 = vld [vmem:[%s838] sm:$0xff]
        %v856 = vld [vmem:[%s838 + $0x8] sm:$0xff]
        %v857 = vpack.c.bf16 %v856, %v855
        %v858 = vld [vmem:[%s646] sm:$0xff]
        %v859 = vld [vmem:[%s646 + $0x8] sm:$0xff]
        %v860 = vld [vmem:[%s646 + $0x10] sm:$0xff]
        %v861 = vld [vmem:[%s646 + $0x18] sm:$0xff]
        %v862 = vld [vmem:[%s656] sm:$0xff]
        %v864 = vperm.slane %v862, 0
        %v865 = vperm.slane %v862, 1
        %v866 = vperm.slane %v862, 2
        %v867 = vperm.slane %v862, 3
        %v868 = vperm.slane %v862, 4
        %v869 = vperm.slane %v862, 5
        %v870 = vperm.slane %v862, 6
        %v871 = vperm.slane %v862, 7
        %v884 = vunpack.c.l.b16 %v858
        %v885 = vunpack.c.h.b16 %v858
        %v886 = vunpack.c.l.b16 %v859
        %v887 = vunpack.c.h.b16 %v859
        %v888 = vunpack.c.l.b16 %v860
        %v889 = vunpack.c.h.b16 %v860
        %v890 = vunpack.c.l.b16 %v861
        %v891 = vunpack.c.h.b16 %v861
        %v892 = vpack.c.b16 %v884, %v884
        %v893 = vpack.c.b16 %v885, %v885
        %v894 = vpack.c.b16 %v886, %v886
        %v895 = vpack.c.b16 %v887, %v887
        %v896 = vpack.c.b16 %v888, %v888
        %v897 = vpack.c.b16 %v889, %v889
        %v898 = vpack.c.b16 %v890, %v890
        %v899 = vpack.c.b16 %v891, %v891
        %vm900 = vcmask 64512
        %v902 = vsel %vm900, %v857, 0
        %vm904 = vcmask 1043456
        %v906 = vsel %vm904, %v892, 0
        %v909 = vsel %vm904, %v893, 0
        %v912 = vsel %vm904, %v894, 0
        %v915 = vsel %vm904, %v895, 0
        %v918 = vsel %vm904, %v896, 0
        %v921 = vsel %vm904, %v897, 0
        %v924 = vsel %vm904, %v898, 0
        %v927 = vsel %vm904, %v899, 0
        %929 = vmatpush.bf16.msra.mxu0 0
        %930 = vmatpush.bf16.msra.mxu0 0
        %931 = vmatpush.bf16.msra.mxu0 0
        %932 = vmatpush.bf16.msra.mxu0 0
        %933 = vmatpush.bf16.msra.mxu0 0
        %934 = vmatpush.bf16.msra.mxu0 0
        %935 = vmatpush.bf16.msra.mxu0 0
        %936 = vmatpush.bf16.msra.mxu0 %v906
        %937 = vmatmul.bf16.gmra.mxu0 %v902
        %v938 = vpop.f32.mrf.mxu0
        %v939 = vadd.f32 %v864, %v938
        %v940 = vpop.f32.mrf.mxu0
        %v941 = vadd.f32 %v864, %v940
        %942 = vdwg.mxu0
        %943 = vmatpush.bf16.msra.mxu0 0
        %944 = vmatpush.bf16.msra.mxu0 0
        %945 = vmatpush.bf16.msra.mxu0 0
        %946 = vmatpush.bf16.msra.mxu0 0
        %947 = vmatpush.bf16.msra.mxu0 0
        %948 = vmatpush.bf16.msra.mxu0 0
        %949 = vmatpush.bf16.msra.mxu0 0
        %950 = vmatpush.bf16.msra.mxu0 %v909
        %951 = vmatmul.bf16.gmra.mxu0 %v902
        %v952 = vpop.f32.mrf.mxu0
        %v953 = vadd.f32 %v865, %v952
        %v954 = vpop.f32.mrf.mxu0
        %v955 = vadd.f32 %v865, %v954
        %956 = vdwg.mxu0
        %957 = vmatpush.bf16.msra.mxu0 0
        %958 = vmatpush.bf16.msra.mxu0 0
        %959 = vmatpush.bf16.msra.mxu0 0
        %960 = vmatpush.bf16.msra.mxu0 0
        %961 = vmatpush.bf16.msra.mxu0 0
        %962 = vmatpush.bf16.msra.mxu0 0
        %963 = vmatpush.bf16.msra.mxu0 0
        %964 = vmatpush.bf16.msra.mxu0 %v912
        %965 = vmatmul.bf16.gmra.mxu0 %v902
        %v966 = vpop.f32.mrf.mxu0
        %v967 = vadd.f32 %v866, %v966
        %v968 = vpop.f32.mrf.mxu0
        %v969 = vadd.f32 %v866, %v968
        %970 = vdwg.mxu0
        %971 = vmatpush.bf16.msra.mxu0 0
        %972 = vmatpush.bf16.msra.mxu0 0
        %973 = vmatpush.bf16.msra.mxu0 0
        %974 = vmatpush.bf16.msra.mxu0 0
        %975 = vmatpush.bf16.msra.mxu0 0
        %976 = vmatpush.bf16.msra.mxu0 0
        %977 = vmatpush.bf16.msra.mxu0 0
        %978 = vmatpush.bf16.msra.mxu0 %v915
        %979 = vmatmul.bf16.gmra.mxu0 %v902
        %v980 = vpop.f32.mrf.mxu0
        %v981 = vadd.f32 %v867, %v980
        %v982 = vpop.f32.mrf.mxu0
        %v983 = vadd.f32 %v867, %v982
        %984 = vdwg.mxu0
        %985 = vmatpush.bf16.msra.mxu0 0
        %986 = vmatpush.bf16.msra.mxu0 0
        %987 = vmatpush.bf16.msra.mxu0 0
        %988 = vmatpush.bf16.msra.mxu0 0
        %989 = vmatpush.bf16.msra.mxu0 0
        %990 = vmatpush.bf16.msra.mxu0 0
        %991 = vmatpush.bf16.msra.mxu0 0
        %992 = vmatpush.bf16.msra.mxu0 %v918
        %993 = vmatmul.bf16.gmra.mxu0 %v902
        %v994 = vpop.f32.mrf.mxu0
        %v995 = vadd.f32 %v868, %v994
        %v996 = vpop.f32.mrf.mxu0
        %v997 = vadd.f32 %v868, %v996
        %998 = vdwg.mxu0
        %999 = vmatpush.bf16.msra.mxu0 0
        %1000 = vmatpush.bf16.msra.mxu0 0
        %1001 = vmatpush.bf16.msra.mxu0 0
        %1002 = vmatpush.bf16.msra.mxu0 0
        %1003 = vmatpush.bf16.msra.mxu0 0
        %1004 = vmatpush.bf16.msra.mxu0 0
        %1005 = vmatpush.bf16.msra.mxu0 0
        %1006 = vmatpush.bf16.msra.mxu0 %v921
        %1007 = vmatmul.bf16.gmra.mxu0 %v902
        %v1008 = vpop.f32.mrf.mxu0
        %v1009 = vadd.f32 %v869, %v1008
        %v1010 = vpop.f32.mrf.mxu0
        %v1011 = vadd.f32 %v869, %v1010
        %1012 = vdwg.mxu0
        %1013 = vmatpush.bf16.msra.mxu0 0
        %1014 = vmatpush.bf16.msra.mxu0 0
        %1015 = vmatpush.bf16.msra.mxu0 0
        %1016 = vmatpush.bf16.msra.mxu0 0
        %1017 = vmatpush.bf16.msra.mxu0 0
        %1018 = vmatpush.bf16.msra.mxu0 0
        %1019 = vmatpush.bf16.msra.mxu0 0
        %1020 = vmatpush.bf16.msra.mxu0 %v924
        %1021 = vmatmul.bf16.gmra.mxu0 %v902
        %v1022 = vpop.f32.mrf.mxu0
        %v1023 = vadd.f32 %v870, %v1022
        %v1024 = vpop.f32.mrf.mxu0
        %v1025 = vadd.f32 %v870, %v1024
        %1026 = vdwg.mxu0
        %1027 = vmatpush.bf16.msra.mxu0 0
        %1028 = vmatpush.bf16.msra.mxu0 0
        %1029 = vmatpush.bf16.msra.mxu0 0
        %1030 = vmatpush.bf16.msra.mxu0 0
        %1031 = vmatpush.bf16.msra.mxu0 0
        %1032 = vmatpush.bf16.msra.mxu0 0
        %1033 = vmatpush.bf16.msra.mxu0 0
        %1034 = vmatpush.bf16.msra.mxu0 %v927
        %1035 = vmatmul.bf16.gmra.mxu0 %v902
        %v1036 = vpop.f32.mrf.mxu0
        %v1037 = vadd.f32 %v871, %v1036
        %v1038 = vpop.f32.mrf.mxu0
        %v1039 = vadd.f32 %v871, %v1038
        %1040 = vdwg.mxu0
        %v1041 = vsub.f32 0.0, %v939
        %v1042 = vsub.f32 0.0, %v953
        %v1043 = vsub.f32 0.0, %v967
        %v1044 = vsub.f32 0.0, %v981
        %v1045 = vsub.f32 0.0, %v995
        %v1046 = vsub.f32 0.0, %v1009
        %v1047 = vsub.f32 0.0, %v1023
        %v1048 = vsub.f32 0.0, %v1037
        %v1049 = vsub.f32 0.0, %v941
        %v1050 = vsub.f32 0.0, %v955
        %v1051 = vsub.f32 0.0, %v969
        %v1052 = vsub.f32 0.0, %v983
        %v1053 = vsub.f32 0.0, %v997
        %v1054 = vsub.f32 0.0, %v1011
        %v1055 = vsub.f32 0.0, %v1025
        %v1056 = vsub.f32 0.0, %v1039
        %v1057 = vmul.f32 %v1041, 1.442695
        %v1058 = vpow.pop %v1057
        %v1059 = vmul.f32 %v1042, 1.442695
        %v1060 = vpow.pop %v1059
        %v1061 = vmul.f32 %v1043, 1.442695
        %v1062 = vpow.pop %v1061
        %v1063 = vmul.f32 %v1044, 1.442695
        %v1064 = vpow.pop %v1063
        %v1065 = vmul.f32 %v1045, 1.442695
        %v1066 = vpow.pop %v1065
        %v1067 = vmul.f32 %v1046, 1.442695
        %v1068 = vpow.pop %v1067
        %v1069 = vmul.f32 %v1047, 1.442695
        %v1070 = vpow.pop %v1069
        %v1071 = vmul.f32 %v1048, 1.442695
        %v1072 = vpow.pop %v1071
        %v1073 = vmul.f32 %v1049, 1.442695
        %v1074 = vpow.pop %v1073
        %v1075 = vmul.f32 %v1050, 1.442695
        %v1076 = vpow.pop %v1075
        %v1077 = vmul.f32 %v1051, 1.442695
        %v1078 = vpow.pop %v1077
        %v1079 = vmul.f32 %v1052, 1.442695
        %v1080 = vpow.pop %v1079
        %v1081 = vmul.f32 %v1053, 1.442695
        %v1082 = vpow.pop %v1081
        %v1083 = vmul.f32 %v1054, 1.442695
        %v1084 = vpow.pop %v1083
        %v1085 = vmul.f32 %v1055, 1.442695
        %v1086 = vpow.pop %v1085
        %v1087 = vmul.f32 %v1056, 1.442695
        %v1088 = vpow.pop %v1087
        %v1089 = vadd.f32 %v1058, 1.0
        %v1090 = vadd.f32 %v1060, 1.0
        %v1091 = vadd.f32 %v1062, 1.0
        %v1092 = vadd.f32 %v1064, 1.0
        %v1093 = vadd.f32 %v1066, 1.0
        %v1094 = vadd.f32 %v1068, 1.0
        %v1095 = vadd.f32 %v1070, 1.0
        %v1096 = vadd.f32 %v1072, 1.0
        %v1097 = vadd.f32 %v1074, 1.0
        %v1098 = vadd.f32 %v1076, 1.0
        %v1099 = vadd.f32 %v1078, 1.0
        %v1100 = vadd.f32 %v1080, 1.0
        %v1101 = vadd.f32 %v1082, 1.0
        %v1102 = vadd.f32 %v1084, 1.0
        %v1103 = vadd.f32 %v1086, 1.0
        %v1104 = vadd.f32 %v1088, 1.0
        %v1105 = vrcp.pop %v1089
        %v1106 = vmul.f32 %v1089, %v1105
        %v1107 = vsub.f32 1.0, %v1106
        %v1108 = vmul.f32 %v1105, %v1107
        %v1109 = vadd.f32 %v1105, %v1108
        %vm1110 = vweird.f32 %v1089
        %vm1111 = vweird.f32 %v1105
        %vm1112 = vmor %vm1110, %vm1111
        %v1113 = vsel %vm1112, %v1105, %v1109
        %v1114 = vand.u32 2147483647, %v1089
        %vm1115 = vcmp.eq.f32.partialorder %v1114, 8.507059e+37
        %v1116 = vand.u32 %v1089, 2147483648
        %v1117 = vor.u32 1.1754944e-38, %v1116
        %v1118 = vsel %vm1115, %v1117, %v1113
        %v1119 = vmul.f32 1.0, %v1118
        %v1120 = vrcp.pop %v1090
        %v1121 = vmul.f32 %v1090, %v1120
        %v1122 = vsub.f32 1.0, %v1121
        %v1123 = vmul.f32 %v1120, %v1122
        %v1124 = vadd.f32 %v1120, %v1123
        %vm1125 = vweird.f32 %v1090
        %vm1126 = vweird.f32 %v1120
        %vm1127 = vmor %vm1125, %vm1126
        %v1128 = vsel %vm1127, %v1120, %v1124
        %v1129 = vand.u32 2147483647, %v1090
        %vm1130 = vcmp.eq.f32.partialorder %v1129, 8.507059e+37
        %v1131 = vand.u32 %v1090, 2147483648
        %v1132 = vor.u32 1.1754944e-38, %v1131
        %v1133 = vsel %vm1130, %v1132, %v1128
        %v1134 = vmul.f32 1.0, %v1133
        %v1135 = vrcp.pop %v1091
        %v1136 = vmul.f32 %v1091, %v1135
        %v1137 = vsub.f32 1.0, %v1136
        %v1138 = vmul.f32 %v1135, %v1137
        %v1139 = vadd.f32 %v1135, %v1138
        %vm1140 = vweird.f32 %v1091
        %vm1141 = vweird.f32 %v1135
        %vm1142 = vmor %vm1140, %vm1141
        %v1143 = vsel %vm1142, %v1135, %v1139
        %v1144 = vand.u32 2147483647, %v1091
        %vm1145 = vcmp.eq.f32.partialorder %v1144, 8.507059e+37
        %v1146 = vand.u32 %v1091, 2147483648
        %v1147 = vor.u32 1.1754944e-38, %v1146
        %v1148 = vsel %vm1145, %v1147, %v1143
        %v1149 = vmul.f32 1.0, %v1148
        %v1150 = vrcp.pop %v1092
        %v1151 = vmul.f32 %v1092, %v1150
        %v1152 = vsub.f32 1.0, %v1151
        %v1153 = vmul.f32 %v1150, %v1152
        %v1154 = vadd.f32 %v1150, %v1153
        %vm1155 = vweird.f32 %v1092
        %vm1156 = vweird.f32 %v1150
        %vm1157 = vmor %vm1155, %vm1156
        %v1158 = vsel %vm1157, %v1150, %v1154
        %v1159 = vand.u32 2147483647, %v1092
        %vm1160 = vcmp.eq.f32.partialorder %v1159, 8.507059e+37
        %v1161 = vand.u32 %v1092, 2147483648
        %v1162 = vor.u32 1.1754944e-38, %v1161
        %v1163 = vsel %vm1160, %v1162, %v1158
        %v1164 = vmul.f32 1.0, %v1163
        %v1165 = vrcp.pop %v1093
        %v1166 = vmul.f32 %v1093, %v1165
        %v1167 = vsub.f32 1.0, %v1166
        %v1168 = vmul.f32 %v1165, %v1167
        %v1169 = vadd.f32 %v1165, %v1168
        %vm1170 = vweird.f32 %v1093
        %vm1171 = vweird.f32 %v1165
        %vm1172 = vmor %vm1170, %vm1171
        %v1173 = vsel %vm1172, %v1165, %v1169
        %v1174 = vand.u32 2147483647, %v1093
        %vm1175 = vcmp.eq.f32.partialorder %v1174, 8.507059e+37
        %v1176 = vand.u32 %v1093, 2147483648
        %v1177 = vor.u32 1.1754944e-38, %v1176
        %v1178 = vsel %vm1175, %v1177, %v1173
        %v1179 = vmul.f32 1.0, %v1178
        %v1180 = vrcp.pop %v1094
        %v1181 = vmul.f32 %v1094, %v1180
        %v1182 = vsub.f32 1.0, %v1181
        %v1183 = vmul.f32 %v1180, %v1182
        %v1184 = vadd.f32 %v1180, %v1183
        %vm1185 = vweird.f32 %v1094
        %vm1186 = vweird.f32 %v1180
        %vm1187 = vmor %vm1185, %vm1186
        %v1188 = vsel %vm1187, %v1180, %v1184
        %v1189 = vand.u32 2147483647, %v1094
        %vm1190 = vcmp.eq.f32.partialorder %v1189, 8.507059e+37
        %v1191 = vand.u32 %v1094, 2147483648
        %v1192 = vor.u32 1.1754944e-38, %v1191
        %v1193 = vsel %vm1190, %v1192, %v1188
        %v1194 = vmul.f32 1.0, %v1193
        %v1195 = vrcp.pop %v1095
        %v1196 = vmul.f32 %v1095, %v1195
        %v1197 = vsub.f32 1.0, %v1196
        %v1198 = vmul.f32 %v1195, %v1197
        %v1199 = vadd.f32 %v1195, %v1198
        %vm1200 = vweird.f32 %v1095
        %vm1201 = vweird.f32 %v1195
        %vm1202 = vmor %vm1200, %vm1201
        %v1203 = vsel %vm1202, %v1195, %v1199
        %v1204 = vand.u32 2147483647, %v1095
        %vm1205 = vcmp.eq.f32.partialorder %v1204, 8.507059e+37
        %v1206 = vand.u32 %v1095, 2147483648
        %v1207 = vor.u32 1.1754944e-38, %v1206
        %v1208 = vsel %vm1205, %v1207, %v1203
        %v1209 = vmul.f32 1.0, %v1208
        %v1210 = vrcp.pop %v1096
        %v1211 = vmul.f32 %v1096, %v1210
        %v1212 = vsub.f32 1.0, %v1211
        %v1213 = vmul.f32 %v1210, %v1212
        %v1214 = vadd.f32 %v1210, %v1213
        %vm1215 = vweird.f32 %v1096
        %vm1216 = vweird.f32 %v1210
        %vm1217 = vmor %vm1215, %vm1216
        %v1218 = vsel %vm1217, %v1210, %v1214
        %v1219 = vand.u32 2147483647, %v1096
        %vm1220 = vcmp.eq.f32.partialorder %v1219, 8.507059e+37
        %v1221 = vand.u32 %v1096, 2147483648
        %v1222 = vor.u32 1.1754944e-38, %v1221
        %v1223 = vsel %vm1220, %v1222, %v1218
        %v1224 = vmul.f32 1.0, %v1223
        %v1225 = vrcp.pop %v1097
        %v1226 = vmul.f32 %v1097, %v1225
        %v1227 = vsub.f32 1.0, %v1226
        %v1228 = vmul.f32 %v1225, %v1227
        %v1229 = vadd.f32 %v1225, %v1228
        %vm1230 = vweird.f32 %v1097
        %vm1231 = vweird.f32 %v1225
        %vm1232 = vmor %vm1230, %vm1231
        %v1233 = vsel %vm1232, %v1225, %v1229
        %v1234 = vand.u32 2147483647, %v1097
        %vm1235 = vcmp.eq.f32.partialorder %v1234, 8.507059e+37
        %v1236 = vand.u32 %v1097, 2147483648
        %v1237 = vor.u32 1.1754944e-38, %v1236
        %v1238 = vsel %vm1235, %v1237, %v1233
        %v1239 = vmul.f32 1.0, %v1238
        %v1240 = vrcp.pop %v1098
        %v1241 = vmul.f32 %v1098, %v1240
        %v1242 = vsub.f32 1.0, %v1241
        %v1243 = vmul.f32 %v1240, %v1242
        %v1244 = vadd.f32 %v1240, %v1243
        %vm1245 = vweird.f32 %v1098
        %vm1246 = vweird.f32 %v1240
        %vm1247 = vmor %vm1245, %vm1246
        %v1248 = vsel %vm1247, %v1240, %v1244
        %v1249 = vand.u32 2147483647, %v1098
        %vm1250 = vcmp.eq.f32.partialorder %v1249, 8.507059e+37
        %v1251 = vand.u32 %v1098, 2147483648
        %v1252 = vor.u32 1.1754944e-38, %v1251
        %v1253 = vsel %vm1250, %v1252, %v1248
        %v1254 = vmul.f32 1.0, %v1253
        %v1255 = vrcp.pop %v1099
        %v1256 = vmul.f32 %v1099, %v1255
        %v1257 = vsub.f32 1.0, %v1256
        %v1258 = vmul.f32 %v1255, %v1257
        %v1259 = vadd.f32 %v1255, %v1258
        %vm1260 = vweird.f32 %v1099
        %vm1261 = vweird.f32 %v1255
        %vm1262 = vmor %vm1260, %vm1261
        %v1263 = vsel %vm1262, %v1255, %v1259
        %v1264 = vand.u32 2147483647, %v1099
        %vm1265 = vcmp.eq.f32.partialorder %v1264, 8.507059e+37
        %v1266 = vand.u32 %v1099, 2147483648
        %v1267 = vor.u32 1.1754944e-38, %v1266
        %v1268 = vsel %vm1265, %v1267, %v1263
        %v1269 = vmul.f32 1.0, %v1268
        %v1270 = vrcp.pop %v1100
        %v1271 = vmul.f32 %v1100, %v1270
        %v1272 = vsub.f32 1.0, %v1271
        %v1273 = vmul.f32 %v1270, %v1272
        %v1274 = vadd.f32 %v1270, %v1273
        %vm1275 = vweird.f32 %v1100
        %vm1276 = vweird.f32 %v1270
        %vm1277 = vmor %vm1275, %vm1276
        %v1278 = vsel %vm1277, %v1270, %v1274
        %v1279 = vand.u32 2147483647, %v1100
        %vm1280 = vcmp.eq.f32.partialorder %v1279, 8.507059e+37
        %v1281 = vand.u32 %v1100, 2147483648
        %v1282 = vor.u32 1.1754944e-38, %v1281
        %v1283 = vsel %vm1280, %v1282, %v1278
        %v1284 = vmul.f32 1.0, %v1283
        %v1285 = vrcp.pop %v1101
        %v1286 = vmul.f32 %v1101, %v1285
        %v1287 = vsub.f32 1.0, %v1286
        %v1288 = vmul.f32 %v1285, %v1287
        %v1289 = vadd.f32 %v1285, %v1288
        %vm1290 = vweird.f32 %v1101
        %vm1291 = vweird.f32 %v1285
        %vm1292 = vmor %vm1290, %vm1291
        %v1293 = vsel %vm1292, %v1285, %v1289
        %v1294 = vand.u32 2147483647, %v1101
        %vm1295 = vcmp.eq.f32.partialorder %v1294, 8.507059e+37
        %v1296 = vand.u32 %v1101, 2147483648
        %v1297 = vor.u32 1.1754944e-38, %v1296
        %v1298 = vsel %vm1295, %v1297, %v1293
        %v1299 = vmul.f32 1.0, %v1298
        %v1300 = vrcp.pop %v1102
        %v1301 = vmul.f32 %v1102, %v1300
        %v1302 = vsub.f32 1.0, %v1301
        %v1303 = vmul.f32 %v1300, %v1302
        %v1304 = vadd.f32 %v1300, %v1303
        %vm1305 = vweird.f32 %v1102
        %vm1306 = vweird.f32 %v1300
        %vm1307 = vmor %vm1305, %vm1306
        %v1308 = vsel %vm1307, %v1300, %v1304
        %v1309 = vand.u32 2147483647, %v1102
        %vm1310 = vcmp.eq.f32.partialorder %v1309, 8.507059e+37
        %v1311 = vand.u32 %v1102, 2147483648
        %v1312 = vor.u32 1.1754944e-38, %v1311
        %v1313 = vsel %vm1310, %v1312, %v1308
        %v1314 = vmul.f32 1.0, %v1313
        %v1315 = vrcp.pop %v1103
        %v1316 = vmul.f32 %v1103, %v1315
        %v1317 = vsub.f32 1.0, %v1316
        %v1318 = vmul.f32 %v1315, %v1317
        %v1319 = vadd.f32 %v1315, %v1318
        %vm1320 = vweird.f32 %v1103
        %vm1321 = vweird.f32 %v1315
        %vm1322 = vmor %vm1320, %vm1321
        %v1323 = vsel %vm1322, %v1315, %v1319
        %v1324 = vand.u32 2147483647, %v1103
        %vm1325 = vcmp.eq.f32.partialorder %v1324, 8.507059e+37
        %v1326 = vand.u32 %v1103, 2147483648
        %v1327 = vor.u32 1.1754944e-38, %v1326
        %v1328 = vsel %vm1325, %v1327, %v1323
        %v1329 = vmul.f32 1.0, %v1328
        %v1330 = vrcp.pop %v1104
        %v1331 = vmul.f32 %v1104, %v1330
        %v1332 = vsub.f32 1.0, %v1331
        %v1333 = vmul.f32 %v1330, %v1332
        %v1334 = vadd.f32 %v1330, %v1333
        %vm1335 = vweird.f32 %v1104
        %vm1336 = vweird.f32 %v1330
        %vm1337 = vmor %vm1335, %vm1336
        %v1338 = vsel %vm1337, %v1330, %v1334
        %v1339 = vand.u32 2147483647, %v1104
        %vm1340 = vcmp.eq.f32.partialorder %v1339, 8.507059e+37
        %v1341 = vand.u32 %v1104, 2147483648
        %v1342 = vor.u32 1.1754944e-38, %v1341
        %v1343 = vsel %vm1340, %v1342, %v1338
        %v1344 = vmul.f32 1.0, %v1343
        %v1345 = vpack.c.bf16 %v1239, %v1119
        %v1346 = vpack.c.bf16 %v1254, %v1134
        %v1347 = vpack.c.bf16 %v1269, %v1149
        %v1348 = vpack.c.bf16 %v1284, %v1164
        %v1349 = vpack.c.bf16 %v1299, %v1179
        %v1350 = vpack.c.bf16 %v1314, %v1194
        %v1351 = vpack.c.bf16 %v1329, %v1209
        %v1352 = vpack.c.bf16 %v1344, %v1224
        %v1353 = vld [vmem:[%s666] sm:$0xff]
        %v1354 = vld [vmem:[%s666 + $0x8] sm:$0xff]
        %v1355 = vld [vmem:[%s666 + $0x10] sm:$0xff]
        %v1356 = vld [vmem:[%s666 + $0x18] sm:$0xff]
        %v1357 = vld [vmem:[%s666 + $0x20] sm:$0xff]
        %v1358 = vld [vmem:[%s666 + $0x28] sm:$0xff]
        %v1359 = vld [vmem:[%s666 + $0x30] sm:$0xff]
        %v1360 = vld [vmem:[%s666 + $0x38] sm:$0xff]
        %v1361 = vld [vmem:[%s666 + $0x40] sm:$0xff]
        %v1362 = vld [vmem:[%s666 + $0x48] sm:$0xff]
        %v1363 = vld [vmem:[%s666 + $0x50] sm:$0xff]
        %v1364 = vld [vmem:[%s666 + $0x58] sm:$0xff]
        %v1365 = vld [vmem:[%s666 + $0x60] sm:$0xff]
        %v1366 = vld [vmem:[%s666 + $0x68] sm:$0xff]
        %v1367 = vld [vmem:[%s666 + $0x70] sm:$0xff]
        %v1368 = vld [vmem:[%s666 + $0x78] sm:$0xff]
        %v1369 = vld [vmem:[%s666 + $0x80] sm:$0xff]
        %v1370 = vld [vmem:[%s666 + $0x88] sm:$0xff]
        %v1371 = vld [vmem:[%s666 + $0x90] sm:$0xff]
        %v1372 = vld [vmem:[%s666 + $0x98] sm:$0xff]
        %v1373 = vld [vmem:[%s666 + $0xa0] sm:$0xff]
        %v1374 = vld [vmem:[%s666 + $0xa8] sm:$0xff]
        %v1375 = vld [vmem:[%s666 + $0xb0] sm:$0xff]
        %v1376 = vld [vmem:[%s666 + $0xb8] sm:$0xff]
        %v1377 = vld [vmem:[%s666 + $0xc0] sm:$0xff]
        %v1378 = vld [vmem:[%s666 + $0xc8] sm:$0xff]
        %v1379 = vld [vmem:[%s666 + $0xd0] sm:$0xff]
        %v1380 = vld [vmem:[%s666 + $0xd8] sm:$0xff]
        %v1381 = vld [vmem:[%s666 + $0xe0] sm:$0xff]
        %v1382 = vld [vmem:[%s666 + $0xe8] sm:$0xff]
        %v1383 = vld [vmem:[%s666 + $0xf0] sm:$0xff]
        %v1384 = vld [vmem:[%s666 + $0xf8] sm:$0xff]
        %v1385 = vld [vmem:[%s666 + $0x100] sm:$0xff]
        %v1386 = vld [vmem:[%s666 + $0x108] sm:$0xff]
        %v1387 = vld [vmem:[%s666 + $0x110] sm:$0xff]
        %v1388 = vld [vmem:[%s666 + $0x118] sm:$0xff]
        %v1389 = vld [vmem:[%s666 + $0x120] sm:$0xff]
        %v1390 = vld [vmem:[%s666 + $0x128] sm:$0xff]
        %v1391 = vld [vmem:[%s666 + $0x130] sm:$0xff]
        %v1392 = vld [vmem:[%s666 + $0x138] sm:$0xff]
        %v1393 = vld [vmem:[%s666 + $0x140] sm:$0xff]
        %v1394 = vld [vmem:[%s666 + $0x148] sm:$0xff]
        %v1395 = vld [vmem:[%s666 + $0x150] sm:$0xff]
        %v1396 = vld [vmem:[%s666 + $0x158] sm:$0xff]
        %v1397 = vld [vmem:[%s666 + $0x160] sm:$0xff]
        %v1398 = vld [vmem:[%s666 + $0x168] sm:$0xff]
        %v1399 = vld [vmem:[%s666 + $0x170] sm:$0xff]
        %v1400 = vld [vmem:[%s666 + $0x178] sm:$0xff]
        %v1401 = vld [vmem:[%s666 + $0x180] sm:$0xff]
        %v1402 = vld [vmem:[%s666 + $0x188] sm:$0xff]
        %v1403 = vld [vmem:[%s666 + $0x190] sm:$0xff]
        %v1404 = vld [vmem:[%s666 + $0x198] sm:$0xff]
        %v1405 = vld [vmem:[%s666 + $0x1a0] sm:$0xff]
        %v1406 = vld [vmem:[%s666 + $0x1a8] sm:$0xff]
        %v1407 = vld [vmem:[%s666 + $0x1b0] sm:$0xff]
        %v1408 = vld [vmem:[%s666 + $0x1b8] sm:$0xff]
        %v1409 = vld [vmem:[%s666 + $0x1c0] sm:$0xff]
        %v1410 = vld [vmem:[%s666 + $0x1c8] sm:$0xff]
        %v1411 = vld [vmem:[%s666 + $0x1d0] sm:$0xff]
        %v1412 = vld [vmem:[%s666 + $0x1d8] sm:$0xff]
        %v1413 = vld [vmem:[%s666 + $0x1e0] sm:$0xff]
        %v1414 = vld [vmem:[%s666 + $0x1e8] sm:$0xff]
        %v1415 = vld [vmem:[%s666 + $0x1f0] sm:$0xff]
        %v1416 = vld [vmem:[%s666 + $0x1f8] sm:$0xff]
        %v1417 = vld [vmem:[%s666 + $0x200] sm:$0xff]
        %v1418 = vld [vmem:[%s666 + $0x208] sm:$0xff]
        %v1419 = vld [vmem:[%s666 + $0x210] sm:$0xff]
        %v1420 = vld [vmem:[%s666 + $0x218] sm:$0xff]
        %v1421 = vld [vmem:[%s666 + $0x220] sm:$0xff]
        %v1422 = vld [vmem:[%s666 + $0x228] sm:$0xff]
        %v1423 = vld [vmem:[%s666 + $0x230] sm:$0xff]
        %v1424 = vld [vmem:[%s666 + $0x238] sm:$0xff]
        %v1425 = vld [vmem:[%s666 + $0x240] sm:$0xff]
        %v1426 = vld [vmem:[%s666 + $0x248] sm:$0xff]
        %v1427 = vld [vmem:[%s666 + $0x250] sm:$0xff]
        %v1428 = vld [vmem:[%s666 + $0x258] sm:$0xff]
        %v1429 = vld [vmem:[%s666 + $0x260] sm:$0xff]
        %v1430 = vld [vmem:[%s666 + $0x268] sm:$0xff]
        %v1431 = vld [vmem:[%s666 + $0x270] sm:$0xff]
        %v1432 = vld [vmem:[%s666 + $0x278] sm:$0xff]
        %v1433 = vld [vmem:[%s666 + $0x280] sm:$0xff]
        %v1434 = vld [vmem:[%s666 + $0x288] sm:$0xff]
        %v1435 = vld [vmem:[%s666 + $0x290] sm:$0xff]
        %v1436 = vld [vmem:[%s666 + $0x298] sm:$0xff]
        %v1437 = vld [vmem:[%s666 + $0x2a0] sm:$0xff]
        %v1438 = vld [vmem:[%s666 + $0x2a8] sm:$0xff]
        %v1439 = vld [vmem:[%s666 + $0x2b0] sm:$0xff]
        %v1440 = vld [vmem:[%s666 + $0x2b8] sm:$0xff]
        %v1441 = vld [vmem:[%s666 + $0x2c0] sm:$0xff]
        %v1442 = vld [vmem:[%s666 + $0x2c8] sm:$0xff]
        %v1443 = vld [vmem:[%s666 + $0x2d0] sm:$0xff]
        %v1444 = vld [vmem:[%s666 + $0x2d8] sm:$0xff]
        %v1445 = vld [vmem:[%s666 + $0x2e0] sm:$0xff]
        %v1446 = vld [vmem:[%s666 + $0x2e8] sm:$0xff]
        %v1447 = vld [vmem:[%s666 + $0x2f0] sm:$0xff]
        %v1448 = vld [vmem:[%s666 + $0x2f8] sm:$0xff]
        %v1449 = vld [vmem:[%s666 + $0x300] sm:$0xff]
        %v1450 = vld [vmem:[%s666 + $0x308] sm:$0xff]
        %v1451 = vld [vmem:[%s666 + $0x310] sm:$0xff]
        %v1452 = vld [vmem:[%s666 + $0x318] sm:$0xff]
        %v1453 = vld [vmem:[%s666 + $0x320] sm:$0xff]
        %v1454 = vld [vmem:[%s666 + $0x328] sm:$0xff]
        %v1455 = vld [vmem:[%s666 + $0x330] sm:$0xff]
        %v1456 = vld [vmem:[%s666 + $0x338] sm:$0xff]
        %v1457 = vld [vmem:[%s666 + $0x340] sm:$0xff]
        %v1458 = vld [vmem:[%s666 + $0x348] sm:$0xff]
        %v1459 = vld [vmem:[%s666 + $0x350] sm:$0xff]
        %v1460 = vld [vmem:[%s666 + $0x358] sm:$0xff]
        %v1461 = vld [vmem:[%s666 + $0x360] sm:$0xff]
        %v1462 = vld [vmem:[%s666 + $0x368] sm:$0xff]
        %v1463 = vld [vmem:[%s666 + $0x370] sm:$0xff]
        %v1464 = vld [vmem:[%s666 + $0x378] sm:$0xff]
        %v1465 = vld [vmem:[%s666 + $0x380] sm:$0xff]
        %v1466 = vld [vmem:[%s666 + $0x388] sm:$0xff]
        %v1467 = vld [vmem:[%s666 + $0x390] sm:$0xff]
        %v1468 = vld [vmem:[%s666 + $0x398] sm:$0xff]
        %v1469 = vld [vmem:[%s666 + $0x3a0] sm:$0xff]
        %v1470 = vld [vmem:[%s666 + $0x3a8] sm:$0xff]
        %v1471 = vld [vmem:[%s666 + $0x3b0] sm:$0xff]
        %v1472 = vld [vmem:[%s666 + $0x3b8] sm:$0xff]
        %v1473 = vld [vmem:[%s666 + $0x3c0] sm:$0xff]
        %v1474 = vld [vmem:[%s666 + $0x3c8] sm:$0xff]
        %v1475 = vld [vmem:[%s666 + $0x3d0] sm:$0xff]
        %v1476 = vld [vmem:[%s666 + $0x3d8] sm:$0xff]
        %v1477 = vld [vmem:[%s666 + $0x3e0] sm:$0xff]
        %v1478 = vld [vmem:[%s666 + $0x3e8] sm:$0xff]
        %v1479 = vld [vmem:[%s666 + $0x3f0] sm:$0xff]
        %v1480 = vld [vmem:[%s666 + $0x3f8] sm:$0xff]
        %v1481 = vld [vmem:[%s666 + $0x400] sm:$0xff]
        %v1482 = vld [vmem:[%s666 + $0x408] sm:$0xff]
        %v1483 = vld [vmem:[%s666 + $0x410] sm:$0xff]
        %v1484 = vld [vmem:[%s666 + $0x418] sm:$0xff]
        %v1485 = vld [vmem:[%s666 + $0x420] sm:$0xff]
        %v1486 = vld [vmem:[%s666 + $0x428] sm:$0xff]
        %v1487 = vld [vmem:[%s666 + $0x430] sm:$0xff]
        %v1488 = vld [vmem:[%s666 + $0x438] sm:$0xff]
        %v1489 = vld [vmem:[%s666 + $0x440] sm:$0xff]
        %v1490 = vld [vmem:[%s666 + $0x448] sm:$0xff]
        %v1491 = vld [vmem:[%s666 + $0x450] sm:$0xff]
        %v1492 = vld [vmem:[%s666 + $0x458] sm:$0xff]
        %v1493 = vld [vmem:[%s666 + $0x460] sm:$0xff]
        %v1494 = vld [vmem:[%s666 + $0x468] sm:$0xff]
        %v1495 = vld [vmem:[%s666 + $0x470] sm:$0xff]
        %v1496 = vld [vmem:[%s666 + $0x478] sm:$0xff]
        %v1497 = vld [vmem:[%s666 + $0x480] sm:$0xff]
        %v1498 = vld [vmem:[%s666 + $0x488] sm:$0xff]
        %v1499 = vld [vmem:[%s666 + $0x490] sm:$0xff]
        %v1500 = vld [vmem:[%s666 + $0x498] sm:$0xff]
        %v1501 = vld [vmem:[%s666 + $0x4a0] sm:$0xff]
        %v1502 = vld [vmem:[%s666 + $0x4a8] sm:$0xff]
        %v1503 = vld [vmem:[%s666 + $0x4b0] sm:$0xff]
        %v1504 = vld [vmem:[%s666 + $0x4b8] sm:$0xff]
        %v1505 = vld [vmem:[%s666 + $0x4c0] sm:$0xff]
        %v1506 = vld [vmem:[%s666 + $0x4c8] sm:$0xff]
        %v1507 = vld [vmem:[%s666 + $0x4d0] sm:$0xff]
        %v1508 = vld [vmem:[%s666 + $0x4d8] sm:$0xff]
        %v1509 = vld [vmem:[%s666 + $0x4e0] sm:$0xff]
        %v1510 = vld [vmem:[%s666 + $0x4e8] sm:$0xff]
        %v1511 = vld [vmem:[%s666 + $0x4f0] sm:$0xff]
        %v1512 = vld [vmem:[%s666 + $0x4f8] sm:$0xff]
        %v1513 = vld [vmem:[%s666 + $0x500] sm:$0xff]
        %v1514 = vld [vmem:[%s666 + $0x508] sm:$0xff]
        %v1515 = vld [vmem:[%s666 + $0x510] sm:$0xff]
        %v1516 = vld [vmem:[%s666 + $0x518] sm:$0xff]
        %v1517 = vld [vmem:[%s666 + $0x520] sm:$0xff]
        %v1518 = vld [vmem:[%s666 + $0x528] sm:$0xff]
        %v1519 = vld [vmem:[%s666 + $0x530] sm:$0xff]
        %v1520 = vld [vmem:[%s666 + $0x538] sm:$0xff]
        %v1521 = vld [vmem:[%s666 + $0x540] sm:$0xff]
        %v1522 = vld [vmem:[%s666 + $0x548] sm:$0xff]
        %v1523 = vld [vmem:[%s666 + $0x550] sm:$0xff]
        %v1524 = vld [vmem:[%s666 + $0x558] sm:$0xff]
        %v1525 = vld [vmem:[%s666 + $0x560] sm:$0xff]
        %v1526 = vld [vmem:[%s666 + $0x568] sm:$0xff]
        %v1527 = vld [vmem:[%s666 + $0x570] sm:$0xff]
        %v1528 = vld [vmem:[%s666 + $0x578] sm:$0xff]
        %v1529 = vld [vmem:[%s666 + $0x580] sm:$0xff]
        %v1530 = vld [vmem:[%s666 + $0x588] sm:$0xff]
        %v1531 = vld [vmem:[%s666 + $0x590] sm:$0xff]
        %v1532 = vld [vmem:[%s666 + $0x598] sm:$0xff]
        %v1533 = vld [vmem:[%s666 + $0x5a0] sm:$0xff]
        %v1534 = vld [vmem:[%s666 + $0x5a8] sm:$0xff]
        %v1535 = vld [vmem:[%s666 + $0x5b0] sm:$0xff]
        %v1536 = vld [vmem:[%s666 + $0x5b8] sm:$0xff]
        %v1537 = vld [vmem:[%s666 + $0x5c0] sm:$0xff]
        %v1538 = vld [vmem:[%s666 + $0x5c8] sm:$0xff]
        %v1539 = vld [vmem:[%s666 + $0x5d0] sm:$0xff]
        %v1540 = vld [vmem:[%s666 + $0x5d8] sm:$0xff]
        %v1541 = vld [vmem:[%s666 + $0x5e0] sm:$0xff]
        %v1542 = vld [vmem:[%s666 + $0x5e8] sm:$0xff]
        %v1543 = vld [vmem:[%s666 + $0x5f0] sm:$0xff]
        %v1544 = vld [vmem:[%s666 + $0x5f8] sm:$0xff]
        %v1545 = vld [vmem:[%s666 + $0x600] sm:$0xff]
        %v1546 = vld [vmem:[%s666 + $0x608] sm:$0xff]
        %v1547 = vld [vmem:[%s666 + $0x610] sm:$0xff]
        %v1548 = vld [vmem:[%s666 + $0x618] sm:$0xff]
        %v1549 = vld [vmem:[%s666 + $0x620] sm:$0xff]
        %v1550 = vld [vmem:[%s666 + $0x628] sm:$0xff]
        %v1551 = vld [vmem:[%s666 + $0x630] sm:$0xff]
        %v1552 = vld [vmem:[%s666 + $0x638] sm:$0xff]
        %v1553 = vld [vmem:[%s666 + $0x640] sm:$0xff]
        %v1554 = vld [vmem:[%s666 + $0x648] sm:$0xff]
        %v1555 = vld [vmem:[%s666 + $0x650] sm:$0xff]
        %v1556 = vld [vmem:[%s666 + $0x658] sm:$0xff]
        %v1557 = vld [vmem:[%s666 + $0x660] sm:$0xff]
        %v1558 = vld [vmem:[%s666 + $0x668] sm:$0xff]
        %v1559 = vld [vmem:[%s666 + $0x670] sm:$0xff]
        %v1560 = vld [vmem:[%s666 + $0x678] sm:$0xff]
        %v1561 = vld [vmem:[%s666 + $0x680] sm:$0xff]
        %v1562 = vld [vmem:[%s666 + $0x688] sm:$0xff]
        %v1563 = vld [vmem:[%s666 + $0x690] sm:$0xff]
        %v1564 = vld [vmem:[%s666 + $0x698] sm:$0xff]
        %v1565 = vld [vmem:[%s666 + $0x6a0] sm:$0xff]
        %v1566 = vld [vmem:[%s666 + $0x6a8] sm:$0xff]
        %v1567 = vld [vmem:[%s666 + $0x6b0] sm:$0xff]
        %v1568 = vld [vmem:[%s666 + $0x6b8] sm:$0xff]
        %v1569 = vld [vmem:[%s666 + $0x6c0] sm:$0xff]
        %v1570 = vld [vmem:[%s666 + $0x6c8] sm:$0xff]
        %v1571 = vld [vmem:[%s666 + $0x6d0] sm:$0xff]
        %v1572 = vld [vmem:[%s666 + $0x6d8] sm:$0xff]
        %v1573 = vld [vmem:[%s666 + $0x6e0] sm:$0xff]
        %v1574 = vld [vmem:[%s666 + $0x6e8] sm:$0xff]
        %v1575 = vld [vmem:[%s666 + $0x6f0] sm:$0xff]
        %v1576 = vld [vmem:[%s666 + $0x6f8] sm:$0xff]
        %v1577 = vld [vmem:[%s666 + $0x700] sm:$0xff]
        %v1578 = vld [vmem:[%s666 + $0x708] sm:$0xff]
        %v1579 = vld [vmem:[%s666 + $0x710] sm:$0xff]
        %v1580 = vld [vmem:[%s666 + $0x718] sm:$0xff]
        %v1581 = vld [vmem:[%s666 + $0x720] sm:$0xff]
        %v1582 = vld [vmem:[%s666 + $0x728] sm:$0xff]
        %v1583 = vld [vmem:[%s666 + $0x730] sm:$0xff]
        %v1584 = vld [vmem:[%s666 + $0x738] sm:$0xff]
        %v1585 = vld [vmem:[%s666 + $0x740] sm:$0xff]
        %v1586 = vld [vmem:[%s666 + $0x748] sm:$0xff]
        %v1587 = vld [vmem:[%s666 + $0x750] sm:$0xff]
        %v1588 = vld [vmem:[%s666 + $0x758] sm:$0xff]
        %v1589 = vld [vmem:[%s666 + $0x760] sm:$0xff]
        %v1590 = vld [vmem:[%s666 + $0x768] sm:$0xff]
        %v1591 = vld [vmem:[%s666 + $0x770] sm:$0xff]
        %v1592 = vld [vmem:[%s666 + $0x778] sm:$0xff]
        %v1593 = vld [vmem:[%s666 + $0x780] sm:$0xff]
        %v1594 = vld [vmem:[%s666 + $0x788] sm:$0xff]
        %v1595 = vld [vmem:[%s666 + $0x790] sm:$0xff]
        %v1596 = vld [vmem:[%s666 + $0x798] sm:$0xff]
        %v1597 = vld [vmem:[%s666 + $0x7a0] sm:$0xff]
        %v1598 = vld [vmem:[%s666 + $0x7a8] sm:$0xff]
        %v1599 = vld [vmem:[%s666 + $0x7b0] sm:$0xff]
        %v1600 = vld [vmem:[%s666 + $0x7b8] sm:$0xff]
        %v1601 = vld [vmem:[%s666 + $0x7c0] sm:$0xff]
        %v1602 = vld [vmem:[%s666 + $0x7c8] sm:$0xff]
        %v1603 = vld [vmem:[%s666 + $0x7d0] sm:$0xff]
        %v1604 = vld [vmem:[%s666 + $0x7d8] sm:$0xff]
        %v1605 = vld [vmem:[%s666 + $0x7e0] sm:$0xff]
        %v1606 = vld [vmem:[%s666 + $0x7e8] sm:$0xff]
        %v1607 = vld [vmem:[%s666 + $0x7f0] sm:$0xff]
        %v1608 = vld [vmem:[%s666 + $0x7f8] sm:$0xff]
        %v1609 = vld [vmem:[%s666 + $0x800] sm:$0xff]
        %v1610 = vld [vmem:[%s666 + $0x808] sm:$0xff]
        %v1611 = vld [vmem:[%s666 + $0x810] sm:$0xff]
        %v1612 = vld [vmem:[%s666 + $0x818] sm:$0xff]
        %v1613 = vld [vmem:[%s666 + $0x820] sm:$0xff]
        %v1614 = vld [vmem:[%s666 + $0x828] sm:$0xff]
        %v1615 = vld [vmem:[%s666 + $0x830] sm:$0xff]
        %v1616 = vld [vmem:[%s666 + $0x838] sm:$0xff]
        %v1617 = vld [vmem:[%s666 + $0x840] sm:$0xff]
        %v1618 = vld [vmem:[%s666 + $0x848] sm:$0xff]
        %v1619 = vld [vmem:[%s666 + $0x850] sm:$0xff]
        %v1620 = vld [vmem:[%s666 + $0x858] sm:$0xff]
        %v1621 = vld [vmem:[%s666 + $0x860] sm:$0xff]
        %v1622 = vld [vmem:[%s666 + $0x868] sm:$0xff]
        %v1623 = vld [vmem:[%s666 + $0x870] sm:$0xff]
        %v1624 = vld [vmem:[%s666 + $0x878] sm:$0xff]
        %v1625 = vld [vmem:[%s666 + $0x880] sm:$0xff]
        %v1626 = vld [vmem:[%s666 + $0x888] sm:$0xff]
        %v1627 = vld [vmem:[%s666 + $0x890] sm:$0xff]
        %v1628 = vld [vmem:[%s666 + $0x898] sm:$0xff]
        %v1629 = vld [vmem:[%s666 + $0x8a0] sm:$0xff]
        %v1630 = vld [vmem:[%s666 + $0x8a8] sm:$0xff]
        %v1631 = vld [vmem:[%s666 + $0x8b0] sm:$0xff]
        %v1632 = vld [vmem:[%s666 + $0x8b8] sm:$0xff]
        %v1633 = vld [vmem:[%s666 + $0x8c0] sm:$0xff]
        %v1634 = vld [vmem:[%s666 + $0x8c8] sm:$0xff]
        %v1635 = vld [vmem:[%s666 + $0x8d0] sm:$0xff]
        %v1636 = vld [vmem:[%s666 + $0x8d8] sm:$0xff]
        %v1637 = vld [vmem:[%s666 + $0x8e0] sm:$0xff]
        %v1638 = vld [vmem:[%s666 + $0x8e8] sm:$0xff]
        %v1639 = vld [vmem:[%s666 + $0x8f0] sm:$0xff]
        %v1640 = vld [vmem:[%s666 + $0x8f8] sm:$0xff]
        %v1641 = vld [vmem:[%s666 + $0x900] sm:$0xff]
        %v1642 = vld [vmem:[%s666 + $0x908] sm:$0xff]
        %v1643 = vld [vmem:[%s666 + $0x910] sm:$0xff]
        %v1644 = vld [vmem:[%s666 + $0x918] sm:$0xff]
        %v1645 = vld [vmem:[%s666 + $0x920] sm:$0xff]
        %v1646 = vld [vmem:[%s666 + $0x928] sm:$0xff]
        %v1647 = vld [vmem:[%s666 + $0x930] sm:$0xff]
        %v1648 = vld [vmem:[%s666 + $0x938] sm:$0xff]
        %v1649 = vld [vmem:[%s666 + $0x940] sm:$0xff]
        %v1650 = vld [vmem:[%s666 + $0x948] sm:$0xff]
        %v1651 = vld [vmem:[%s666 + $0x950] sm:$0xff]
        %v1652 = vld [vmem:[%s666 + $0x958] sm:$0xff]
        %v1653 = vld [vmem:[%s666 + $0x960] sm:$0xff]
        %v1654 = vld [vmem:[%s666 + $0x968] sm:$0xff]
        %v1655 = vld [vmem:[%s666 + $0x970] sm:$0xff]
        %v1656 = vld [vmem:[%s666 + $0x978] sm:$0xff]
        %v1657 = vld [vmem:[%s666 + $0x980] sm:$0xff]
        %v1658 = vld [vmem:[%s666 + $0x988] sm:$0xff]
        %v1659 = vld [vmem:[%s666 + $0x990] sm:$0xff]
        %v1660 = vld [vmem:[%s666 + $0x998] sm:$0xff]
        %v1661 = vld [vmem:[%s666 + $0x9a0] sm:$0xff]
        %v1662 = vld [vmem:[%s666 + $0x9a8] sm:$0xff]
        %v1663 = vld [vmem:[%s666 + $0x9b0] sm:$0xff]
        %v1664 = vld [vmem:[%s666 + $0x9b8] sm:$0xff]
        %v1665 = vld [vmem:[%s666 + $0x9c0] sm:$0xff]
        %v1666 = vld [vmem:[%s666 + $0x9c8] sm:$0xff]
        %v1667 = vld [vmem:[%s666 + $0x9d0] sm:$0xff]
        %v1668 = vld [vmem:[%s666 + $0x9d8] sm:$0xff]
        %v1669 = vld [vmem:[%s666 + $0x9e0] sm:$0xff]
        %v1670 = vld [vmem:[%s666 + $0x9e8] sm:$0xff]
        %v1671 = vld [vmem:[%s666 + $0x9f0] sm:$0xff]
        %v1672 = vld [vmem:[%s666 + $0x9f8] sm:$0xff]
        %v1673 = vld [vmem:[%s666 + $0xa00] sm:$0xff]
        %v1674 = vld [vmem:[%s666 + $0xa08] sm:$0xff]
        %v1675 = vld [vmem:[%s666 + $0xa10] sm:$0xff]
        %v1676 = vld [vmem:[%s666 + $0xa18] sm:$0xff]
        %v1677 = vld [vmem:[%s666 + $0xa20] sm:$0xff]
        %v1678 = vld [vmem:[%s666 + $0xa28] sm:$0xff]
        %v1679 = vld [vmem:[%s666 + $0xa30] sm:$0xff]
        %v1680 = vld [vmem:[%s666 + $0xa38] sm:$0xff]
        %v1681 = vld [vmem:[%s666 + $0xa40] sm:$0xff]
        %v1682 = vld [vmem:[%s666 + $0xa48] sm:$0xff]
        %v1683 = vld [vmem:[%s666 + $0xa50] sm:$0xff]
        %v1684 = vld [vmem:[%s666 + $0xa58] sm:$0xff]
        %v1685 = vld [vmem:[%s666 + $0xa60] sm:$0xff]
        %v1686 = vld [vmem:[%s666 + $0xa68] sm:$0xff]
        %v1687 = vld [vmem:[%s666 + $0xa70] sm:$0xff]
        %v1688 = vld [vmem:[%s666 + $0xa78] sm:$0xff]
        %v1689 = vld [vmem:[%s666 + $0xa80] sm:$0xff]
        %v1690 = vld [vmem:[%s666 + $0xa88] sm:$0xff]
        %v1691 = vld [vmem:[%s666 + $0xa90] sm:$0xff]
        %v1692 = vld [vmem:[%s666 + $0xa98] sm:$0xff]
        %v1693 = vld [vmem:[%s666 + $0xaa0] sm:$0xff]
        %v1694 = vld [vmem:[%s666 + $0xaa8] sm:$0xff]
        %v1695 = vld [vmem:[%s666 + $0xab0] sm:$0xff]
        %v1696 = vld [vmem:[%s666 + $0xab8] sm:$0xff]
        %v1697 = vld [vmem:[%s666 + $0xac0] sm:$0xff]
        %v1698 = vld [vmem:[%s666 + $0xac8] sm:$0xff]
        %v1699 = vld [vmem:[%s666 + $0xad0] sm:$0xff]
        %v1700 = vld [vmem:[%s666 + $0xad8] sm:$0xff]
        %v1701 = vld [vmem:[%s666 + $0xae0] sm:$0xff]
        %v1702 = vld [vmem:[%s666 + $0xae8] sm:$0xff]
        %v1703 = vld [vmem:[%s666 + $0xaf0] sm:$0xff]
        %v1704 = vld [vmem:[%s666 + $0xaf8] sm:$0xff]
        %v1705 = vld [vmem:[%s666 + $0xb00] sm:$0xff]
        %v1706 = vld [vmem:[%s666 + $0xb08] sm:$0xff]
        %v1707 = vld [vmem:[%s666 + $0xb10] sm:$0xff]
        %v1708 = vld [vmem:[%s666 + $0xb18] sm:$0xff]
        %v1709 = vld [vmem:[%s666 + $0xb20] sm:$0xff]
        %v1710 = vld [vmem:[%s666 + $0xb28] sm:$0xff]
        %v1711 = vld [vmem:[%s666 + $0xb30] sm:$0xff]
        %v1712 = vld [vmem:[%s666 + $0xb38] sm:$0xff]
        %v1713 = vld [vmem:[%s666 + $0xb40] sm:$0xff]
        %v1714 = vld [vmem:[%s666 + $0xb48] sm:$0xff]
        %v1715 = vld [vmem:[%s666 + $0xb50] sm:$0xff]
        %v1716 = vld [vmem:[%s666 + $0xb58] sm:$0xff]
        %v1717 = vld [vmem:[%s666 + $0xb60] sm:$0xff]
        %v1718 = vld [vmem:[%s666 + $0xb68] sm:$0xff]
        %v1719 = vld [vmem:[%s666 + $0xb70] sm:$0xff]
        %v1720 = vld [vmem:[%s666 + $0xb78] sm:$0xff]
        %v1721 = vld [vmem:[%s666 + $0xb80] sm:$0xff]
        %v1722 = vld [vmem:[%s666 + $0xb88] sm:$0xff]
        %v1723 = vld [vmem:[%s666 + $0xb90] sm:$0xff]
        %v1724 = vld [vmem:[%s666 + $0xb98] sm:$0xff]
        %v1725 = vld [vmem:[%s666 + $0xba0] sm:$0xff]
        %v1726 = vld [vmem:[%s666 + $0xba8] sm:$0xff]
        %v1727 = vld [vmem:[%s666 + $0xbb0] sm:$0xff]
        %v1728 = vld [vmem:[%s666 + $0xbb8] sm:$0xff]
        %v1729 = vld [vmem:[%s666 + $0xbc0] sm:$0xff]
        %v1730 = vld [vmem:[%s666 + $0xbc8] sm:$0xff]
        %v1731 = vld [vmem:[%s666 + $0xbd0] sm:$0xff]
        %v1732 = vld [vmem:[%s666 + $0xbd8] sm:$0xff]
        %v1733 = vld [vmem:[%s666 + $0xbe0] sm:$0xff]
        %v1734 = vld [vmem:[%s666 + $0xbe8] sm:$0xff]
        %v1735 = vld [vmem:[%s666 + $0xbf0] sm:$0xff]
        %v1736 = vld [vmem:[%s666 + $0xbf8] sm:$0xff]
        %v1737 = vld [vmem:[%s666 + $0xc00] sm:$0xff]
        %v1738 = vld [vmem:[%s666 + $0xc08] sm:$0xff]
        %v1739 = vld [vmem:[%s666 + $0xc10] sm:$0xff]
        %v1740 = vld [vmem:[%s666 + $0xc18] sm:$0xff]
        %v1741 = vld [vmem:[%s666 + $0xc20] sm:$0xff]
        %v1742 = vld [vmem:[%s666 + $0xc28] sm:$0xff]
        %v1743 = vld [vmem:[%s666 + $0xc30] sm:$0xff]
        %v1744 = vld [vmem:[%s666 + $0xc38] sm:$0xff]
        %v1745 = vld [vmem:[%s666 + $0xc40] sm:$0xff]
        %v1746 = vld [vmem:[%s666 + $0xc48] sm:$0xff]
        %v1747 = vld [vmem:[%s666 + $0xc50] sm:$0xff]
        %v1748 = vld [vmem:[%s666 + $0xc58] sm:$0xff]
        %v1749 = vld [vmem:[%s666 + $0xc60] sm:$0xff]
        %v1750 = vld [vmem:[%s666 + $0xc68] sm:$0xff]
        %v1751 = vld [vmem:[%s666 + $0xc70] sm:$0xff]
        %v1752 = vld [vmem:[%s666 + $0xc78] sm:$0xff]
        %v1753 = vld [vmem:[%s666 + $0xc80] sm:$0xff]
        %v1754 = vld [vmem:[%s666 + $0xc88] sm:$0xff]
        %v1755 = vld [vmem:[%s666 + $0xc90] sm:$0xff]
        %v1756 = vld [vmem:[%s666 + $0xc98] sm:$0xff]
        %v1757 = vld [vmem:[%s666 + $0xca0] sm:$0xff]
        %v1758 = vld [vmem:[%s666 + $0xca8] sm:$0xff]
        %v1759 = vld [vmem:[%s666 + $0xcb0] sm:$0xff]
        %v1760 = vld [vmem:[%s666 + $0xcb8] sm:$0xff]
        %v1761 = vld [vmem:[%s666 + $0xcc0] sm:$0xff]
        %v1762 = vld [vmem:[%s666 + $0xcc8] sm:$0xff]
        %v1763 = vld [vmem:[%s666 + $0xcd0] sm:$0xff]
        %v1764 = vld [vmem:[%s666 + $0xcd8] sm:$0xff]
        %v1765 = vld [vmem:[%s666 + $0xce0] sm:$0xff]
        %v1766 = vld [vmem:[%s666 + $0xce8] sm:$0xff]
        %v1767 = vld [vmem:[%s666 + $0xcf0] sm:$0xff]
        %v1768 = vld [vmem:[%s666 + $0xcf8] sm:$0xff]
        %v1769 = vld [vmem:[%s666 + $0xd00] sm:$0xff]
        %v1770 = vld [vmem:[%s666 + $0xd08] sm:$0xff]
        %v1771 = vld [vmem:[%s666 + $0xd10] sm:$0xff]
        %v1772 = vld [vmem:[%s666 + $0xd18] sm:$0xff]
        %v1773 = vld [vmem:[%s666 + $0xd20] sm:$0xff]
        %v1774 = vld [vmem:[%s666 + $0xd28] sm:$0xff]
        %v1775 = vld [vmem:[%s666 + $0xd30] sm:$0xff]
        %v1776 = vld [vmem:[%s666 + $0xd38] sm:$0xff]
        %v1777 = vld [vmem:[%s666 + $0xd40] sm:$0xff]
        %v1778 = vld [vmem:[%s666 + $0xd48] sm:$0xff]
        %v1779 = vld [vmem:[%s666 + $0xd50] sm:$0xff]
        %v1780 = vld [vmem:[%s666 + $0xd58] sm:$0xff]
        %v1781 = vld [vmem:[%s666 + $0xd60] sm:$0xff]
        %v1782 = vld [vmem:[%s666 + $0xd68] sm:$0xff]
        %v1783 = vld [vmem:[%s666 + $0xd70] sm:$0xff]
        %v1784 = vld [vmem:[%s666 + $0xd78] sm:$0xff]
        %v1785 = vld [vmem:[%s666 + $0xd80] sm:$0xff]
        %v1786 = vld [vmem:[%s666 + $0xd88] sm:$0xff]
        %v1787 = vld [vmem:[%s666 + $0xd90] sm:$0xff]
        %v1788 = vld [vmem:[%s666 + $0xd98] sm:$0xff]
        %v1789 = vld [vmem:[%s666 + $0xda0] sm:$0xff]
        %v1790 = vld [vmem:[%s666 + $0xda8] sm:$0xff]
        %v1791 = vld [vmem:[%s666 + $0xdb0] sm:$0xff]
        %v1792 = vld [vmem:[%s666 + $0xdb8] sm:$0xff]
        %v1793 = vld [vmem:[%s666 + $0xdc0] sm:$0xff]
        %v1794 = vld [vmem:[%s666 + $0xdc8] sm:$0xff]
        %v1795 = vld [vmem:[%s666 + $0xdd0] sm:$0xff]
        %v1796 = vld [vmem:[%s666 + $0xdd8] sm:$0xff]
        %v1797 = vld [vmem:[%s666 + $0xde0] sm:$0xff]
        %v1798 = vld [vmem:[%s666 + $0xde8] sm:$0xff]
        %v1799 = vld [vmem:[%s666 + $0xdf0] sm:$0xff]
        %v1800 = vld [vmem:[%s666 + $0xdf8] sm:$0xff]
        %v1801 = vld [vmem:[%s666 + $0xe00] sm:$0xff]
        %v1802 = vld [vmem:[%s666 + $0xe08] sm:$0xff]
        %v1803 = vld [vmem:[%s666 + $0xe10] sm:$0xff]
        %v1804 = vld [vmem:[%s666 + $0xe18] sm:$0xff]
        %v1805 = vld [vmem:[%s666 + $0xe20] sm:$0xff]
        %v1806 = vld [vmem:[%s666 + $0xe28] sm:$0xff]
        %v1807 = vld [vmem:[%s666 + $0xe30] sm:$0xff]
        %v1808 = vld [vmem:[%s666 + $0xe38] sm:$0xff]
        %v1809 = vld [vmem:[%s666 + $0xe40] sm:$0xff]
        %v1810 = vld [vmem:[%s666 + $0xe48] sm:$0xff]
        %v1811 = vld [vmem:[%s666 + $0xe50] sm:$0xff]
        %v1812 = vld [vmem:[%s666 + $0xe58] sm:$0xff]
        %v1813 = vld [vmem:[%s666 + $0xe60] sm:$0xff]
        %v1814 = vld [vmem:[%s666 + $0xe68] sm:$0xff]
        %v1815 = vld [vmem:[%s666 + $0xe70] sm:$0xff]
        %v1816 = vld [vmem:[%s666 + $0xe78] sm:$0xff]
        %v1817 = vld [vmem:[%s666 + $0xe80] sm:$0xff]
        %v1818 = vld [vmem:[%s666 + $0xe88] sm:$0xff]
        %v1819 = vld [vmem:[%s666 + $0xe90] sm:$0xff]
        %v1820 = vld [vmem:[%s666 + $0xe98] sm:$0xff]
        %v1821 = vld [vmem:[%s666 + $0xea0] sm:$0xff]
        %v1822 = vld [vmem:[%s666 + $0xea8] sm:$0xff]
        %v1823 = vld [vmem:[%s666 + $0xeb0] sm:$0xff]
        %v1824 = vld [vmem:[%s666 + $0xeb8] sm:$0xff]
        %v1825 = vld [vmem:[%s666 + $0xec0] sm:$0xff]
        %v1826 = vld [vmem:[%s666 + $0xec8] sm:$0xff]
        %v1827 = vld [vmem:[%s666 + $0xed0] sm:$0xff]
        %v1828 = vld [vmem:[%s666 + $0xed8] sm:$0xff]
        %v1829 = vld [vmem:[%s666 + $0xee0] sm:$0xff]
        %v1830 = vld [vmem:[%s666 + $0xee8] sm:$0xff]
        %v1831 = vld [vmem:[%s666 + $0xef0] sm:$0xff]
        %v1832 = vld [vmem:[%s666 + $0xef8] sm:$0xff]
        %v1833 = vld [vmem:[%s666 + $0xf00] sm:$0xff]
        %v1834 = vld [vmem:[%s666 + $0xf08] sm:$0xff]
        %v1835 = vld [vmem:[%s666 + $0xf10] sm:$0xff]
        %v1836 = vld [vmem:[%s666 + $0xf18] sm:$0xff]
        %v1837 = vld [vmem:[%s666 + $0xf20] sm:$0xff]
        %v1838 = vld [vmem:[%s666 + $0xf28] sm:$0xff]
        %v1839 = vld [vmem:[%s666 + $0xf30] sm:$0xff]
        %v1840 = vld [vmem:[%s666 + $0xf38] sm:$0xff]
        %v1841 = vld [vmem:[%s666 + $0xf40] sm:$0xff]
        %v1842 = vld [vmem:[%s666 + $0xf48] sm:$0xff]
        %v1843 = vld [vmem:[%s666 + $0xf50] sm:$0xff]
        %v1844 = vld [vmem:[%s666 + $0xf58] sm:$0xff]
        %v1845 = vld [vmem:[%s666 + $0xf60] sm:$0xff]
        %v1846 = vld [vmem:[%s666 + $0xf68] sm:$0xff]
        %v1847 = vld [vmem:[%s666 + $0xf70] sm:$0xff]
        %v1848 = vld [vmem:[%s666 + $0xf78] sm:$0xff]
        %v1849 = vld [vmem:[%s666 + $0xf80] sm:$0xff]
        %v1850 = vld [vmem:[%s666 + $0xf88] sm:$0xff]
        %v1851 = vld [vmem:[%s666 + $0xf90] sm:$0xff]
        %v1852 = vld [vmem:[%s666 + $0xf98] sm:$0xff]
        %v1853 = vld [vmem:[%s666 + $0xfa0] sm:$0xff]
        %v1854 = vld [vmem:[%s666 + $0xfa8] sm:$0xff]
        %v1855 = vld [vmem:[%s666 + $0xfb0] sm:$0xff]
        %v1856 = vld [vmem:[%s666 + $0xfb8] sm:$0xff]
        %v1857 = vld [vmem:[%s666 + $0xfc0] sm:$0xff]
        %v1858 = vld [vmem:[%s666 + $0xfc8] sm:$0xff]
        %v1859 = vld [vmem:[%s666 + $0xfd0] sm:$0xff]
        %v1860 = vld [vmem:[%s666 + $0xfd8] sm:$0xff]
        %v1861 = vld [vmem:[%s666 + $0xfe0] sm:$0xff]
        %v1862 = vld [vmem:[%s666 + $0xfe8] sm:$0xff]
        %v1863 = vld [vmem:[%s666 + $0xff0] sm:$0xff]
        %v1864 = vld [vmem:[%s666 + $0xff8] sm:$0xff]
        %v1865 = vld [vmem:[%s676] sm:$0xff]
        %v1867 = vperm.slane %v1865, 0
        %v1868 = vperm.slane %v1865, 1
        %v1869 = vperm.slane %v1865, 2
        %v1870 = vperm.slane %v1865, 3
        %v1871 = vperm.slane %v1865, 4
        %v1872 = vperm.slane %v1865, 5
        %v1873 = vperm.slane %v1865, 6
        %v1874 = vperm.slane %v1865, 7
        %v2395 = vunpack.c.l.b16 %v1353
        %v2396 = vunpack.c.h.b16 %v1353
        %v2397 = vunpack.c.l.b16 %v1354
        %v2398 = vunpack.c.h.b16 %v1354
        %v2399 = vunpack.c.l.b16 %v1355
        %v2400 = vunpack.c.h.b16 %v1355
        %v2401 = vunpack.c.l.b16 %v1356
        %v2402 = vunpack.c.h.b16 %v1356
        %v2403 = vunpack.c.l.b16 %v1357
        %v2404 = vunpack.c.h.b16 %v1357
        %v2405 = vunpack.c.l.b16 %v1358
        %v2406 = vunpack.c.h.b16 %v1358
        %v2407 = vunpack.c.l.b16 %v1359
        %v2408 = vunpack.c.h.b16 %v1359
        %v2409 = vunpack.c.l.b16 %v1360
        %v2410 = vunpack.c.h.b16 %v1360
        %v2411 = vunpack.c.l.b16 %v1361
        %v2412 = vunpack.c.h.b16 %v1361
        %v2413 = vunpack.c.l.b16 %v1362
        %v2414 = vunpack.c.h.b16 %v1362
        %v2415 = vunpack.c.l.b16 %v1363
        %v2416 = vunpack.c.h.b16 %v1363
        %v2417 = vunpack.c.l.b16 %v1364
        %v2418 = vunpack.c.h.b16 %v1364
        %v2419 = vunpack.c.l.b16 %v1365
        %v2420 = vunpack.c.h.b16 %v1365
        %v2421 = vunpack.c.l.b16 %v1366
        %v2422 = vunpack.c.h.b16 %v1366
        %v2423 = vunpack.c.l.b16 %v1367
        %v2424 = vunpack.c.h.b16 %v1367
        %v2425 = vunpack.c.l.b16 %v1368
        %v2426 = vunpack.c.h.b16 %v1368
        %v2427 = vunpack.c.l.b16 %v1369
        %v2428 = vunpack.c.h.b16 %v1369
        %v2429 = vunpack.c.l.b16 %v1370
        %v2430 = vunpack.c.h.b16 %v1370
        %v2431 = vunpack.c.l.b16 %v1371
        %v2432 = vunpack.c.h.b16 %v1371
        %v2433 = vunpack.c.l.b16 %v1372
        %v2434 = vunpack.c.h.b16 %v1372
        %v2435 = vunpack.c.l.b16 %v1373
        %v2436 = vunpack.c.h.b16 %v1373
        %v2437 = vunpack.c.l.b16 %v1374
        %v2438 = vunpack.c.h.b16 %v1374
        %v2439 = vunpack.c.l.b16 %v1375
        %v2440 = vunpack.c.h.b16 %v1375
        %v2441 = vunpack.c.l.b16 %v1376
        %v2442 = vunpack.c.h.b16 %v1376
        %v2443 = vunpack.c.l.b16 %v1377
        %v2444 = vunpack.c.h.b16 %v1377
        %v2445 = vunpack.c.l.b16 %v1378
        %v2446 = vunpack.c.h.b16 %v1378
        %v2447 = vunpack.c.l.b16 %v1379
        %v2448 = vunpack.c.h.b16 %v1379
        %v2449 = vunpack.c.l.b16 %v1380
        %v2450 = vunpack.c.h.b16 %v1380
        %v2451 = vunpack.c.l.b16 %v1381
        %v2452 = vunpack.c.h.b16 %v1381
        %v2453 = vunpack.c.l.b16 %v1382
        %v2454 = vunpack.c.h.b16 %v1382
        %v2455 = vunpack.c.l.b16 %v1383
        %v2456 = vunpack.c.h.b16 %v1383
        %v2457 = vunpack.c.l.b16 %v1384
        %v2458 = vunpack.c.h.b16 %v1384
        %v2459 = vunpack.c.l.b16 %v1385
        %v2460 = vunpack.c.h.b16 %v1385
        %v2461 = vunpack.c.l.b16 %v1386
        %v2462 = vunpack.c.h.b16 %v1386
        %v2463 = vunpack.c.l.b16 %v1387
        %v2464 = vunpack.c.h.b16 %v1387
        %v2465 = vunpack.c.l.b16 %v1388
        %v2466 = vunpack.c.h.b16 %v1388
        %v2467 = vunpack.c.l.b16 %v1389
        %v2468 = vunpack.c.h.b16 %v1389
        %v2469 = vunpack.c.l.b16 %v1390
        %v2470 = vunpack.c.h.b16 %v1390
        %v2471 = vunpack.c.l.b16 %v1391
        %v2472 = vunpack.c.h.b16 %v1391
        %v2473 = vunpack.c.l.b16 %v1392
        %v2474 = vunpack.c.h.b16 %v1392
        %v2475 = vunpack.c.l.b16 %v1393
        %v2476 = vunpack.c.h.b16 %v1393
        %v2477 = vunpack.c.l.b16 %v1394
        %v2478 = vunpack.c.h.b16 %v1394
        %v2479 = vunpack.c.l.b16 %v1395
        %v2480 = vunpack.c.h.b16 %v1395
        %v2481 = vunpack.c.l.b16 %v1396
        %v2482 = vunpack.c.h.b16 %v1396
        %v2483 = vunpack.c.l.b16 %v1397
        %v2484 = vunpack.c.h.b16 %v1397
        %v2485 = vunpack.c.l.b16 %v1398
        %v2486 = vunpack.c.h.b16 %v1398
        %v2487 = vunpack.c.l.b16 %v1399
        %v2488 = vunpack.c.h.b16 %v1399
        %v2489 = vunpack.c.l.b16 %v1400
        %v2490 = vunpack.c.h.b16 %v1400
        %v2491 = vunpack.c.l.b16 %v1401
        %v2492 = vunpack.c.h.b16 %v1401
        %v2493 = vunpack.c.l.b16 %v1402
        %v2494 = vunpack.c.h.b16 %v1402
        %v2495 = vunpack.c.l.b16 %v1403
        %v2496 = vunpack.c.h.b16 %v1403
        %v2497 = vunpack.c.l.b16 %v1404
        %v2498 = vunpack.c.h.b16 %v1404
        %v2499 = vunpack.c.l.b16 %v1405
        %v2500 = vunpack.c.h.b16 %v1405
        %v2501 = vunpack.c.l.b16 %v1406
        %v2502 = vunpack.c.h.b16 %v1406
        %v2503 = vunpack.c.l.b16 %v1407
        %v2504 = vunpack.c.h.b16 %v1407
        %v2505 = vunpack.c.l.b16 %v1408
        %v2506 = vunpack.c.h.b16 %v1408
        %v2507 = vunpack.c.l.b16 %v1409
        %v2508 = vunpack.c.h.b16 %v1409
        %v2509 = vunpack.c.l.b16 %v1410
        %v2510 = vunpack.c.h.b16 %v1410
        %v2511 = vunpack.c.l.b16 %v1411
        %v2512 = vunpack.c.h.b16 %v1411
        %v2513 = vunpack.c.l.b16 %v1412
        %v2514 = vunpack.c.h.b16 %v1412
        %v2515 = vunpack.c.l.b16 %v1413
        %v2516 = vunpack.c.h.b16 %v1413
        %v2517 = vunpack.c.l.b16 %v1414
        %v2518 = vunpack.c.h.b16 %v1414
        %v2519 = vunpack.c.l.b16 %v1415
        %v2520 = vunpack.c.h.b16 %v1415
        %v2521 = vunpack.c.l.b16 %v1416
        %v2522 = vunpack.c.h.b16 %v1416
        %v2523 = vunpack.c.l.b16 %v1417
        %v2524 = vunpack.c.h.b16 %v1417
        %v2525 = vunpack.c.l.b16 %v1418
        %v2526 = vunpack.c.h.b16 %v1418
        %v2527 = vunpack.c.l.b16 %v1419
        %v2528 = vunpack.c.h.b16 %v1419
        %v2529 = vunpack.c.l.b16 %v1420
        %v2530 = vunpack.c.h.b16 %v1420
        %v2531 = vunpack.c.l.b16 %v1421
        %v2532 = vunpack.c.h.b16 %v1421
        %v2533 = vunpack.c.l.b16 %v1422
        %v2534 = vunpack.c.h.b16 %v1422
        %v2535 = vunpack.c.l.b16 %v1423
        %v2536 = vunpack.c.h.b16 %v1423
        %v2537 = vunpack.c.l.b16 %v1424
        %v2538 = vunpack.c.h.b16 %v1424
        %v2539 = vunpack.c.l.b16 %v1425
        %v2540 = vunpack.c.h.b16 %v1425
        %v2541 = vunpack.c.l.b16 %v1426
        %v2542 = vunpack.c.h.b16 %v1426
        %v2543 = vunpack.c.l.b16 %v1427
        %v2544 = vunpack.c.h.b16 %v1427
        %v2545 = vunpack.c.l.b16 %v1428
        %v2546 = vunpack.c.h.b16 %v1428
        %v2547 = vunpack.c.l.b16 %v1429
        %v2548 = vunpack.c.h.b16 %v1429
        %v2549 = vunpack.c.l.b16 %v1430
        %v2550 = vunpack.c.h.b16 %v1430
        %v2551 = vunpack.c.l.b16 %v1431
        %v2552 = vunpack.c.h.b16 %v1431
        %v2553 = vunpack.c.l.b16 %v1432
        %v2554 = vunpack.c.h.b16 %v1432
        %v2555 = vunpack.c.l.b16 %v1433
        %v2556 = vunpack.c.h.b16 %v1433
        %v2557 = vunpack.c.l.b16 %v1434
        %v2558 = vunpack.c.h.b16 %v1434
        %v2559 = vunpack.c.l.b16 %v1435
        %v2560 = vunpack.c.h.b16 %v1435
        %v2561 = vunpack.c.l.b16 %v1436
        %v2562 = vunpack.c.h.b16 %v1436
        %v2563 = vunpack.c.l.b16 %v1437
        %v2564 = vunpack.c.h.b16 %v1437
        %v2565 = vunpack.c.l.b16 %v1438
        %v2566 = vunpack.c.h.b16 %v1438
        %v2567 = vunpack.c.l.b16 %v1439
        %v2568 = vunpack.c.h.b16 %v1439
        %v2569 = vunpack.c.l.b16 %v1440
        %v2570 = vunpack.c.h.b16 %v1440
        %v2571 = vunpack.c.l.b16 %v1441
        %v2572 = vunpack.c.h.b16 %v1441
        %v2573 = vunpack.c.l.b16 %v1442
        %v2574 = vunpack.c.h.b16 %v1442
        %v2575 = vunpack.c.l.b16 %v1443
        %v2576 = vunpack.c.h.b16 %v1443
        %v2577 = vunpack.c.l.b16 %v1444
        %v2578 = vunpack.c.h.b16 %v1444
        %v2579 = vunpack.c.l.b16 %v1445
        %v2580 = vunpack.c.h.b16 %v1445
        %v2581 = vunpack.c.l.b16 %v1446
        %v2582 = vunpack.c.h.b16 %v1446
        %v2583 = vunpack.c.l.b16 %v1447
        %v2584 = vunpack.c.h.b16 %v1447
        %v2585 = vunpack.c.l.b16 %v1448
        %v2586 = vunpack.c.h.b16 %v1448
        %v2587 = vunpack.c.l.b16 %v1449
        %v2588 = vunpack.c.h.b16 %v1449
        %v2589 = vunpack.c.l.b16 %v1450
        %v2590 = vunpack.c.h.b16 %v1450
        %v2591 = vunpack.c.l.b16 %v1451
        %v2592 = vunpack.c.h.b16 %v1451
        %v2593 = vunpack.c.l.b16 %v1452
        %v2594 = vunpack.c.h.b16 %v1452
        %v2595 = vunpack.c.l.b16 %v1453
        %v2596 = vunpack.c.h.b16 %v1453
        %v2597 = vunpack.c.l.b16 %v1454
        %v2598 = vunpack.c.h.b16 %v1454
        %v2599 = vunpack.c.l.b16 %v1455
        %v2600 = vunpack.c.h.b16 %v1455
        %v2601 = vunpack.c.l.b16 %v1456
        %v2602 = vunpack.c.h.b16 %v1456
        %v2603 = vunpack.c.l.b16 %v1457
        %v2604 = vunpack.c.h.b16 %v1457
        %v2605 = vunpack.c.l.b16 %v1458
        %v2606 = vunpack.c.h.b16 %v1458
        %v2607 = vunpack.c.l.b16 %v1459
        %v2608 = vunpack.c.h.b16 %v1459
        %v2609 = vunpack.c.l.b16 %v1460
        %v2610 = vunpack.c.h.b16 %v1460
        %v2611 = vunpack.c.l.b16 %v1461
        %v2612 = vunpack.c.h.b16 %v1461
        %v2613 = vunpack.c.l.b16 %v1462
        %v2614 = vunpack.c.h.b16 %v1462
        %v2615 = vunpack.c.l.b16 %v1463
        %v2616 = vunpack.c.h.b16 %v1463
        %v2617 = vunpack.c.l.b16 %v1464
        %v2618 = vunpack.c.h.b16 %v1464
        %v2619 = vunpack.c.l.b16 %v1465
        %v2620 = vunpack.c.h.b16 %v1465
        %v2621 = vunpack.c.l.b16 %v1466
        %v2622 = vunpack.c.h.b16 %v1466
        %v2623 = vunpack.c.l.b16 %v1467
        %v2624 = vunpack.c.h.b16 %v1467
        %v2625 = vunpack.c.l.b16 %v1468
        %v2626 = vunpack.c.h.b16 %v1468
        %v2627 = vunpack.c.l.b16 %v1469
        %v2628 = vunpack.c.h.b16 %v1469
        %v2629 = vunpack.c.l.b16 %v1470
        %v2630 = vunpack.c.h.b16 %v1470
        %v2631 = vunpack.c.l.b16 %v1471
        %v2632 = vunpack.c.h.b16 %v1471
        %v2633 = vunpack.c.l.b16 %v1472
        %v2634 = vunpack.c.h.b16 %v1472
        %v2635 = vunpack.c.l.b16 %v1473
        %v2636 = vunpack.c.h.b16 %v1473
        %v2637 = vunpack.c.l.b16 %v1474
        %v2638 = vunpack.c.h.b16 %v1474
        %v2639 = vunpack.c.l.b16 %v1475
        %v2640 = vunpack.c.h.b16 %v1475
        %v2641 = vunpack.c.l.b16 %v1476
        %v2642 = vunpack.c.h.b16 %v1476
        %v2643 = vunpack.c.l.b16 %v1477
        %v2644 = vunpack.c.h.b16 %v1477
        %v2645 = vunpack.c.l.b16 %v1478
        %v2646 = vunpack.c.h.b16 %v1478
        %v2647 = vunpack.c.l.b16 %v1479
        %v2648 = vunpack.c.h.b16 %v1479
        %v2649 = vunpack.c.l.b16 %v1480
        %v2650 = vunpack.c.h.b16 %v1480
        %v2651 = vunpack.c.l.b16 %v1481
        %v2652 = vunpack.c.h.b16 %v1481
        %v2653 = vunpack.c.l.b16 %v1482
        %v2654 = vunpack.c.h.b16 %v1482
        %v2655 = vunpack.c.l.b16 %v1483
        %v2656 = vunpack.c.h.b16 %v1483
        %v2657 = vunpack.c.l.b16 %v1484
        %v2658 = vunpack.c.h.b16 %v1484
        %v2659 = vunpack.c.l.b16 %v1485
        %v2660 = vunpack.c.h.b16 %v1485
        %v2661 = vunpack.c.l.b16 %v1486
        %v2662 = vunpack.c.h.b16 %v1486
        %v2663 = vunpack.c.l.b16 %v1487
        %v2664 = vunpack.c.h.b16 %v1487
        %v2665 = vunpack.c.l.b16 %v1488
        %v2666 = vunpack.c.h.b16 %v1488
        %v2667 = vunpack.c.l.b16 %v1489
        %v2668 = vunpack.c.h.b16 %v1489
        %v2669 = vunpack.c.l.b16 %v1490
        %v2670 = vunpack.c.h.b16 %v1490
        %v2671 = vunpack.c.l.b16 %v1491
        %v2672 = vunpack.c.h.b16 %v1491
        %v2673 = vunpack.c.l.b16 %v1492
        %v2674 = vunpack.c.h.b16 %v1492
        %v2675 = vunpack.c.l.b16 %v1493
        %v2676 = vunpack.c.h.b16 %v1493
        %v2677 = vunpack.c.l.b16 %v1494
        %v2678 = vunpack.c.h.b16 %v1494
        %v2679 = vunpack.c.l.b16 %v1495
        %v2680 = vunpack.c.h.b16 %v1495
        %v2681 = vunpack.c.l.b16 %v1496
        %v2682 = vunpack.c.h.b16 %v1496
        %v2683 = vunpack.c.l.b16 %v1497
        %v2684 = vunpack.c.h.b16 %v1497
        %v2685 = vunpack.c.l.b16 %v1498
        %v2686 = vunpack.c.h.b16 %v1498
        %v2687 = vunpack.c.l.b16 %v1499
        %v2688 = vunpack.c.h.b16 %v1499
        %v2689 = vunpack.c.l.b16 %v1500
        %v2690 = vunpack.c.h.b16 %v1500
        %v2691 = vunpack.c.l.b16 %v1501
        %v2692 = vunpack.c.h.b16 %v1501
        %v2693 = vunpack.c.l.b16 %v1502
        %v2694 = vunpack.c.h.b16 %v1502
        %v2695 = vunpack.c.l.b16 %v1503
        %v2696 = vunpack.c.h.b16 %v1503
        %v2697 = vunpack.c.l.b16 %v1504
        %v2698 = vunpack.c.h.b16 %v1504
        %v2699 = vunpack.c.l.b16 %v1505
        %v2700 = vunpack.c.h.b16 %v1505
        %v2701 = vunpack.c.l.b16 %v1506
        %v2702 = vunpack.c.h.b16 %v1506
        %v2703 = vunpack.c.l.b16 %v1507
        %v2704 = vunpack.c.h.b16 %v1507
        %v2705 = vunpack.c.l.b16 %v1508
        %v2706 = vunpack.c.h.b16 %v1508
        %v2707 = vunpack.c.l.b16 %v1509
        %v2708 = vunpack.c.h.b16 %v1509
        %v2709 = vunpack.c.l.b16 %v1510
        %v2710 = vunpack.c.h.b16 %v1510
        %v2711 = vunpack.c.l.b16 %v1511
        %v2712 = vunpack.c.h.b16 %v1511
        %v2713 = vunpack.c.l.b16 %v1512
        %v2714 = vunpack.c.h.b16 %v1512
        %v2715 = vunpack.c.l.b16 %v1513
        %v2716 = vunpack.c.h.b16 %v1513
        %v2717 = vunpack.c.l.b16 %v1514
        %v2718 = vunpack.c.h.b16 %v1514
        %v2719 = vunpack.c.l.b16 %v1515
        %v2720 = vunpack.c.h.b16 %v1515
        %v2721 = vunpack.c.l.b16 %v1516
        %v2722 = vunpack.c.h.b16 %v1516
        %v2723 = vunpack.c.l.b16 %v1517
        %v2724 = vunpack.c.h.b16 %v1517
        %v2725 = vunpack.c.l.b16 %v1518
        %v2726 = vunpack.c.h.b16 %v1518
        %v2727 = vunpack.c.l.b16 %v1519
        %v2728 = vunpack.c.h.b16 %v1519
        %v2729 = vunpack.c.l.b16 %v1520
        %v2730 = vunpack.c.h.b16 %v1520
        %v2731 = vunpack.c.l.b16 %v1521
        %v2732 = vunpack.c.h.b16 %v1521
        %v2733 = vunpack.c.l.b16 %v1522
        %v2734 = vunpack.c.h.b16 %v1522
        %v2735 = vunpack.c.l.b16 %v1523
        %v2736 = vunpack.c.h.b16 %v1523
        %v2737 = vunpack.c.l.b16 %v1524
        %v2738 = vunpack.c.h.b16 %v1524
        %v2739 = vunpack.c.l.b16 %v1525
        %v2740 = vunpack.c.h.b16 %v1525
        %v2741 = vunpack.c.l.b16 %v1526
        %v2742 = vunpack.c.h.b16 %v1526
        %v2743 = vunpack.c.l.b16 %v1527
        %v2744 = vunpack.c.h.b16 %v1527
        %v2745 = vunpack.c.l.b16 %v1528
        %v2746 = vunpack.c.h.b16 %v1528
        %v2747 = vunpack.c.l.b16 %v1529
        %v2748 = vunpack.c.h.b16 %v1529
        %v2749 = vunpack.c.l.b16 %v1530
        %v2750 = vunpack.c.h.b16 %v1530
        %v2751 = vunpack.c.l.b16 %v1531
        %v2752 = vunpack.c.h.b16 %v1531
        %v2753 = vunpack.c.l.b16 %v1532
        %v2754 = vunpack.c.h.b16 %v1532
        %v2755 = vunpack.c.l.b16 %v1533
        %v2756 = vunpack.c.h.b16 %v1533
        %v2757 = vunpack.c.l.b16 %v1534
        %v2758 = vunpack.c.h.b16 %v1534
        %v2759 = vunpack.c.l.b16 %v1535
        %v2760 = vunpack.c.h.b16 %v1535
        %v2761 = vunpack.c.l.b16 %v1536
        %v2762 = vunpack.c.h.b16 %v1536
        %v2763 = vunpack.c.l.b16 %v1537
        %v2764 = vunpack.c.h.b16 %v1537
        %v2765 = vunpack.c.l.b16 %v1538
        %v2766 = vunpack.c.h.b16 %v1538
        %v2767 = vunpack.c.l.b16 %v1539
        %v2768 = vunpack.c.h.b16 %v1539
        %v2769 = vunpack.c.l.b16 %v1540
        %v2770 = vunpack.c.h.b16 %v1540
        %v2771 = vunpack.c.l.b16 %v1541
        %v2772 = vunpack.c.h.b16 %v1541
        %v2773 = vunpack.c.l.b16 %v1542
        %v2774 = vunpack.c.h.b16 %v1542
        %v2775 = vunpack.c.l.b16 %v1543
        %v2776 = vunpack.c.h.b16 %v1543
        %v2777 = vunpack.c.l.b16 %v1544
        %v2778 = vunpack.c.h.b16 %v1544
        %v2779 = vunpack.c.l.b16 %v1545
        %v2780 = vunpack.c.h.b16 %v1545
        %v2781 = vunpack.c.l.b16 %v1546
        %v2782 = vunpack.c.h.b16 %v1546
        %v2783 = vunpack.c.l.b16 %v1547
        %v2784 = vunpack.c.h.b16 %v1547
        %v2785 = vunpack.c.l.b16 %v1548
        %v2786 = vunpack.c.h.b16 %v1548
        %v2787 = vunpack.c.l.b16 %v1549
        %v2788 = vunpack.c.h.b16 %v1549
        %v2789 = vunpack.c.l.b16 %v1550
        %v2790 = vunpack.c.h.b16 %v1550
        %v2791 = vunpack.c.l.b16 %v1551
        %v2792 = vunpack.c.h.b16 %v1551
        %v2793 = vunpack.c.l.b16 %v1552
        %v2794 = vunpack.c.h.b16 %v1552
        %v2795 = vunpack.c.l.b16 %v1553
        %v2796 = vunpack.c.h.b16 %v1553
        %v2797 = vunpack.c.l.b16 %v1554
        %v2798 = vunpack.c.h.b16 %v1554
        %v2799 = vunpack.c.l.b16 %v1555
        %v2800 = vunpack.c.h.b16 %v1555
        %v2801 = vunpack.c.l.b16 %v1556
        %v2802 = vunpack.c.h.b16 %v1556
        %v2803 = vunpack.c.l.b16 %v1557
        %v2804 = vunpack.c.h.b16 %v1557
        %v2805 = vunpack.c.l.b16 %v1558
        %v2806 = vunpack.c.h.b16 %v1558
        %v2807 = vunpack.c.l.b16 %v1559
        %v2808 = vunpack.c.h.b16 %v1559
        %v2809 = vunpack.c.l.b16 %v1560
        %v2810 = vunpack.c.h.b16 %v1560
        %v2811 = vunpack.c.l.b16 %v1561
        %v2812 = vunpack.c.h.b16 %v1561
        %v2813 = vunpack.c.l.b16 %v1562
        %v2814 = vunpack.c.h.b16 %v1562
        %v2815 = vunpack.c.l.b16 %v1563
        %v2816 = vunpack.c.h.b16 %v1563
        %v2817 = vunpack.c.l.b16 %v1564
        %v2818 = vunpack.c.h.b16 %v1564
        %v2819 = vunpack.c.l.b16 %v1565
        %v2820 = vunpack.c.h.b16 %v1565
        %v2821 = vunpack.c.l.b16 %v1566
        %v2822 = vunpack.c.h.b16 %v1566
        %v2823 = vunpack.c.l.b16 %v1567
        %v2824 = vunpack.c.h.b16 %v1567
        %v2825 = vunpack.c.l.b16 %v1568
        %v2826 = vunpack.c.h.b16 %v1568
        %v2827 = vunpack.c.l.b16 %v1569
        %v2828 = vunpack.c.h.b16 %v1569
        %v2829 = vunpack.c.l.b16 %v1570
        %v2830 = vunpack.c.h.b16 %v1570
        %v2831 = vunpack.c.l.b16 %v1571
        %v2832 = vunpack.c.h.b16 %v1571
        %v2833 = vunpack.c.l.b16 %v1572
        %v2834 = vunpack.c.h.b16 %v1572
        %v2835 = vunpack.c.l.b16 %v1573
        %v2836 = vunpack.c.h.b16 %v1573
        %v2837 = vunpack.c.l.b16 %v1574
        %v2838 = vunpack.c.h.b16 %v1574
        %v2839 = vunpack.c.l.b16 %v1575
        %v2840 = vunpack.c.h.b16 %v1575
        %v2841 = vunpack.c.l.b16 %v1576
        %v2842 = vunpack.c.h.b16 %v1576
        %v2843 = vunpack.c.l.b16 %v1577
        %v2844 = vunpack.c.h.b16 %v1577
        %v2845 = vunpack.c.l.b16 %v1578
        %v2846 = vunpack.c.h.b16 %v1578
        %v2847 = vunpack.c.l.b16 %v1579
        %v2848 = vunpack.c.h.b16 %v1579
        %v2849 = vunpack.c.l.b16 %v1580
        %v2850 = vunpack.c.h.b16 %v1580
        %v2851 = vunpack.c.l.b16 %v1581
        %v2852 = vunpack.c.h.b16 %v1581
        %v2853 = vunpack.c.l.b16 %v1582
        %v2854 = vunpack.c.h.b16 %v1582
        %v2855 = vunpack.c.l.b16 %v1583
        %v2856 = vunpack.c.h.b16 %v1583
        %v2857 = vunpack.c.l.b16 %v1584
        %v2858 = vunpack.c.h.b16 %v1584
        %v2859 = vunpack.c.l.b16 %v1585
        %v2860 = vunpack.c.h.b16 %v1585
        %v2861 = vunpack.c.l.b16 %v1586
        %v2862 = vunpack.c.h.b16 %v1586
        %v2863 = vunpack.c.l.b16 %v1587
        %v2864 = vunpack.c.h.b16 %v1587
        %v2865 = vunpack.c.l.b16 %v1588
        %v2866 = vunpack.c.h.b16 %v1588
        %v2867 = vunpack.c.l.b16 %v1589
        %v2868 = vunpack.c.h.b16 %v1589
        %v2869 = vunpack.c.l.b16 %v1590
        %v2870 = vunpack.c.h.b16 %v1590
        %v2871 = vunpack.c.l.b16 %v1591
        %v2872 = vunpack.c.h.b16 %v1591
        %v2873 = vunpack.c.l.b16 %v1592
        %v2874 = vunpack.c.h.b16 %v1592
        %v2875 = vunpack.c.l.b16 %v1593
        %v2876 = vunpack.c.h.b16 %v1593
        %v2877 = vunpack.c.l.b16 %v1594
        %v2878 = vunpack.c.h.b16 %v1594
        %v2879 = vunpack.c.l.b16 %v1595
        %v2880 = vunpack.c.h.b16 %v1595
        %v2881 = vunpack.c.l.b16 %v1596
        %v2882 = vunpack.c.h.b16 %v1596
        %v2883 = vunpack.c.l.b16 %v1597
        %v2884 = vunpack.c.h.b16 %v1597
        %v2885 = vunpack.c.l.b16 %v1598
        %v2886 = vunpack.c.h.b16 %v1598
        %v2887 = vunpack.c.l.b16 %v1599
        %v2888 = vunpack.c.h.b16 %v1599
        %v2889 = vunpack.c.l.b16 %v1600
        %v2890 = vunpack.c.h.b16 %v1600
        %v2891 = vunpack.c.l.b16 %v1601
        %v2892 = vunpack.c.h.b16 %v1601
        %v2893 = vunpack.c.l.b16 %v1602
        %v2894 = vunpack.c.h.b16 %v1602
        %v2895 = vunpack.c.l.b16 %v1603
        %v2896 = vunpack.c.h.b16 %v1603
        %v2897 = vunpack.c.l.b16 %v1604
        %v2898 = vunpack.c.h.b16 %v1604
        %v2899 = vunpack.c.l.b16 %v1605
        %v2900 = vunpack.c.h.b16 %v1605
        %v2901 = vunpack.c.l.b16 %v1606
        %v2902 = vunpack.c.h.b16 %v1606
        %v2903 = vunpack.c.l.b16 %v1607
        %v2904 = vunpack.c.h.b16 %v1607
        %v2905 = vunpack.c.l.b16 %v1608
        %v2906 = vunpack.c.h.b16 %v1608
        %v2907 = vunpack.c.l.b16 %v1609
        %v2908 = vunpack.c.h.b16 %v1609
        %v2909 = vunpack.c.l.b16 %v1610
        %v2910 = vunpack.c.h.b16 %v1610
        %v2911 = vunpack.c.l.b16 %v1611
        %v2912 = vunpack.c.h.b16 %v1611
        %v2913 = vunpack.c.l.b16 %v1612
        %v2914 = vunpack.c.h.b16 %v1612
        %v2915 = vunpack.c.l.b16 %v1613
        %v2916 = vunpack.c.h.b16 %v1613
        %v2917 = vunpack.c.l.b16 %v1614
        %v2918 = vunpack.c.h.b16 %v1614
        %v2919 = vunpack.c.l.b16 %v1615
        %v2920 = vunpack.c.h.b16 %v1615
        %v2921 = vunpack.c.l.b16 %v1616
        %v2922 = vunpack.c.h.b16 %v1616
        %v2923 = vunpack.c.l.b16 %v1617
        %v2924 = vunpack.c.h.b16 %v1617
        %v2925 = vunpack.c.l.b16 %v1618
        %v2926 = vunpack.c.h.b16 %v1618
        %v2927 = vunpack.c.l.b16 %v1619
        %v2928 = vunpack.c.h.b16 %v1619
        %v2929 = vunpack.c.l.b16 %v1620
        %v2930 = vunpack.c.h.b16 %v1620
        %v2931 = vunpack.c.l.b16 %v1621
        %v2932 = vunpack.c.h.b16 %v1621
        %v2933 = vunpack.c.l.b16 %v1622
        %v2934 = vunpack.c.h.b16 %v1622
        %v2935 = vunpack.c.l.b16 %v1623
        %v2936 = vunpack.c.h.b16 %v1623
        %v2937 = vunpack.c.l.b16 %v1624
        %v2938 = vunpack.c.h.b16 %v1624
        %v2939 = vunpack.c.l.b16 %v1625
        %v2940 = vunpack.c.h.b16 %v1625
        %v2941 = vunpack.c.l.b16 %v1626
        %v2942 = vunpack.c.h.b16 %v1626
        %v2943 = vunpack.c.l.b16 %v1627
        %v2944 = vunpack.c.h.b16 %v1627
        %v2945 = vunpack.c.l.b16 %v1628
        %v2946 = vunpack.c.h.b16 %v1628
        %v2947 = vunpack.c.l.b16 %v1629
        %v2948 = vunpack.c.h.b16 %v1629
        %v2949 = vunpack.c.l.b16 %v1630
        %v2950 = vunpack.c.h.b16 %v1630
        %v2951 = vunpack.c.l.b16 %v1631
        %v2952 = vunpack.c.h.b16 %v1631
        %v2953 = vunpack.c.l.b16 %v1632
        %v2954 = vunpack.c.h.b16 %v1632
        %v2955 = vunpack.c.l.b16 %v1633
        %v2956 = vunpack.c.h.b16 %v1633
        %v2957 = vunpack.c.l.b16 %v1634
        %v2958 = vunpack.c.h.b16 %v1634
        %v2959 = vunpack.c.l.b16 %v1635
        %v2960 = vunpack.c.h.b16 %v1635
        %v2961 = vunpack.c.l.b16 %v1636
        %v2962 = vunpack.c.h.b16 %v1636
        %v2963 = vunpack.c.l.b16 %v1637
        %v2964 = vunpack.c.h.b16 %v1637
        %v2965 = vunpack.c.l.b16 %v1638
        %v2966 = vunpack.c.h.b16 %v1638
        %v2967 = vunpack.c.l.b16 %v1639
        %v2968 = vunpack.c.h.b16 %v1639
        %v2969 = vunpack.c.l.b16 %v1640
        %v2970 = vunpack.c.h.b16 %v1640
        %v2971 = vunpack.c.l.b16 %v1641
        %v2972 = vunpack.c.h.b16 %v1641
        %v2973 = vunpack.c.l.b16 %v1642
        %v2974 = vunpack.c.h.b16 %v1642
        %v2975 = vunpack.c.l.b16 %v1643
        %v2976 = vunpack.c.h.b16 %v1643
        %v2977 = vunpack.c.l.b16 %v1644
        %v2978 = vunpack.c.h.b16 %v1644
        %v2979 = vunpack.c.l.b16 %v1645
        %v2980 = vunpack.c.h.b16 %v1645
        %v2981 = vunpack.c.l.b16 %v1646
        %v2982 = vunpack.c.h.b16 %v1646
        %v2983 = vunpack.c.l.b16 %v1647
        %v2984 = vunpack.c.h.b16 %v1647
        %v2985 = vunpack.c.l.b16 %v1648
        %v2986 = vunpack.c.h.b16 %v1648
        %v2987 = vunpack.c.l.b16 %v1649
        %v2988 = vunpack.c.h.b16 %v1649
        %v2989 = vunpack.c.l.b16 %v1650
        %v2990 = vunpack.c.h.b16 %v1650
        %v2991 = vunpack.c.l.b16 %v1651
        %v2992 = vunpack.c.h.b16 %v1651
        %v2993 = vunpack.c.l.b16 %v1652
        %v2994 = vunpack.c.h.b16 %v1652
        %v2995 = vunpack.c.l.b16 %v1653
        %v2996 = vunpack.c.h.b16 %v1653
        %v2997 = vunpack.c.l.b16 %v1654
        %v2998 = vunpack.c.h.b16 %v1654
        %v2999 = vunpack.c.l.b16 %v1655
        %v3000 = vunpack.c.h.b16 %v1655
        %v3001 = vunpack.c.l.b16 %v1656
        %v3002 = vunpack.c.h.b16 %v1656
        %v3003 = vunpack.c.l.b16 %v1657
        %v3004 = vunpack.c.h.b16 %v1657
        %v3005 = vunpack.c.l.b16 %v1658
        %v3006 = vunpack.c.h.b16 %v1658
        %v3007 = vunpack.c.l.b16 %v1659
        %v3008 = vunpack.c.h.b16 %v1659
        %v3009 = vunpack.c.l.b16 %v1660
        %v3010 = vunpack.c.h.b16 %v1660
        %v3011 = vunpack.c.l.b16 %v1661
        %v3012 = vunpack.c.h.b16 %v1661
        %v3013 = vunpack.c.l.b16 %v1662
        %v3014 = vunpack.c.h.b16 %v1662
        %v3015 = vunpack.c.l.b16 %v1663
        %v3016 = vunpack.c.h.b16 %v1663
        %v3017 = vunpack.c.l.b16 %v1664
        %v3018 = vunpack.c.h.b16 %v1664
        %v3019 = vunpack.c.l.b16 %v1665
        %v3020 = vunpack.c.h.b16 %v1665
        %v3021 = vunpack.c.l.b16 %v1666
        %v3022 = vunpack.c.h.b16 %v1666
        %v3023 = vunpack.c.l.b16 %v1667
        %v3024 = vunpack.c.h.b16 %v1667
        %v3025 = vunpack.c.l.b16 %v1668
        %v3026 = vunpack.c.h.b16 %v1668
        %v3027 = vunpack.c.l.b16 %v1669
        %v3028 = vunpack.c.h.b16 %v1669
        %v3029 = vunpack.c.l.b16 %v1670
        %v3030 = vunpack.c.h.b16 %v1670
        %v3031 = vunpack.c.l.b16 %v1671
        %v3032 = vunpack.c.h.b16 %v1671
        %v3033 = vunpack.c.l.b16 %v1672
        %v3034 = vunpack.c.h.b16 %v1672
        %v3035 = vunpack.c.l.b16 %v1673
        %v3036 = vunpack.c.h.b16 %v1673
        %v3037 = vunpack.c.l.b16 %v1674
        %v3038 = vunpack.c.h.b16 %v1674
        %v3039 = vunpack.c.l.b16 %v1675
        %v3040 = vunpack.c.h.b16 %v1675
        %v3041 = vunpack.c.l.b16 %v1676
        %v3042 = vunpack.c.h.b16 %v1676
        %v3043 = vunpack.c.l.b16 %v1677
        %v3044 = vunpack.c.h.b16 %v1677
        %v3045 = vunpack.c.l.b16 %v1678
        %v3046 = vunpack.c.h.b16 %v1678
        %v3047 = vunpack.c.l.b16 %v1679
        %v3048 = vunpack.c.h.b16 %v1679
        %v3049 = vunpack.c.l.b16 %v1680
        %v3050 = vunpack.c.h.b16 %v1680
        %v3051 = vunpack.c.l.b16 %v1681
        %v3052 = vunpack.c.h.b16 %v1681
        %v3053 = vunpack.c.l.b16 %v1682
        %v3054 = vunpack.c.h.b16 %v1682
        %v3055 = vunpack.c.l.b16 %v1683
        %v3056 = vunpack.c.h.b16 %v1683
        %v3057 = vunpack.c.l.b16 %v1684
        %v3058 = vunpack.c.h.b16 %v1684
        %v3059 = vunpack.c.l.b16 %v1685
        %v3060 = vunpack.c.h.b16 %v1685
        %v3061 = vunpack.c.l.b16 %v1686
        %v3062 = vunpack.c.h.b16 %v1686
        %v3063 = vunpack.c.l.b16 %v1687
        %v3064 = vunpack.c.h.b16 %v1687
        %v3065 = vunpack.c.l.b16 %v1688
        %v3066 = vunpack.c.h.b16 %v1688
        %v3067 = vunpack.c.l.b16 %v1689
        %v3068 = vunpack.c.h.b16 %v1689
        %v3069 = vunpack.c.l.b16 %v1690
        %v3070 = vunpack.c.h.b16 %v1690
        %v3071 = vunpack.c.l.b16 %v1691
        %v3072 = vunpack.c.h.b16 %v1691
        %v3073 = vunpack.c.l.b16 %v1692
        %v3074 = vunpack.c.h.b16 %v1692
        %v3075 = vunpack.c.l.b16 %v1693
        %v3076 = vunpack.c.h.b16 %v1693
        %v3077 = vunpack.c.l.b16 %v1694
        %v3078 = vunpack.c.h.b16 %v1694
        %v3079 = vunpack.c.l.b16 %v1695
        %v3080 = vunpack.c.h.b16 %v1695
        %v3081 = vunpack.c.l.b16 %v1696
        %v3082 = vunpack.c.h.b16 %v1696
        %v3083 = vunpack.c.l.b16 %v1697
        %v3084 = vunpack.c.h.b16 %v1697
        %v3085 = vunpack.c.l.b16 %v1698
        %v3086 = vunpack.c.h.b16 %v1698
        %v3087 = vunpack.c.l.b16 %v1699
        %v3088 = vunpack.c.h.b16 %v1699
        %v3089 = vunpack.c.l.b16 %v1700
        %v3090 = vunpack.c.h.b16 %v1700
        %v3091 = vunpack.c.l.b16 %v1701
        %v3092 = vunpack.c.h.b16 %v1701
        %v3093 = vunpack.c.l.b16 %v1702
        %v3094 = vunpack.c.h.b16 %v1702
        %v3095 = vunpack.c.l.b16 %v1703
        %v3096 = vunpack.c.h.b16 %v1703
        %v3097 = vunpack.c.l.b16 %v1704
        %v3098 = vunpack.c.h.b16 %v1704
        %v3099 = vunpack.c.l.b16 %v1705
        %v3100 = vunpack.c.h.b16 %v1705
        %v3101 = vunpack.c.l.b16 %v1706
        %v3102 = vunpack.c.h.b16 %v1706
        %v3103 = vunpack.c.l.b16 %v1707
        %v3104 = vunpack.c.h.b16 %v1707
        %v3105 = vunpack.c.l.b16 %v1708
        %v3106 = vunpack.c.h.b16 %v1708
        %v3107 = vunpack.c.l.b16 %v1709
        %v3108 = vunpack.c.h.b16 %v1709
        %v3109 = vunpack.c.l.b16 %v1710
        %v3110 = vunpack.c.h.b16 %v1710
        %v3111 = vunpack.c.l.b16 %v1711
        %v3112 = vunpack.c.h.b16 %v1711
        %v3113 = vunpack.c.l.b16 %v1712
        %v3114 = vunpack.c.h.b16 %v1712
        %v3115 = vunpack.c.l.b16 %v1713
        %v3116 = vunpack.c.h.b16 %v1713
        %v3117 = vunpack.c.l.b16 %v1714
        %v3118 = vunpack.c.h.b16 %v1714
        %v3119 = vunpack.c.l.b16 %v1715
        %v3120 = vunpack.c.h.b16 %v1715
        %v3121 = vunpack.c.l.b16 %v1716
        %v3122 = vunpack.c.h.b16 %v1716
        %v3123 = vunpack.c.l.b16 %v1717
        %v3124 = vunpack.c.h.b16 %v1717
        %v3125 = vunpack.c.l.b16 %v1718
        %v3126 = vunpack.c.h.b16 %v1718
        %v3127 = vunpack.c.l.b16 %v1719
        %v3128 = vunpack.c.h.b16 %v1719
        %v3129 = vunpack.c.l.b16 %v1720
        %v3130 = vunpack.c.h.b16 %v1720
        %v3131 = vunpack.c.l.b16 %v1721
        %v3132 = vunpack.c.h.b16 %v1721
        %v3133 = vunpack.c.l.b16 %v1722
        %v3134 = vunpack.c.h.b16 %v1722
        %v3135 = vunpack.c.l.b16 %v1723
        %v3136 = vunpack.c.h.b16 %v1723
        %v3137 = vunpack.c.l.b16 %v1724
        %v3138 = vunpack.c.h.b16 %v1724
        %v3139 = vunpack.c.l.b16 %v1725
        %v3140 = vunpack.c.h.b16 %v1725
        %v3141 = vunpack.c.l.b16 %v1726
        %v3142 = vunpack.c.h.b16 %v1726
        %v3143 = vunpack.c.l.b16 %v1727
        %v3144 = vunpack.c.h.b16 %v1727
        %v3145 = vunpack.c.l.b16 %v1728
        %v3146 = vunpack.c.h.b16 %v1728
        %v3147 = vunpack.c.l.b16 %v1729
        %v3148 = vunpack.c.h.b16 %v1729
        %v3149 = vunpack.c.l.b16 %v1730
        %v3150 = vunpack.c.h.b16 %v1730
        %v3151 = vunpack.c.l.b16 %v1731
        %v3152 = vunpack.c.h.b16 %v1731
        %v3153 = vunpack.c.l.b16 %v1732
        %v3154 = vunpack.c.h.b16 %v1732
        %v3155 = vunpack.c.l.b16 %v1733
        %v3156 = vunpack.c.h.b16 %v1733
        %v3157 = vunpack.c.l.b16 %v1734
        %v3158 = vunpack.c.h.b16 %v1734
        %v3159 = vunpack.c.l.b16 %v1735
        %v3160 = vunpack.c.h.b16 %v1735
        %v3161 = vunpack.c.l.b16 %v1736
        %v3162 = vunpack.c.h.b16 %v1736
        %v3163 = vunpack.c.l.b16 %v1737
        %v3164 = vunpack.c.h.b16 %v1737
        %v3165 = vunpack.c.l.b16 %v1738
        %v3166 = vunpack.c.h.b16 %v1738
        %v3167 = vunpack.c.l.b16 %v1739
        %v3168 = vunpack.c.h.b16 %v1739
        %v3169 = vunpack.c.l.b16 %v1740
        %v3170 = vunpack.c.h.b16 %v1740
        %v3171 = vunpack.c.l.b16 %v1741
        %v3172 = vunpack.c.h.b16 %v1741
        %v3173 = vunpack.c.l.b16 %v1742
        %v3174 = vunpack.c.h.b16 %v1742
        %v3175 = vunpack.c.l.b16 %v1743
        %v3176 = vunpack.c.h.b16 %v1743
        %v3177 = vunpack.c.l.b16 %v1744
        %v3178 = vunpack.c.h.b16 %v1744
        %v3179 = vunpack.c.l.b16 %v1745
        %v3180 = vunpack.c.h.b16 %v1745
        %v3181 = vunpack.c.l.b16 %v1746
        %v3182 = vunpack.c.h.b16 %v1746
        %v3183 = vunpack.c.l.b16 %v1747
        %v3184 = vunpack.c.h.b16 %v1747
        %v3185 = vunpack.c.l.b16 %v1748
        %v3186 = vunpack.c.h.b16 %v1748
        %v3187 = vunpack.c.l.b16 %v1749
        %v3188 = vunpack.c.h.b16 %v1749
        %v3189 = vunpack.c.l.b16 %v1750
        %v3190 = vunpack.c.h.b16 %v1750
        %v3191 = vunpack.c.l.b16 %v1751
        %v3192 = vunpack.c.h.b16 %v1751
        %v3193 = vunpack.c.l.b16 %v1752
        %v3194 = vunpack.c.h.b16 %v1752
        %v3195 = vunpack.c.l.b16 %v1753
        %v3196 = vunpack.c.h.b16 %v1753
        %v3197 = vunpack.c.l.b16 %v1754
        %v3198 = vunpack.c.h.b16 %v1754
        %v3199 = vunpack.c.l.b16 %v1755
        %v3200 = vunpack.c.h.b16 %v1755
        %v3201 = vunpack.c.l.b16 %v1756
        %v3202 = vunpack.c.h.b16 %v1756
        %v3203 = vunpack.c.l.b16 %v1757
        %v3204 = vunpack.c.h.b16 %v1757
        %v3205 = vunpack.c.l.b16 %v1758
        %v3206 = vunpack.c.h.b16 %v1758
        %v3207 = vunpack.c.l.b16 %v1759
        %v3208 = vunpack.c.h.b16 %v1759
        %v3209 = vunpack.c.l.b16 %v1760
        %v3210 = vunpack.c.h.b16 %v1760
        %v3211 = vunpack.c.l.b16 %v1761
        %v3212 = vunpack.c.h.b16 %v1761
        %v3213 = vunpack.c.l.b16 %v1762
        %v3214 = vunpack.c.h.b16 %v1762
        %v3215 = vunpack.c.l.b16 %v1763
        %v3216 = vunpack.c.h.b16 %v1763
        %v3217 = vunpack.c.l.b16 %v1764
        %v3218 = vunpack.c.h.b16 %v1764
        %v3219 = vunpack.c.l.b16 %v1765
        %v3220 = vunpack.c.h.b16 %v1765
        %v3221 = vunpack.c.l.b16 %v1766
        %v3222 = vunpack.c.h.b16 %v1766
        %v3223 = vunpack.c.l.b16 %v1767
        %v3224 = vunpack.c.h.b16 %v1767
        %v3225 = vunpack.c.l.b16 %v1768
        %v3226 = vunpack.c.h.b16 %v1768
        %v3227 = vunpack.c.l.b16 %v1769
        %v3228 = vunpack.c.h.b16 %v1769
        %v3229 = vunpack.c.l.b16 %v1770
        %v3230 = vunpack.c.h.b16 %v1770
        %v3231 = vunpack.c.l.b16 %v1771
        %v3232 = vunpack.c.h.b16 %v1771
        %v3233 = vunpack.c.l.b16 %v1772
        %v3234 = vunpack.c.h.b16 %v1772
        %v3235 = vunpack.c.l.b16 %v1773
        %v3236 = vunpack.c.h.b16 %v1773
        %v3237 = vunpack.c.l.b16 %v1774
        %v3238 = vunpack.c.h.b16 %v1774
        %v3239 = vunpack.c.l.b16 %v1775
        %v3240 = vunpack.c.h.b16 %v1775
        %v3241 = vunpack.c.l.b16 %v1776
        %v3242 = vunpack.c.h.b16 %v1776
        %v3243 = vunpack.c.l.b16 %v1777
        %v3244 = vunpack.c.h.b16 %v1777
        %v3245 = vunpack.c.l.b16 %v1778
        %v3246 = vunpack.c.h.b16 %v1778
        %v3247 = vunpack.c.l.b16 %v1779
        %v3248 = vunpack.c.h.b16 %v1779
        %v3249 = vunpack.c.l.b16 %v1780
        %v3250 = vunpack.c.h.b16 %v1780
        %v3251 = vunpack.c.l.b16 %v1781
        %v3252 = vunpack.c.h.b16 %v1781
        %v3253 = vunpack.c.l.b16 %v1782
        %v3254 = vunpack.c.h.b16 %v1782
        %v3255 = vunpack.c.l.b16 %v1783
        %v3256 = vunpack.c.h.b16 %v1783
        %v3257 = vunpack.c.l.b16 %v1784
        %v3258 = vunpack.c.h.b16 %v1784
        %v3259 = vunpack.c.l.b16 %v1785
        %v3260 = vunpack.c.h.b16 %v1785
        %v3261 = vunpack.c.l.b16 %v1786
        %v3262 = vunpack.c.h.b16 %v1786
        %v3263 = vunpack.c.l.b16 %v1787
        %v3264 = vunpack.c.h.b16 %v1787
        %v3265 = vunpack.c.l.b16 %v1788
        %v3266 = vunpack.c.h.b16 %v1788
        %v3267 = vunpack.c.l.b16 %v1789
        %v3268 = vunpack.c.h.b16 %v1789
        %v3269 = vunpack.c.l.b16 %v1790
        %v3270 = vunpack.c.h.b16 %v1790
        %v3271 = vunpack.c.l.b16 %v1791
        %v3272 = vunpack.c.h.b16 %v1791
        %v3273 = vunpack.c.l.b16 %v1792
        %v3274 = vunpack.c.h.b16 %v1792
        %v3275 = vunpack.c.l.b16 %v1793
        %v3276 = vunpack.c.h.b16 %v1793
        %v3277 = vunpack.c.l.b16 %v1794
        %v3278 = vunpack.c.h.b16 %v1794
        %v3279 = vunpack.c.l.b16 %v1795
        %v3280 = vunpack.c.h.b16 %v1795
        %v3281 = vunpack.c.l.b16 %v1796
        %v3282 = vunpack.c.h.b16 %v1796
        %v3283 = vunpack.c.l.b16 %v1797
        %v3284 = vunpack.c.h.b16 %v1797
        %v3285 = vunpack.c.l.b16 %v1798
        %v3286 = vunpack.c.h.b16 %v1798
        %v3287 = vunpack.c.l.b16 %v1799
        %v3288 = vunpack.c.h.b16 %v1799
        %v3289 = vunpack.c.l.b16 %v1800
        %v3290 = vunpack.c.h.b16 %v1800
        %v3291 = vunpack.c.l.b16 %v1801
        %v3292 = vunpack.c.h.b16 %v1801
        %v3293 = vunpack.c.l.b16 %v1802
        %v3294 = vunpack.c.h.b16 %v1802
        %v3295 = vunpack.c.l.b16 %v1803
        %v3296 = vunpack.c.h.b16 %v1803
        %v3297 = vunpack.c.l.b16 %v1804
        %v3298 = vunpack.c.h.b16 %v1804
        %v3299 = vunpack.c.l.b16 %v1805
        %v3300 = vunpack.c.h.b16 %v1805
        %v3301 = vunpack.c.l.b16 %v1806
        %v3302 = vunpack.c.h.b16 %v1806
        %v3303 = vunpack.c.l.b16 %v1807
        %v3304 = vunpack.c.h.b16 %v1807
        %v3305 = vunpack.c.l.b16 %v1808
        %v3306 = vunpack.c.h.b16 %v1808
        %v3307 = vunpack.c.l.b16 %v1809
        %v3308 = vunpack.c.h.b16 %v1809
        %v3309 = vunpack.c.l.b16 %v1810
        %v3310 = vunpack.c.h.b16 %v1810
        %v3311 = vunpack.c.l.b16 %v1811
        %v3312 = vunpack.c.h.b16 %v1811
        %v3313 = vunpack.c.l.b16 %v1812
        %v3314 = vunpack.c.h.b16 %v1812
        %v3315 = vunpack.c.l.b16 %v1813
        %v3316 = vunpack.c.h.b16 %v1813
        %v3317 = vunpack.c.l.b16 %v1814
        %v3318 = vunpack.c.h.b16 %v1814
        %v3319 = vunpack.c.l.b16 %v1815
        %v3320 = vunpack.c.h.b16 %v1815
        %v3321 = vunpack.c.l.b16 %v1816
        %v3322 = vunpack.c.h.b16 %v1816
        %v3323 = vunpack.c.l.b16 %v1817
        %v3324 = vunpack.c.h.b16 %v1817
        %v3325 = vunpack.c.l.b16 %v1818
        %v3326 = vunpack.c.h.b16 %v1818
        %v3327 = vunpack.c.l.b16 %v1819
        %v3328 = vunpack.c.h.b16 %v1819
        %v3329 = vunpack.c.l.b16 %v1820
        %v3330 = vunpack.c.h.b16 %v1820
        %v3331 = vunpack.c.l.b16 %v1821
        %v3332 = vunpack.c.h.b16 %v1821
        %v3333 = vunpack.c.l.b16 %v1822
        %v3334 = vunpack.c.h.b16 %v1822
        %v3335 = vunpack.c.l.b16 %v1823
        %v3336 = vunpack.c.h.b16 %v1823
        %v3337 = vunpack.c.l.b16 %v1824
        %v3338 = vunpack.c.h.b16 %v1824
        %v3339 = vunpack.c.l.b16 %v1825
        %v3340 = vunpack.c.h.b16 %v1825
        %v3341 = vunpack.c.l.b16 %v1826
        %v3342 = vunpack.c.h.b16 %v1826
        %v3343 = vunpack.c.l.b16 %v1827
        %v3344 = vunpack.c.h.b16 %v1827
        %v3345 = vunpack.c.l.b16 %v1828
        %v3346 = vunpack.c.h.b16 %v1828
        %v3347 = vunpack.c.l.b16 %v1829
        %v3348 = vunpack.c.h.b16 %v1829
        %v3349 = vunpack.c.l.b16 %v1830
        %v3350 = vunpack.c.h.b16 %v1830
        %v3351 = vunpack.c.l.b16 %v1831
        %v3352 = vunpack.c.h.b16 %v1831
        %v3353 = vunpack.c.l.b16 %v1832
        %v3354 = vunpack.c.h.b16 %v1832
        %v3355 = vunpack.c.l.b16 %v1833
        %v3356 = vunpack.c.h.b16 %v1833
        %v3357 = vunpack.c.l.b16 %v1834
        %v3358 = vunpack.c.h.b16 %v1834
        %v3359 = vunpack.c.l.b16 %v1835
        %v3360 = vunpack.c.h.b16 %v1835
        %v3361 = vunpack.c.l.b16 %v1836
        %v3362 = vunpack.c.h.b16 %v1836
        %v3363 = vunpack.c.l.b16 %v1837
        %v3364 = vunpack.c.h.b16 %v1837
        %v3365 = vunpack.c.l.b16 %v1838
        %v3366 = vunpack.c.h.b16 %v1838
        %v3367 = vunpack.c.l.b16 %v1839
        %v3368 = vunpack.c.h.b16 %v1839
        %v3369 = vunpack.c.l.b16 %v1840
        %v3370 = vunpack.c.h.b16 %v1840
        %v3371 = vunpack.c.l.b16 %v1841
        %v3372 = vunpack.c.h.b16 %v1841
        %v3373 = vunpack.c.l.b16 %v1842
        %v3374 = vunpack.c.h.b16 %v1842
        %v3375 = vunpack.c.l.b16 %v1843
        %v3376 = vunpack.c.h.b16 %v1843
        %v3377 = vunpack.c.l.b16 %v1844
        %v3378 = vunpack.c.h.b16 %v1844
        %v3379 = vunpack.c.l.b16 %v1845
        %v3380 = vunpack.c.h.b16 %v1845
        %v3381 = vunpack.c.l.b16 %v1846
        %v3382 = vunpack.c.h.b16 %v1846
        %v3383 = vunpack.c.l.b16 %v1847
        %v3384 = vunpack.c.h.b16 %v1847
        %v3385 = vunpack.c.l.b16 %v1848
        %v3386 = vunpack.c.h.b16 %v1848
        %v3387 = vunpack.c.l.b16 %v1849
        %v3388 = vunpack.c.h.b16 %v1849
        %v3389 = vunpack.c.l.b16 %v1850
        %v3390 = vunpack.c.h.b16 %v1850
        %v3391 = vunpack.c.l.b16 %v1851
        %v3392 = vunpack.c.h.b16 %v1851
        %v3393 = vunpack.c.l.b16 %v1852
        %v3394 = vunpack.c.h.b16 %v1852
        %v3395 = vunpack.c.l.b16 %v1853
        %v3396 = vunpack.c.h.b16 %v1853
        %v3397 = vunpack.c.l.b16 %v1854
        %v3398 = vunpack.c.h.b16 %v1854
        %v3399 = vunpack.c.l.b16 %v1855
        %v3400 = vunpack.c.h.b16 %v1855
        %v3401 = vunpack.c.l.b16 %v1856
        %v3402 = vunpack.c.h.b16 %v1856
        %v3403 = vunpack.c.l.b16 %v1857
        %v3404 = vunpack.c.h.b16 %v1857
        %v3405 = vunpack.c.l.b16 %v1858
        %v3406 = vunpack.c.h.b16 %v1858
        %v3407 = vunpack.c.l.b16 %v1859
        %v3408 = vunpack.c.h.b16 %v1859
        %v3409 = vunpack.c.l.b16 %v1860
        %v3410 = vunpack.c.h.b16 %v1860
        %v3411 = vunpack.c.l.b16 %v1861
        %v3412 = vunpack.c.h.b16 %v1861
        %v3413 = vunpack.c.l.b16 %v1862
        %v3414 = vunpack.c.h.b16 %v1862
        %v3415 = vunpack.c.l.b16 %v1863
        %v3416 = vunpack.c.h.b16 %v1863
        %v3417 = vunpack.c.l.b16 %v1864
        %v3418 = vunpack.c.h.b16 %v1864
        %v3419 = vpack.c.b16 %v2403, %v2395
        %v3420 = vpack.c.b16 %v2404, %v2396
        %v3421 = vpack.c.b16 %v2405, %v2397
        %v3422 = vpack.c.b16 %v2406, %v2398
        %v3423 = vpack.c.b16 %v2407, %v2399
        %v3424 = vpack.c.b16 %v2408, %v2400
        %v3425 = vpack.c.b16 %v2409, %v2401
        %v3426 = vpack.c.b16 %v2410, %v2402
        %v3427 = vpack.c.b16 %v2419, %v2411
        %v3428 = vpack.c.b16 %v2420, %v2412
        %v3429 = vpack.c.b16 %v2421, %v2413
        %v3430 = vpack.c.b16 %v2422, %v2414
        %v3431 = vpack.c.b16 %v2423, %v2415
        %v3432 = vpack.c.b16 %v2424, %v2416
        %v3433 = vpack.c.b16 %v2425, %v2417
        %v3434 = vpack.c.b16 %v2426, %v2418
        %v3435 = vpack.c.b16 %v2435, %v2427
        %v3436 = vpack.c.b16 %v2436, %v2428
        %v3437 = vpack.c.b16 %v2437, %v2429
        %v3438 = vpack.c.b16 %v2438, %v2430
        %v3439 = vpack.c.b16 %v2439, %v2431
        %v3440 = vpack.c.b16 %v2440, %v2432
        %v3441 = vpack.c.b16 %v2441, %v2433
        %v3442 = vpack.c.b16 %v2442, %v2434
        %v3443 = vpack.c.b16 %v2451, %v2443
        %v3444 = vpack.c.b16 %v2452, %v2444
        %v3445 = vpack.c.b16 %v2453, %v2445
        %v3446 = vpack.c.b16 %v2454, %v2446
        %v3447 = vpack.c.b16 %v2455, %v2447
        %v3448 = vpack.c.b16 %v2456, %v2448
        %v3449 = vpack.c.b16 %v2457, %v2449
        %v3450 = vpack.c.b16 %v2458, %v2450
        %v3451 = vpack.c.b16 %v2467, %v2459
        %v3452 = vpack.c.b16 %v2468, %v2460
        %v3453 = vpack.c.b16 %v2469, %v2461
        %v3454 = vpack.c.b16 %v2470, %v2462
        %v3455 = vpack.c.b16 %v2471, %v2463
        %v3456 = vpack.c.b16 %v2472, %v2464
        %v3457 = vpack.c.b16 %v2473, %v2465
        %v3458 = vpack.c.b16 %v2474, %v2466
        %v3459 = vpack.c.b16 %v2483, %v2475
        %v3460 = vpack.c.b16 %v2484, %v2476
        %v3461 = vpack.c.b16 %v2485, %v2477
        %v3462 = vpack.c.b16 %v2486, %v2478
        %v3463 = vpack.c.b16 %v2487, %v2479
        %v3464 = vpack.c.b16 %v2488, %v2480
        %v3465 = vpack.c.b16 %v2489, %v2481
        %v3466 = vpack.c.b16 %v2490, %v2482
        %v3467 = vpack.c.b16 %v2499, %v2491
        %v3468 = vpack.c.b16 %v2500, %v2492
        %v3469 = vpack.c.b16 %v2501, %v2493
        %v3470 = vpack.c.b16 %v2502, %v2494
        %v3471 = vpack.c.b16 %v2503, %v2495
        %v3472 = vpack.c.b16 %v2504, %v2496
        %v3473 = vpack.c.b16 %v2505, %v2497
        %v3474 = vpack.c.b16 %v2506, %v2498
        %v3475 = vpack.c.b16 %v2515, %v2507
        %v3476 = vpack.c.b16 %v2516, %v2508
        %v3477 = vpack.c.b16 %v2517, %v2509
        %v3478 = vpack.c.b16 %v2518, %v2510
        %v3479 = vpack.c.b16 %v2519, %v2511
        %v3480 = vpack.c.b16 %v2520, %v2512
        %v3481 = vpack.c.b16 %v2521, %v2513
        %v3482 = vpack.c.b16 %v2522, %v2514
        %v3483 = vpack.c.b16 %v2531, %v2523
        %v3484 = vpack.c.b16 %v2532, %v2524
        %v3485 = vpack.c.b16 %v2533, %v2525
        %v3486 = vpack.c.b16 %v2534, %v2526
        %v3487 = vpack.c.b16 %v2535, %v2527
        %v3488 = vpack.c.b16 %v2536, %v2528
        %v3489 = vpack.c.b16 %v2537, %v2529
        %v3490 = vpack.c.b16 %v2538, %v2530
        %v3491 = vpack.c.b16 %v2547, %v2539
        %v3492 = vpack.c.b16 %v2548, %v2540
        %v3493 = vpack.c.b16 %v2549, %v2541
        %v3494 = vpack.c.b16 %v2550, %v2542
        %v3495 = vpack.c.b16 %v2551, %v2543
        %v3496 = vpack.c.b16 %v2552, %v2544
        %v3497 = vpack.c.b16 %v2553, %v2545
        %v3498 = vpack.c.b16 %v2554, %v2546
        %v3499 = vpack.c.b16 %v2563, %v2555
        %v3500 = vpack.c.b16 %v2564, %v2556
        %v3501 = vpack.c.b16 %v2565, %v2557
        %v3502 = vpack.c.b16 %v2566, %v2558
        %v3503 = vpack.c.b16 %v2567, %v2559
        %v3504 = vpack.c.b16 %v2568, %v2560
        %v3505 = vpack.c.b16 %v2569, %v2561
        %v3506 = vpack.c.b16 %v2570, %v2562
        %v3507 = vpack.c.b16 %v2579, %v2571
        %v3508 = vpack.c.b16 %v2580, %v2572
        %v3509 = vpack.c.b16 %v2581, %v2573
        %v3510 = vpack.c.b16 %v2582, %v2574
        %v3511 = vpack.c.b16 %v2583, %v2575
        %v3512 = vpack.c.b16 %v2584, %v2576
        %v3513 = vpack.c.b16 %v2585, %v2577
        %v3514 = vpack.c.b16 %v2586, %v2578
        %v3515 = vpack.c.b16 %v2595, %v2587
        %v3516 = vpack.c.b16 %v2596, %v2588
        %v3517 = vpack.c.b16 %v2597, %v2589
        %v3518 = vpack.c.b16 %v2598, %v2590
        %v3519 = vpack.c.b16 %v2599, %v2591
        %v3520 = vpack.c.b16 %v2600, %v2592
        %v3521 = vpack.c.b16 %v2601, %v2593
        %v3522 = vpack.c.b16 %v2602, %v2594
        %v3523 = vpack.c.b16 %v2611, %v2603
        %v3524 = vpack.c.b16 %v2612, %v2604
        %v3525 = vpack.c.b16 %v2613, %v2605
        %v3526 = vpack.c.b16 %v2614, %v2606
        %v3527 = vpack.c.b16 %v2615, %v2607
        %v3528 = vpack.c.b16 %v2616, %v2608
        %v3529 = vpack.c.b16 %v2617, %v2609
        %v3530 = vpack.c.b16 %v2618, %v2610
        %v3531 = vpack.c.b16 %v2627, %v2619
        %v3532 = vpack.c.b16 %v2628, %v2620
        %v3533 = vpack.c.b16 %v2629, %v2621
        %v3534 = vpack.c.b16 %v2630, %v2622
        %v3535 = vpack.c.b16 %v2631, %v2623
        %v3536 = vpack.c.b16 %v2632, %v2624
        %v3537 = vpack.c.b16 %v2633, %v2625
        %v3538 = vpack.c.b16 %v2634, %v2626
        %v3539 = vpack.c.b16 %v2643, %v2635
        %v3540 = vpack.c.b16 %v2644, %v2636
        %v3541 = vpack.c.b16 %v2645, %v2637
        %v3542 = vpack.c.b16 %v2646, %v2638
        %v3543 = vpack.c.b16 %v2647, %v2639
        %v3544 = vpack.c.b16 %v2648, %v2640
        %v3545 = vpack.c.b16 %v2649, %v2641
        %v3546 = vpack.c.b16 %v2650, %v2642
        %v3547 = vpack.c.b16 %v2659, %v2651
        %v3548 = vpack.c.b16 %v2660, %v2652
        %v3549 = vpack.c.b16 %v2661, %v2653
        %v3550 = vpack.c.b16 %v2662, %v2654
        %v3551 = vpack.c.b16 %v2663, %v2655
        %v3552 = vpack.c.b16 %v2664, %v2656
        %v3553 = vpack.c.b16 %v2665, %v2657
        %v3554 = vpack.c.b16 %v2666, %v2658
        %v3555 = vpack.c.b16 %v2675, %v2667
        %v3556 = vpack.c.b16 %v2676, %v2668
        %v3557 = vpack.c.b16 %v2677, %v2669
        %v3558 = vpack.c.b16 %v2678, %v2670
        %v3559 = vpack.c.b16 %v2679, %v2671
        %v3560 = vpack.c.b16 %v2680, %v2672
        %v3561 = vpack.c.b16 %v2681, %v2673
        %v3562 = vpack.c.b16 %v2682, %v2674
        %v3563 = vpack.c.b16 %v2691, %v2683
        %v3564 = vpack.c.b16 %v2692, %v2684
        %v3565 = vpack.c.b16 %v2693, %v2685
        %v3566 = vpack.c.b16 %v2694, %v2686
        %v3567 = vpack.c.b16 %v2695, %v2687
        %v3568 = vpack.c.b16 %v2696, %v2688
        %v3569 = vpack.c.b16 %v2697, %v2689
        %v3570 = vpack.c.b16 %v2698, %v2690
        %v3571 = vpack.c.b16 %v2707, %v2699
        %v3572 = vpack.c.b16 %v2708, %v2700
        %v3573 = vpack.c.b16 %v2709, %v2701
        %v3574 = vpack.c.b16 %v2710, %v2702
        %v3575 = vpack.c.b16 %v2711, %v2703
        %v3576 = vpack.c.b16 %v2712, %v2704
        %v3577 = vpack.c.b16 %v2713, %v2705
        %v3578 = vpack.c.b16 %v2714, %v2706
        %v3579 = vpack.c.b16 %v2723, %v2715
        %v3580 = vpack.c.b16 %v2724, %v2716
        %v3581 = vpack.c.b16 %v2725, %v2717
        %v3582 = vpack.c.b16 %v2726, %v2718
        %v3583 = vpack.c.b16 %v2727, %v2719
        %v3584 = vpack.c.b16 %v2728, %v2720
        %v3585 = vpack.c.b16 %v2729, %v2721
        %v3586 = vpack.c.b16 %v2730, %v2722
        %v3587 = vpack.c.b16 %v2739, %v2731
        %v3588 = vpack.c.b16 %v2740, %v2732
        %v3589 = vpack.c.b16 %v2741, %v2733
        %v3590 = vpack.c.b16 %v2742, %v2734
        %v3591 = vpack.c.b16 %v2743, %v2735
        %v3592 = vpack.c.b16 %v2744, %v2736
        %v3593 = vpack.c.b16 %v2745, %v2737
        %v3594 = vpack.c.b16 %v2746, %v2738
        %v3595 = vpack.c.b16 %v2755, %v2747
        %v3596 = vpack.c.b16 %v2756, %v2748
        %v3597 = vpack.c.b16 %v2757, %v2749
        %v3598 = vpack.c.b16 %v2758, %v2750
        %v3599 = vpack.c.b16 %v2759, %v2751
        %v3600 = vpack.c.b16 %v2760, %v2752
        %v3601 = vpack.c.b16 %v2761, %v2753
        %v3602 = vpack.c.b16 %v2762, %v2754
        %v3603 = vpack.c.b16 %v2771, %v2763
        %v3604 = vpack.c.b16 %v2772, %v2764
        %v3605 = vpack.c.b16 %v2773, %v2765
        %v3606 = vpack.c.b16 %v2774, %v2766
        %v3607 = vpack.c.b16 %v2775, %v2767
        %v3608 = vpack.c.b16 %v2776, %v2768
        %v3609 = vpack.c.b16 %v2777, %v2769
        %v3610 = vpack.c.b16 %v2778, %v2770
        %v3611 = vpack.c.b16 %v2787, %v2779
        %v3612 = vpack.c.b16 %v2788, %v2780
        %v3613 = vpack.c.b16 %v2789, %v2781
        %v3614 = vpack.c.b16 %v2790, %v2782
        %v3615 = vpack.c.b16 %v2791, %v2783
        %v3616 = vpack.c.b16 %v2792, %v2784
        %v3617 = vpack.c.b16 %v2793, %v2785
        %v3618 = vpack.c.b16 %v2794, %v2786
        %v3619 = vpack.c.b16 %v2803, %v2795
        %v3620 = vpack.c.b16 %v2804, %v2796
        %v3621 = vpack.c.b16 %v2805, %v2797
        %v3622 = vpack.c.b16 %v2806, %v2798
        %v3623 = vpack.c.b16 %v2807, %v2799
        %v3624 = vpack.c.b16 %v2808, %v2800
        %v3625 = vpack.c.b16 %v2809, %v2801
        %v3626 = vpack.c.b16 %v2810, %v2802
        %v3627 = vpack.c.b16 %v2819, %v2811
        %v3628 = vpack.c.b16 %v2820, %v2812
        %v3629 = vpack.c.b16 %v2821, %v2813
        %v3630 = vpack.c.b16 %v2822, %v2814
        %v3631 = vpack.c.b16 %v2823, %v2815
        %v3632 = vpack.c.b16 %v2824, %v2816
        %v3633 = vpack.c.b16 %v2825, %v2817
        %v3634 = vpack.c.b16 %v2826, %v2818
        %v3635 = vpack.c.b16 %v2835, %v2827
        %v3636 = vpack.c.b16 %v2836, %v2828
        %v3637 = vpack.c.b16 %v2837, %v2829
        %v3638 = vpack.c.b16 %v2838, %v2830
        %v3639 = vpack.c.b16 %v2839, %v2831
        %v3640 = vpack.c.b16 %v2840, %v2832
        %v3641 = vpack.c.b16 %v2841, %v2833
        %v3642 = vpack.c.b16 %v2842, %v2834
        %v3643 = vpack.c.b16 %v2851, %v2843
        %v3644 = vpack.c.b16 %v2852, %v2844
        %v3645 = vpack.c.b16 %v2853, %v2845
        %v3646 = vpack.c.b16 %v2854, %v2846
        %v3647 = vpack.c.b16 %v2855, %v2847
        %v3648 = vpack.c.b16 %v2856, %v2848
        %v3649 = vpack.c.b16 %v2857, %v2849
        %v3650 = vpack.c.b16 %v2858, %v2850
        %v3651 = vpack.c.b16 %v2867, %v2859
        %v3652 = vpack.c.b16 %v2868, %v2860
        %v3653 = vpack.c.b16 %v2869, %v2861
        %v3654 = vpack.c.b16 %v2870, %v2862
        %v3655 = vpack.c.b16 %v2871, %v2863
        %v3656 = vpack.c.b16 %v2872, %v2864
        %v3657 = vpack.c.b16 %v2873, %v2865
        %v3658 = vpack.c.b16 %v2874, %v2866
        %v3659 = vpack.c.b16 %v2883, %v2875
        %v3660 = vpack.c.b16 %v2884, %v2876
        %v3661 = vpack.c.b16 %v2885, %v2877
        %v3662 = vpack.c.b16 %v2886, %v2878
        %v3663 = vpack.c.b16 %v2887, %v2879
        %v3664 = vpack.c.b16 %v2888, %v2880
        %v3665 = vpack.c.b16 %v2889, %v2881
        %v3666 = vpack.c.b16 %v2890, %v2882
        %v3667 = vpack.c.b16 %v2899, %v2891
        %v3668 = vpack.c.b16 %v2900, %v2892
        %v3669 = vpack.c.b16 %v2901, %v2893
        %v3670 = vpack.c.b16 %v2902, %v2894
        %v3671 = vpack.c.b16 %v2903, %v2895
        %v3672 = vpack.c.b16 %v2904, %v2896
        %v3673 = vpack.c.b16 %v2905, %v2897
        %v3674 = vpack.c.b16 %v2906, %v2898
        %v3675 = vpack.c.b16 %v2915, %v2907
        %v3676 = vpack.c.b16 %v2916, %v2908
        %v3677 = vpack.c.b16 %v2917, %v2909
        %v3678 = vpack.c.b16 %v2918, %v2910
        %v3679 = vpack.c.b16 %v2919, %v2911
        %v3680 = vpack.c.b16 %v2920, %v2912
        %v3681 = vpack.c.b16 %v2921, %v2913
        %v3682 = vpack.c.b16 %v2922, %v2914
        %v3683 = vpack.c.b16 %v2931, %v2923
        %v3684 = vpack.c.b16 %v2932, %v2924
        %v3685 = vpack.c.b16 %v2933, %v2925
        %v3686 = vpack.c.b16 %v2934, %v2926
        %v3687 = vpack.c.b16 %v2935, %v2927
        %v3688 = vpack.c.b16 %v2936, %v2928
        %v3689 = vpack.c.b16 %v2937, %v2929
        %v3690 = vpack.c.b16 %v2938, %v2930
        %v3691 = vpack.c.b16 %v2947, %v2939
        %v3692 = vpack.c.b16 %v2948, %v2940
        %v3693 = vpack.c.b16 %v2949, %v2941
        %v3694 = vpack.c.b16 %v2950, %v2942
        %v3695 = vpack.c.b16 %v2951, %v2943
        %v3696 = vpack.c.b16 %v2952, %v2944
        %v3697 = vpack.c.b16 %v2953, %v2945
        %v3698 = vpack.c.b16 %v2954, %v2946
        %v3699 = vpack.c.b16 %v2963, %v2955
        %v3700 = vpack.c.b16 %v2964, %v2956
        %v3701 = vpack.c.b16 %v2965, %v2957
        %v3702 = vpack.c.b16 %v2966, %v2958
        %v3703 = vpack.c.b16 %v2967, %v2959
        %v3704 = vpack.c.b16 %v2968, %v2960
        %v3705 = vpack.c.b16 %v2969, %v2961
        %v3706 = vpack.c.b16 %v2970, %v2962
        %v3707 = vpack.c.b16 %v2979, %v2971
        %v3708 = vpack.c.b16 %v2980, %v2972
        %v3709 = vpack.c.b16 %v2981, %v2973
        %v3710 = vpack.c.b16 %v2982, %v2974
        %v3711 = vpack.c.b16 %v2983, %v2975
        %v3712 = vpack.c.b16 %v2984, %v2976
        %v3713 = vpack.c.b16 %v2985, %v2977
        %v3714 = vpack.c.b16 %v2986, %v2978
        %v3715 = vpack.c.b16 %v2995, %v2987
        %v3716 = vpack.c.b16 %v2996, %v2988
        %v3717 = vpack.c.b16 %v2997, %v2989
        %v3718 = vpack.c.b16 %v2998, %v2990
        %v3719 = vpack.c.b16 %v2999, %v2991
        %v3720 = vpack.c.b16 %v3000, %v2992
        %v3721 = vpack.c.b16 %v3001, %v2993
        %v3722 = vpack.c.b16 %v3002, %v2994
        %v3723 = vpack.c.b16 %v3011, %v3003
        %v3724 = vpack.c.b16 %v3012, %v3004
        %v3725 = vpack.c.b16 %v3013, %v3005
        %v3726 = vpack.c.b16 %v3014, %v3006
        %v3727 = vpack.c.b16 %v3015, %v3007
        %v3728 = vpack.c.b16 %v3016, %v3008
        %v3729 = vpack.c.b16 %v3017, %v3009
        %v3730 = vpack.c.b16 %v3018, %v3010
        %v3731 = vpack.c.b16 %v3027, %v3019
        %v3732 = vpack.c.b16 %v3028, %v3020
        %v3733 = vpack.c.b16 %v3029, %v3021
        %v3734 = vpack.c.b16 %v3030, %v3022
        %v3735 = vpack.c.b16 %v3031, %v3023
        %v3736 = vpack.c.b16 %v3032, %v3024
        %v3737 = vpack.c.b16 %v3033, %v3025
        %v3738 = vpack.c.b16 %v3034, %v3026
        %v3739 = vpack.c.b16 %v3043, %v3035
        %v3740 = vpack.c.b16 %v3044, %v3036
        %v3741 = vpack.c.b16 %v3045, %v3037
        %v3742 = vpack.c.b16 %v3046, %v3038
        %v3743 = vpack.c.b16 %v3047, %v3039
        %v3744 = vpack.c.b16 %v3048, %v3040
        %v3745 = vpack.c.b16 %v3049, %v3041
        %v3746 = vpack.c.b16 %v3050, %v3042
        %v3747 = vpack.c.b16 %v3059, %v3051
        %v3748 = vpack.c.b16 %v3060, %v3052
        %v3749 = vpack.c.b16 %v3061, %v3053
        %v3750 = vpack.c.b16 %v3062, %v3054
        %v3751 = vpack.c.b16 %v3063, %v3055
        %v3752 = vpack.c.b16 %v3064, %v3056
        %v3753 = vpack.c.b16 %v3065, %v3057
        %v3754 = vpack.c.b16 %v3066, %v3058
        %v3755 = vpack.c.b16 %v3075, %v3067
        %v3756 = vpack.c.b16 %v3076, %v3068
        %v3757 = vpack.c.b16 %v3077, %v3069
        %v3758 = vpack.c.b16 %v3078, %v3070
        %v3759 = vpack.c.b16 %v3079, %v3071
        %v3760 = vpack.c.b16 %v3080, %v3072
        %v3761 = vpack.c.b16 %v3081, %v3073
        %v3762 = vpack.c.b16 %v3082, %v3074
        %v3763 = vpack.c.b16 %v3091, %v3083
        %v3764 = vpack.c.b16 %v3092, %v3084
        %v3765 = vpack.c.b16 %v3093, %v3085
        %v3766 = vpack.c.b16 %v3094, %v3086
        %v3767 = vpack.c.b16 %v3095, %v3087
        %v3768 = vpack.c.b16 %v3096, %v3088
        %v3769 = vpack.c.b16 %v3097, %v3089
        %v3770 = vpack.c.b16 %v3098, %v3090
        %v3771 = vpack.c.b16 %v3107, %v3099
        %v3772 = vpack.c.b16 %v3108, %v3100
        %v3773 = vpack.c.b16 %v3109, %v3101
        %v3774 = vpack.c.b16 %v3110, %v3102
        %v3775 = vpack.c.b16 %v3111, %v3103
        %v3776 = vpack.c.b16 %v3112, %v3104
        %v3777 = vpack.c.b16 %v3113, %v3105
        %v3778 = vpack.c.b16 %v3114, %v3106
        %v3779 = vpack.c.b16 %v3123, %v3115
        %v3780 = vpack.c.b16 %v3124, %v3116
        %v3781 = vpack.c.b16 %v3125, %v3117
        %v3782 = vpack.c.b16 %v3126, %v3118
        %v3783 = vpack.c.b16 %v3127, %v3119
        %v3784 = vpack.c.b16 %v3128, %v3120
        %v3785 = vpack.c.b16 %v3129, %v3121
        %v3786 = vpack.c.b16 %v3130, %v3122
        %v3787 = vpack.c.b16 %v3139, %v3131
        %v3788 = vpack.c.b16 %v3140, %v3132
        %v3789 = vpack.c.b16 %v3141, %v3133
        %v3790 = vpack.c.b16 %v3142, %v3134
        %v3791 = vpack.c.b16 %v3143, %v3135
        %v3792 = vpack.c.b16 %v3144, %v3136
        %v3793 = vpack.c.b16 %v3145, %v3137
        %v3794 = vpack.c.b16 %v3146, %v3138
        %v3795 = vpack.c.b16 %v3155, %v3147
        %v3796 = vpack.c.b16 %v3156, %v3148
        %v3797 = vpack.c.b16 %v3157, %v3149
        %v3798 = vpack.c.b16 %v3158, %v3150
        %v3799 = vpack.c.b16 %v3159, %v3151
        %v3800 = vpack.c.b16 %v3160, %v3152
        %v3801 = vpack.c.b16 %v3161, %v3153
        %v3802 = vpack.c.b16 %v3162, %v3154
        %v3803 = vpack.c.b16 %v3171, %v3163
        %v3804 = vpack.c.b16 %v3172, %v3164
        %v3805 = vpack.c.b16 %v3173, %v3165
        %v3806 = vpack.c.b16 %v3174, %v3166
        %v3807 = vpack.c.b16 %v3175, %v3167
        %v3808 = vpack.c.b16 %v3176, %v3168
        %v3809 = vpack.c.b16 %v3177, %v3169
        %v3810 = vpack.c.b16 %v3178, %v3170
        %v3811 = vpack.c.b16 %v3187, %v3179
        %v3812 = vpack.c.b16 %v3188, %v3180
        %v3813 = vpack.c.b16 %v3189, %v3181
        %v3814 = vpack.c.b16 %v3190, %v3182
        %v3815 = vpack.c.b16 %v3191, %v3183
        %v3816 = vpack.c.b16 %v3192, %v3184
        %v3817 = vpack.c.b16 %v3193, %v3185
        %v3818 = vpack.c.b16 %v3194, %v3186
        %v3819 = vpack.c.b16 %v3203, %v3195
        %v3820 = vpack.c.b16 %v3204, %v3196
        %v3821 = vpack.c.b16 %v3205, %v3197
        %v3822 = vpack.c.b16 %v3206, %v3198
        %v3823 = vpack.c.b16 %v3207, %v3199
        %v3824 = vpack.c.b16 %v3208, %v3200
        %v3825 = vpack.c.b16 %v3209, %v3201
        %v3826 = vpack.c.b16 %v3210, %v3202
        %v3827 = vpack.c.b16 %v3219, %v3211
        %v3828 = vpack.c.b16 %v3220, %v3212
        %v3829 = vpack.c.b16 %v3221, %v3213
        %v3830 = vpack.c.b16 %v3222, %v3214
        %v3831 = vpack.c.b16 %v3223, %v3215
        %v3832 = vpack.c.b16 %v3224, %v3216
        %v3833 = vpack.c.b16 %v3225, %v3217
        %v3834 = vpack.c.b16 %v3226, %v3218
        %v3835 = vpack.c.b16 %v3235, %v3227
        %v3836 = vpack.c.b16 %v3236, %v3228
        %v3837 = vpack.c.b16 %v3237, %v3229
        %v3838 = vpack.c.b16 %v3238, %v3230
        %v3839 = vpack.c.b16 %v3239, %v3231
        %v3840 = vpack.c.b16 %v3240, %v3232
        %v3841 = vpack.c.b16 %v3241, %v3233
        %v3842 = vpack.c.b16 %v3242, %v3234
        %v3843 = vpack.c.b16 %v3251, %v3243
        %v3844 = vpack.c.b16 %v3252, %v3244
        %v3845 = vpack.c.b16 %v3253, %v3245
        %v3846 = vpack.c.b16 %v3254, %v3246
        %v3847 = vpack.c.b16 %v3255, %v3247
        %v3848 = vpack.c.b16 %v3256, %v3248
        %v3849 = vpack.c.b16 %v3257, %v3249
        %v3850 = vpack.c.b16 %v3258, %v3250
        %v3851 = vpack.c.b16 %v3267, %v3259
        %v3852 = vpack.c.b16 %v3268, %v3260
        %v3853 = vpack.c.b16 %v3269, %v3261
        %v3854 = vpack.c.b16 %v3270, %v3262
        %v3855 = vpack.c.b16 %v3271, %v3263
        %v3856 = vpack.c.b16 %v3272, %v3264
        %v3857 = vpack.c.b16 %v3273, %v3265
        %v3858 = vpack.c.b16 %v3274, %v3266
        %v3859 = vpack.c.b16 %v3283, %v3275
        %v3860 = vpack.c.b16 %v3284, %v3276
        %v3861 = vpack.c.b16 %v3285, %v3277
        %v3862 = vpack.c.b16 %v3286, %v3278
        %v3863 = vpack.c.b16 %v3287, %v3279
        %v3864 = vpack.c.b16 %v3288, %v3280
        %v3865 = vpack.c.b16 %v3289, %v3281
        %v3866 = vpack.c.b16 %v3290, %v3282
        %v3867 = vpack.c.b16 %v3299, %v3291
        %v3868 = vpack.c.b16 %v3300, %v3292
        %v3869 = vpack.c.b16 %v3301, %v3293
        %v3870 = vpack.c.b16 %v3302, %v3294
        %v3871 = vpack.c.b16 %v3303, %v3295
        %v3872 = vpack.c.b16 %v3304, %v3296
        %v3873 = vpack.c.b16 %v3305, %v3297
        %v3874 = vpack.c.b16 %v3306, %v3298
        %v3875 = vpack.c.b16 %v3315, %v3307
        %v3876 = vpack.c.b16 %v3316, %v3308
        %v3877 = vpack.c.b16 %v3317, %v3309
        %v3878 = vpack.c.b16 %v3318, %v3310
        %v3879 = vpack.c.b16 %v3319, %v3311
        %v3880 = vpack.c.b16 %v3320, %v3312
        %v3881 = vpack.c.b16 %v3321, %v3313
        %v3882 = vpack.c.b16 %v3322, %v3314
        %v3883 = vpack.c.b16 %v3331, %v3323
        %v3884 = vpack.c.b16 %v3332, %v3324
        %v3885 = vpack.c.b16 %v3333, %v3325
        %v3886 = vpack.c.b16 %v3334, %v3326
        %v3887 = vpack.c.b16 %v3335, %v3327
        %v3888 = vpack.c.b16 %v3336, %v3328
        %v3889 = vpack.c.b16 %v3337, %v3329
        %v3890 = vpack.c.b16 %v3338, %v3330
        %v3891 = vpack.c.b16 %v3347, %v3339
        %v3892 = vpack.c.b16 %v3348, %v3340
        %v3893 = vpack.c.b16 %v3349, %v3341
        %v3894 = vpack.c.b16 %v3350, %v3342
        %v3895 = vpack.c.b16 %v3351, %v3343
        %v3896 = vpack.c.b16 %v3352, %v3344
        %v3897 = vpack.c.b16 %v3353, %v3345
        %v3898 = vpack.c.b16 %v3354, %v3346
        %v3899 = vpack.c.b16 %v3363, %v3355
        %v3900 = vpack.c.b16 %v3364, %v3356
        %v3901 = vpack.c.b16 %v3365, %v3357
        %v3902 = vpack.c.b16 %v3366, %v3358
        %v3903 = vpack.c.b16 %v3367, %v3359
        %v3904 = vpack.c.b16 %v3368, %v3360
        %v3905 = vpack.c.b16 %v3369, %v3361
        %v3906 = vpack.c.b16 %v3370, %v3362
        %v3907 = vpack.c.b16 %v3379, %v3371
        %v3908 = vpack.c.b16 %v3380, %v3372
        %v3909 = vpack.c.b16 %v3381, %v3373
        %v3910 = vpack.c.b16 %v3382, %v3374
        %v3911 = vpack.c.b16 %v3383, %v3375
        %v3912 = vpack.c.b16 %v3384, %v3376
        %v3913 = vpack.c.b16 %v3385, %v3377
        %v3914 = vpack.c.b16 %v3386, %v3378
        %v3915 = vpack.c.b16 %v3395, %v3387
        %v3916 = vpack.c.b16 %v3396, %v3388
        %v3917 = vpack.c.b16 %v3397, %v3389
        %v3918 = vpack.c.b16 %v3398, %v3390
        %v3919 = vpack.c.b16 %v3399, %v3391
        %v3920 = vpack.c.b16 %v3400, %v3392
        %v3921 = vpack.c.b16 %v3401, %v3393
        %v3922 = vpack.c.b16 %v3402, %v3394
        %v3923 = vpack.c.b16 %v3411, %v3403
        %v3924 = vpack.c.b16 %v3412, %v3404
        %v3925 = vpack.c.b16 %v3413, %v3405
        %v3926 = vpack.c.b16 %v3414, %v3406
        %v3927 = vpack.c.b16 %v3415, %v3407
        %v3928 = vpack.c.b16 %v3416, %v3408
        %v3929 = vpack.c.b16 %v3417, %v3409
        %v3930 = vpack.c.b16 %v3418, %v3410
        %4443 = vmatpush.bf16.msra.mxu0 %v3475
        %4444 = vmatpush.bf16.msra.mxu0 %v3467
        %4445 = vmatpush.bf16.msra.mxu0 %v3459
        %4446 = vmatpush.bf16.msra.mxu0 %v3451
        %4447 = vmatpush.bf16.msra.mxu0 %v3443
        %4448 = vmatpush.bf16.msra.mxu0 %v3435
        %4449 = vmatpush.bf16.msra.mxu0 %v3427
        %4450 = vmatpush.bf16.msra.mxu0 %v3419
        %4451 = vmatmul.bf16.gmra.mxu0 %v1345
        %v4452 = vpop.f32.mrf.mxu0
        %v4453 = vadd.f32 %v1867, %v4452
        %v4454 = vpop.f32.mrf.mxu0
        %v4455 = vadd.f32 %v1867, %v4454
        %4456 = vdwg.mxu0
        %4457 = vmatpush.bf16.msra.mxu0 %v3539
        %4458 = vmatpush.bf16.msra.mxu0 %v3531
        %4459 = vmatpush.bf16.msra.mxu0 %v3523
        %4460 = vmatpush.bf16.msra.mxu0 %v3515
        %4461 = vmatpush.bf16.msra.mxu0 %v3507
        %4462 = vmatpush.bf16.msra.mxu0 %v3499
        %4463 = vmatpush.bf16.msra.mxu0 %v3491
        %4464 = vmatpush.bf16.msra.mxu0 %v3483
        %4465 = vmatmul.bf16.gmra.mxu0 %v1346
        %v4466 = vpop.f32.mrf.mxu0
        %v4467 = vadd.f32 %v4453, %v4466
        %v4468 = vpop.f32.mrf.mxu0
        %v4469 = vadd.f32 %v4455, %v4468
        %4470 = vdwg.mxu0
        %4471 = vmatpush.bf16.msra.mxu0 %v3603
        %4472 = vmatpush.bf16.msra.mxu0 %v3595
        %4473 = vmatpush.bf16.msra.mxu0 %v3587
        %4474 = vmatpush.bf16.msra.mxu0 %v3579
        %4475 = vmatpush.bf16.msra.mxu0 %v3571
        %4476 = vmatpush.bf16.msra.mxu0 %v3563
        %4477 = vmatpush.bf16.msra.mxu0 %v3555
        %4478 = vmatpush.bf16.msra.mxu0 %v3547
        %4479 = vmatmul.bf16.gmra.mxu0 %v1347
        %v4480 = vpop.f32.mrf.mxu0
        %v4481 = vadd.f32 %v4467, %v4480
        %v4482 = vpop.f32.mrf.mxu0
        %v4483 = vadd.f32 %v4469, %v4482
        %4484 = vdwg.mxu0
        %4485 = vmatpush.bf16.msra.mxu0 %v3667
        %4486 = vmatpush.bf16.msra.mxu0 %v3659
        %4487 = vmatpush.bf16.msra.mxu0 %v3651
        %4488 = vmatpush.bf16.msra.mxu0 %v3643
        %4489 = vmatpush.bf16.msra.mxu0 %v3635
        %4490 = vmatpush.bf16.msra.mxu0 %v3627
        %4491 = vmatpush.bf16.msra.mxu0 %v3619
        %4492 = vmatpush.bf16.msra.mxu0 %v3611
        %4493 = vmatmul.bf16.gmra.mxu0 %v1348
        %v4494 = vpop.f32.mrf.mxu0
        %v4495 = vadd.f32 %v4481, %v4494
        %v4496 = vpop.f32.mrf.mxu0
        %v4497 = vadd.f32 %v4483, %v4496
        %4498 = vdwg.mxu0
        %4499 = vmatpush.bf16.msra.mxu0 %v3731
        %4500 = vmatpush.bf16.msra.mxu0 %v3723
        %4501 = vmatpush.bf16.msra.mxu0 %v3715
        %4502 = vmatpush.bf16.msra.mxu0 %v3707
        %4503 = vmatpush.bf16.msra.mxu0 %v3699
        %4504 = vmatpush.bf16.msra.mxu0 %v3691
        %4505 = vmatpush.bf16.msra.mxu0 %v3683
        %4506 = vmatpush.bf16.msra.mxu0 %v3675
        %4507 = vmatmul.bf16.gmra.mxu0 %v1349
        %v4508 = vpop.f32.mrf.mxu0
        %v4509 = vadd.f32 %v4495, %v4508
        %v4510 = vpop.f32.mrf.mxu0
        %v4511 = vadd.f32 %v4497, %v4510
        %4512 = vdwg.mxu0
        %4513 = vmatpush.bf16.msra.mxu0 %v3795
        %4514 = vmatpush.bf16.msra.mxu0 %v3787
        %4515 = vmatpush.bf16.msra.mxu0 %v3779
        %4516 = vmatpush.bf16.msra.mxu0 %v3771
        %4517 = vmatpush.bf16.msra.mxu0 %v3763
        %4518 = vmatpush.bf16.msra.mxu0 %v3755
        %4519 = vmatpush.bf16.msra.mxu0 %v3747
        %4520 = vmatpush.bf16.msra.mxu0 %v3739
        %4521 = vmatmul.bf16.gmra.mxu0 %v1350
        %v4522 = vpop.f32.mrf.mxu0
        %v4523 = vadd.f32 %v4509, %v4522
        %v4524 = vpop.f32.mrf.mxu0
        %v4525 = vadd.f32 %v4511, %v4524
        %4526 = vdwg.mxu0
        %4527 = vmatpush.bf16.msra.mxu0 %v3859
        %4528 = vmatpush.bf16.msra.mxu0 %v3851
        %4529 = vmatpush.bf16.msra.mxu0 %v3843
        %4530 = vmatpush.bf16.msra.mxu0 %v3835
        %4531 = vmatpush.bf16.msra.mxu0 %v3827
        %4532 = vmatpush.bf16.msra.mxu0 %v3819
        %4533 = vmatpush.bf16.msra.mxu0 %v3811
        %4534 = vmatpush.bf16.msra.mxu0 %v3803
        %4535 = vmatmul.bf16.gmra.mxu0 %v1351
        %v4536 = vpop.f32.mrf.mxu0
        %v4537 = vadd.f32 %v4523, %v4536
        %v4538 = vpop.f32.mrf.mxu0
        %v4539 = vadd.f32 %v4525, %v4538
        %4540 = vdwg.mxu0
        %4541 = vmatpush.bf16.msra.mxu0 %v3923
        %4542 = vmatpush.bf16.msra.mxu0 %v3915
        %4543 = vmatpush.bf16.msra.mxu0 %v3907
        %4544 = vmatpush.bf16.msra.mxu0 %v3899
        %4545 = vmatpush.bf16.msra.mxu0 %v3891
        %4546 = vmatpush.bf16.msra.mxu0 %v3883
        %4547 = vmatpush.bf16.msra.mxu0 %v3875
        %4548 = vmatpush.bf16.msra.mxu0 %v3867
        %4549 = vmatmul.bf16.gmra.mxu0 %v1352
        %v4550 = vpop.f32.mrf.mxu0
        %v4551 = vadd.f32 %v4537, %v4550
        %v4552 = vpop.f32.mrf.mxu0
        %v4553 = vadd.f32 %v4539, %v4552
        %4554 = vdwg.mxu0
        %4555 = vmatpush.bf16.msra.mxu0 %v3476
        %4556 = vmatpush.bf16.msra.mxu0 %v3468
        %4557 = vmatpush.bf16.msra.mxu0 %v3460
        %4558 = vmatpush.bf16.msra.mxu0 %v3452
        %4559 = vmatpush.bf16.msra.mxu0 %v3444
        %4560 = vmatpush.bf16.msra.mxu0 %v3436
        %4561 = vmatpush.bf16.msra.mxu0 %v3428
        %4562 = vmatpush.bf16.msra.mxu0 %v3420
        %4563 = vmatmul.bf16.gmra.mxu0 %v1345
        %v4564 = vpop.f32.mrf.mxu0
        %v4565 = vadd.f32 %v1868, %v4564
        %v4566 = vpop.f32.mrf.mxu0
        %v4567 = vadd.f32 %v1868, %v4566
        %4568 = vdwg.mxu0
        %4569 = vmatpush.bf16.msra.mxu0 %v3540
        %4570 = vmatpush.bf16.msra.mxu0 %v3532
        %4571 = vmatpush.bf16.msra.mxu0 %v3524
        %4572 = vmatpush.bf16.msra.mxu0 %v3516
        %4573 = vmatpush.bf16.msra.mxu0 %v3508
        %4574 = vmatpush.bf16.msra.mxu0 %v3500
        %4575 = vmatpush.bf16.msra.mxu0 %v3492
        %4576 = vmatpush.bf16.msra.mxu0 %v3484
        %4577 = vmatmul.bf16.gmra.mxu0 %v1346
        %v4578 = vpop.f32.mrf.mxu0
        %v4579 = vadd.f32 %v4565, %v4578
        %v4580 = vpop.f32.mrf.mxu0
        %v4581 = vadd.f32 %v4567, %v4580
        %4582 = vdwg.mxu0
        %4583 = vmatpush.bf16.msra.mxu0 %v3604
        %4584 = vmatpush.bf16.msra.mxu0 %v3596
        %4585 = vmatpush.bf16.msra.mxu0 %v3588
        %4586 = vmatpush.bf16.msra.mxu0 %v3580
        %4587 = vmatpush.bf16.msra.mxu0 %v3572
        %4588 = vmatpush.bf16.msra.mxu0 %v3564
        %4589 = vmatpush.bf16.msra.mxu0 %v3556
        %4590 = vmatpush.bf16.msra.mxu0 %v3548
        %4591 = vmatmul.bf16.gmra.mxu0 %v1347
        %v4592 = vpop.f32.mrf.mxu0
        %v4593 = vadd.f32 %v4579, %v4592
        %v4594 = vpop.f32.mrf.mxu0
        %v4595 = vadd.f32 %v4581, %v4594
        %4596 = vdwg.mxu0
        %4597 = vmatpush.bf16.msra.mxu0 %v3668
        %4598 = vmatpush.bf16.msra.mxu0 %v3660
        %4599 = vmatpush.bf16.msra.mxu0 %v3652
        %4600 = vmatpush.bf16.msra.mxu0 %v3644
        %4601 = vmatpush.bf16.msra.mxu0 %v3636
        %4602 = vmatpush.bf16.msra.mxu0 %v3628
        %4603 = vmatpush.bf16.msra.mxu0 %v3620
        %4604 = vmatpush.bf16.msra.mxu0 %v3612
        %4605 = vmatmul.bf16.gmra.mxu0 %v1348
        %v4606 = vpop.f32.mrf.mxu0
        %v4607 = vadd.f32 %v4593, %v4606
        %v4608 = vpop.f32.mrf.mxu0
        %v4609 = vadd.f32 %v4595, %v4608
        %4610 = vdwg.mxu0
        %4611 = vmatpush.bf16.msra.mxu0 %v3732
        %4612 = vmatpush.bf16.msra.mxu0 %v3724
        %4613 = vmatpush.bf16.msra.mxu0 %v3716
        %4614 = vmatpush.bf16.msra.mxu0 %v3708
        %4615 = vmatpush.bf16.msra.mxu0 %v3700
        %4616 = vmatpush.bf16.msra.mxu0 %v3692
        %4617 = vmatpush.bf16.msra.mxu0 %v3684
        %4618 = vmatpush.bf16.msra.mxu0 %v3676
        %4619 = vmatmul.bf16.gmra.mxu0 %v1349
        %v4620 = vpop.f32.mrf.mxu0
        %v4621 = vadd.f32 %v4607, %v4620
        %v4622 = vpop.f32.mrf.mxu0
        %v4623 = vadd.f32 %v4609, %v4622
        %4624 = vdwg.mxu0
        %4625 = vmatpush.bf16.msra.mxu0 %v3796
        %4626 = vmatpush.bf16.msra.mxu0 %v3788
        %4627 = vmatpush.bf16.msra.mxu0 %v3780
        %4628 = vmatpush.bf16.msra.mxu0 %v3772
        %4629 = vmatpush.bf16.msra.mxu0 %v3764
        %4630 = vmatpush.bf16.msra.mxu0 %v3756
        %4631 = vmatpush.bf16.msra.mxu0 %v3748
        %4632 = vmatpush.bf16.msra.mxu0 %v3740
        %4633 = vmatmul.bf16.gmra.mxu0 %v1350
        %v4634 = vpop.f32.mrf.mxu0
        %v4635 = vadd.f32 %v4621, %v4634
        %v4636 = vpop.f32.mrf.mxu0
        %v4637 = vadd.f32 %v4623, %v4636
        %4638 = vdwg.mxu0
        %4639 = vmatpush.bf16.msra.mxu0 %v3860
        %4640 = vmatpush.bf16.msra.mxu0 %v3852
        %4641 = vmatpush.bf16.msra.mxu0 %v3844
        %4642 = vmatpush.bf16.msra.mxu0 %v3836
        %4643 = vmatpush.bf16.msra.mxu0 %v3828
        %4644 = vmatpush.bf16.msra.mxu0 %v3820
        %4645 = vmatpush.bf16.msra.mxu0 %v3812
        %4646 = vmatpush.bf16.msra.mxu0 %v3804
        %4647 = vmatmul.bf16.gmra.mxu0 %v1351
        %v4648 = vpop.f32.mrf.mxu0
        %v4649 = vadd.f32 %v4635, %v4648
        %v4650 = vpop.f32.mrf.mxu0
        %v4651 = vadd.f32 %v4637, %v4650
        %4652 = vdwg.mxu0
        %4653 = vmatpush.bf16.msra.mxu0 %v3924
        %4654 = vmatpush.bf16.msra.mxu0 %v3916
        %4655 = vmatpush.bf16.msra.mxu0 %v3908
        %4656 = vmatpush.bf16.msra.mxu0 %v3900
        %4657 = vmatpush.bf16.msra.mxu0 %v3892
        %4658 = vmatpush.bf16.msra.mxu0 %v3884
        %4659 = vmatpush.bf16.msra.mxu0 %v3876
        %4660 = vmatpush.bf16.msra.mxu0 %v3868
        %4661 = vmatmul.bf16.gmra.mxu0 %v1352
        %v4662 = vpop.f32.mrf.mxu0
        %v4663 = vadd.f32 %v4649, %v4662
        %v4664 = vpop.f32.mrf.mxu0
        %v4665 = vadd.f32 %v4651, %v4664
        %4666 = vdwg.mxu0
        %4667 = vmatpush.bf16.msra.mxu0 %v3477
        %4668 = vmatpush.bf16.msra.mxu0 %v3469
        %4669 = vmatpush.bf16.msra.mxu0 %v3461
        %4670 = vmatpush.bf16.msra.mxu0 %v3453
        %4671 = vmatpush.bf16.msra.mxu0 %v3445
        %4672 = vmatpush.bf16.msra.mxu0 %v3437
        %4673 = vmatpush.bf16.msra.mxu0 %v3429
        %4674 = vmatpush.bf16.msra.mxu0 %v3421
        %4675 = vmatmul.bf16.gmra.mxu0 %v1345
        %v4676 = vpop.f32.mrf.mxu0
        %v4677 = vadd.f32 %v1869, %v4676
        %v4678 = vpop.f32.mrf.mxu0
        %v4679 = vadd.f32 %v1869, %v4678
        %4680 = vdwg.mxu0
        %4681 = vmatpush.bf16.msra.mxu0 %v3541
        %4682 = vmatpush.bf16.msra.mxu0 %v3533
        %4683 = vmatpush.bf16.msra.mxu0 %v3525
        %4684 = vmatpush.bf16.msra.mxu0 %v3517
        %4685 = vmatpush.bf16.msra.mxu0 %v3509
        %4686 = vmatpush.bf16.msra.mxu0 %v3501
        %4687 = vmatpush.bf16.msra.mxu0 %v3493
        %4688 = vmatpush.bf16.msra.mxu0 %v3485
        %4689 = vmatmul.bf16.gmra.mxu0 %v1346
        %v4690 = vpop.f32.mrf.mxu0
        %v4691 = vadd.f32 %v4677, %v4690
        %v4692 = vpop.f32.mrf.mxu0
        %v4693 = vadd.f32 %v4679, %v4692
        %4694 = vdwg.mxu0
        %4695 = vmatpush.bf16.msra.mxu0 %v3605
        %4696 = vmatpush.bf16.msra.mxu0 %v3597
        %4697 = vmatpush.bf16.msra.mxu0 %v3589
        %4698 = vmatpush.bf16.msra.mxu0 %v3581
        %4699 = vmatpush.bf16.msra.mxu0 %v3573
        %4700 = vmatpush.bf16.msra.mxu0 %v3565
        %4701 = vmatpush.bf16.msra.mxu0 %v3557
        %4702 = vmatpush.bf16.msra.mxu0 %v3549
        %4703 = vmatmul.bf16.gmra.mxu0 %v1347
        %v4704 = vpop.f32.mrf.mxu0
        %v4705 = vadd.f32 %v4691, %v4704
        %v4706 = vpop.f32.mrf.mxu0
        %v4707 = vadd.f32 %v4693, %v4706
        %4708 = vdwg.mxu0
        %4709 = vmatpush.bf16.msra.mxu0 %v3669
        %4710 = vmatpush.bf16.msra.mxu0 %v3661
        %4711 = vmatpush.bf16.msra.mxu0 %v3653
        %4712 = vmatpush.bf16.msra.mxu0 %v3645
        %4713 = vmatpush.bf16.msra.mxu0 %v3637
        %4714 = vmatpush.bf16.msra.mxu0 %v3629
        %4715 = vmatpush.bf16.msra.mxu0 %v3621
        %4716 = vmatpush.bf16.msra.mxu0 %v3613
        %4717 = vmatmul.bf16.gmra.mxu0 %v1348
        %v4718 = vpop.f32.mrf.mxu0
        %v4719 = vadd.f32 %v4705, %v4718
        %v4720 = vpop.f32.mrf.mxu0
        %v4721 = vadd.f32 %v4707, %v4720
        %4722 = vdwg.mxu0
        %4723 = vmatpush.bf16.msra.mxu0 %v3733
        %4724 = vmatpush.bf16.msra.mxu0 %v3725
        %4725 = vmatpush.bf16.msra.mxu0 %v3717
        %4726 = vmatpush.bf16.msra.mxu0 %v3709
        %4727 = vmatpush.bf16.msra.mxu0 %v3701
        %4728 = vmatpush.bf16.msra.mxu0 %v3693
        %4729 = vmatpush.bf16.msra.mxu0 %v3685
        %4730 = vmatpush.bf16.msra.mxu0 %v3677
        %4731 = vmatmul.bf16.gmra.mxu0 %v1349
        %v4732 = vpop.f32.mrf.mxu0
        %v4733 = vadd.f32 %v4719, %v4732
        %v4734 = vpop.f32.mrf.mxu0
        %v4735 = vadd.f32 %v4721, %v4734
        %4736 = vdwg.mxu0
        %4737 = vmatpush.bf16.msra.mxu0 %v3797
        %4738 = vmatpush.bf16.msra.mxu0 %v3789
        %4739 = vmatpush.bf16.msra.mxu0 %v3781
        %4740 = vmatpush.bf16.msra.mxu0 %v3773
        %4741 = vmatpush.bf16.msra.mxu0 %v3765
        %4742 = vmatpush.bf16.msra.mxu0 %v3757
        %4743 = vmatpush.bf16.msra.mxu0 %v3749
        %4744 = vmatpush.bf16.msra.mxu0 %v3741
        %4745 = vmatmul.bf16.gmra.mxu0 %v1350
        %v4746 = vpop.f32.mrf.mxu0
        %v4747 = vadd.f32 %v4733, %v4746
        %v4748 = vpop.f32.mrf.mxu0
        %v4749 = vadd.f32 %v4735, %v4748
        %4750 = vdwg.mxu0
        %4751 = vmatpush.bf16.msra.mxu0 %v3861
        %4752 = vmatpush.bf16.msra.mxu0 %v3853
        %4753 = vmatpush.bf16.msra.mxu0 %v3845
        %4754 = vmatpush.bf16.msra.mxu0 %v3837
        %4755 = vmatpush.bf16.msra.mxu0 %v3829
        %4756 = vmatpush.bf16.msra.mxu0 %v3821
        %4757 = vmatpush.bf16.msra.mxu0 %v3813
        %4758 = vmatpush.bf16.msra.mxu0 %v3805
        %4759 = vmatmul.bf16.gmra.mxu0 %v1351
        %v4760 = vpop.f32.mrf.mxu0
        %v4761 = vadd.f32 %v4747, %v4760
        %v4762 = vpop.f32.mrf.mxu0
        %v4763 = vadd.f32 %v4749, %v4762
        %4764 = vdwg.mxu0
        %4765 = vmatpush.bf16.msra.mxu0 %v3925
        %4766 = vmatpush.bf16.msra.mxu0 %v3917
        %4767 = vmatpush.bf16.msra.mxu0 %v3909
        %4768 = vmatpush.bf16.msra.mxu0 %v3901
        %4769 = vmatpush.bf16.msra.mxu0 %v3893
        %4770 = vmatpush.bf16.msra.mxu0 %v3885
        %4771 = vmatpush.bf16.msra.mxu0 %v3877
        %4772 = vmatpush.bf16.msra.mxu0 %v3869
        %4773 = vmatmul.bf16.gmra.mxu0 %v1352
        %v4774 = vpop.f32.mrf.mxu0
        %v4775 = vadd.f32 %v4761, %v4774
        %v4776 = vpop.f32.mrf.mxu0
        %v4777 = vadd.f32 %v4763, %v4776
        %4778 = vdwg.mxu0
        %4779 = vmatpush.bf16.msra.mxu0 %v3478
        %4780 = vmatpush.bf16.msra.mxu0 %v3470
        %4781 = vmatpush.bf16.msra.mxu0 %v3462
        %4782 = vmatpush.bf16.msra.mxu0 %v3454
        %4783 = vmatpush.bf16.msra.mxu0 %v3446
        %4784 = vmatpush.bf16.msra.mxu0 %v3438
        %4785 = vmatpush.bf16.msra.mxu0 %v3430
        %4786 = vmatpush.bf16.msra.mxu0 %v3422
        %4787 = vmatmul.bf16.gmra.mxu0 %v1345
        %v4788 = vpop.f32.mrf.mxu0
        %v4789 = vadd.f32 %v1870, %v4788
        %v4790 = vpop.f32.mrf.mxu0
        %v4791 = vadd.f32 %v1870, %v4790
        %4792 = vdwg.mxu0
        %4793 = vmatpush.bf16.msra.mxu0 %v3542
        %4794 = vmatpush.bf16.msra.mxu0 %v3534
        %4795 = vmatpush.bf16.msra.mxu0 %v3526
        %4796 = vmatpush.bf16.msra.mxu0 %v3518
        %4797 = vmatpush.bf16.msra.mxu0 %v3510
        %4798 = vmatpush.bf16.msra.mxu0 %v3502
        %4799 = vmatpush.bf16.msra.mxu0 %v3494
        %4800 = vmatpush.bf16.msra.mxu0 %v3486
        %4801 = vmatmul.bf16.gmra.mxu0 %v1346
        %v4802 = vpop.f32.mrf.mxu0
        %v4803 = vadd.f32 %v4789, %v4802
        %v4804 = vpop.f32.mrf.mxu0
        %v4805 = vadd.f32 %v4791, %v4804
        %4806 = vdwg.mxu0
        %4807 = vmatpush.bf16.msra.mxu0 %v3606
        %4808 = vmatpush.bf16.msra.mxu0 %v3598
        %4809 = vmatpush.bf16.msra.mxu0 %v3590
        %4810 = vmatpush.bf16.msra.mxu0 %v3582
        %4811 = vmatpush.bf16.msra.mxu0 %v3574
        %4812 = vmatpush.bf16.msra.mxu0 %v3566
        %4813 = vmatpush.bf16.msra.mxu0 %v3558
        %4814 = vmatpush.bf16.msra.mxu0 %v3550
        %4815 = vmatmul.bf16.gmra.mxu0 %v1347
        %v4816 = vpop.f32.mrf.mxu0
        %v4817 = vadd.f32 %v4803, %v4816
        %v4818 = vpop.f32.mrf.mxu0
        %v4819 = vadd.f32 %v4805, %v4818
        %4820 = vdwg.mxu0
        %4821 = vmatpush.bf16.msra.mxu0 %v3670
        %4822 = vmatpush.bf16.msra.mxu0 %v3662
        %4823 = vmatpush.bf16.msra.mxu0 %v3654
        %4824 = vmatpush.bf16.msra.mxu0 %v3646
        %4825 = vmatpush.bf16.msra.mxu0 %v3638
        %4826 = vmatpush.bf16.msra.mxu0 %v3630
        %4827 = vmatpush.bf16.msra.mxu0 %v3622
        %4828 = vmatpush.bf16.msra.mxu0 %v3614
        %4829 = vmatmul.bf16.gmra.mxu0 %v1348
        %v4830 = vpop.f32.mrf.mxu0
        %v4831 = vadd.f32 %v4817, %v4830
        %v4832 = vpop.f32.mrf.mxu0
        %v4833 = vadd.f32 %v4819, %v4832
        %4834 = vdwg.mxu0
        %4835 = vmatpush.bf16.msra.mxu0 %v3734
        %4836 = vmatpush.bf16.msra.mxu0 %v3726
        %4837 = vmatpush.bf16.msra.mxu0 %v3718
        %4838 = vmatpush.bf16.msra.mxu0 %v3710
        %4839 = vmatpush.bf16.msra.mxu0 %v3702
        %4840 = vmatpush.bf16.msra.mxu0 %v3694
        %4841 = vmatpush.bf16.msra.mxu0 %v3686
        %4842 = vmatpush.bf16.msra.mxu0 %v3678
        %4843 = vmatmul.bf16.gmra.mxu0 %v1349
        %v4844 = vpop.f32.mrf.mxu0
        %v4845 = vadd.f32 %v4831, %v4844
        %v4846 = vpop.f32.mrf.mxu0
        %v4847 = vadd.f32 %v4833, %v4846
        %4848 = vdwg.mxu0
        %4849 = vmatpush.bf16.msra.mxu0 %v3798
        %4850 = vmatpush.bf16.msra.mxu0 %v3790
        %4851 = vmatpush.bf16.msra.mxu0 %v3782
        %4852 = vmatpush.bf16.msra.mxu0 %v3774
        %4853 = vmatpush.bf16.msra.mxu0 %v3766
        %4854 = vmatpush.bf16.msra.mxu0 %v3758
        %4855 = vmatpush.bf16.msra.mxu0 %v3750
        %4856 = vmatpush.bf16.msra.mxu0 %v3742
        %4857 = vmatmul.bf16.gmra.mxu0 %v1350
        %v4858 = vpop.f32.mrf.mxu0
        %v4859 = vadd.f32 %v4845, %v4858
        %v4860 = vpop.f32.mrf.mxu0
        %v4861 = vadd.f32 %v4847, %v4860
        %4862 = vdwg.mxu0
        %4863 = vmatpush.bf16.msra.mxu0 %v3862
        %4864 = vmatpush.bf16.msra.mxu0 %v3854
        %4865 = vmatpush.bf16.msra.mxu0 %v3846
        %4866 = vmatpush.bf16.msra.mxu0 %v3838
        %4867 = vmatpush.bf16.msra.mxu0 %v3830
        %4868 = vmatpush.bf16.msra.mxu0 %v3822
        %4869 = vmatpush.bf16.msra.mxu0 %v3814
        %4870 = vmatpush.bf16.msra.mxu0 %v3806
        %4871 = vmatmul.bf16.gmra.mxu0 %v1351
        %v4872 = vpop.f32.mrf.mxu0
        %v4873 = vadd.f32 %v4859, %v4872
        %v4874 = vpop.f32.mrf.mxu0
        %v4875 = vadd.f32 %v4861, %v4874
        %4876 = vdwg.mxu0
        %4877 = vmatpush.bf16.msra.mxu0 %v3926
        %4878 = vmatpush.bf16.msra.mxu0 %v3918
        %4879 = vmatpush.bf16.msra.mxu0 %v3910
        %4880 = vmatpush.bf16.msra.mxu0 %v3902
        %4881 = vmatpush.bf16.msra.mxu0 %v3894
        %4882 = vmatpush.bf16.msra.mxu0 %v3886
        %4883 = vmatpush.bf16.msra.mxu0 %v3878
        %4884 = vmatpush.bf16.msra.mxu0 %v3870
        %4885 = vmatmul.bf16.gmra.mxu0 %v1352
        %v4886 = vpop.f32.mrf.mxu0
        %v4887 = vadd.f32 %v4873, %v4886
        %v4888 = vpop.f32.mrf.mxu0
        %v4889 = vadd.f32 %v4875, %v4888
        %4890 = vdwg.mxu0
        %4891 = vmatpush.bf16.msra.mxu0 %v3479
        %4892 = vmatpush.bf16.msra.mxu0 %v3471
        %4893 = vmatpush.bf16.msra.mxu0 %v3463
        %4894 = vmatpush.bf16.msra.mxu0 %v3455
        %4895 = vmatpush.bf16.msra.mxu0 %v3447
        %4896 = vmatpush.bf16.msra.mxu0 %v3439
        %4897 = vmatpush.bf16.msra.mxu0 %v3431
        %4898 = vmatpush.bf16.msra.mxu0 %v3423
        %4899 = vmatmul.bf16.gmra.mxu0 %v1345
        %v4900 = vpop.f32.mrf.mxu0
        %v4901 = vadd.f32 %v1871, %v4900
        %v4902 = vpop.f32.mrf.mxu0
        %v4903 = vadd.f32 %v1871, %v4902
        %4904 = vdwg.mxu0
        %4905 = vmatpush.bf16.msra.mxu0 %v3543
        %4906 = vmatpush.bf16.msra.mxu0 %v3535
        %4907 = vmatpush.bf16.msra.mxu0 %v3527
        %4908 = vmatpush.bf16.msra.mxu0 %v3519
        %4909 = vmatpush.bf16.msra.mxu0 %v3511
        %4910 = vmatpush.bf16.msra.mxu0 %v3503
        %4911 = vmatpush.bf16.msra.mxu0 %v3495
        %4912 = vmatpush.bf16.msra.mxu0 %v3487
        %4913 = vmatmul.bf16.gmra.mxu0 %v1346
        %v4914 = vpop.f32.mrf.mxu0
        %v4915 = vadd.f32 %v4901, %v4914
        %v4916 = vpop.f32.mrf.mxu0
        %v4917 = vadd.f32 %v4903, %v4916
        %4918 = vdwg.mxu0
        %4919 = vmatpush.bf16.msra.mxu0 %v3607
        %4920 = vmatpush.bf16.msra.mxu0 %v3599
        %4921 = vmatpush.bf16.msra.mxu0 %v3591
        %4922 = vmatpush.bf16.msra.mxu0 %v3583
        %4923 = vmatpush.bf16.msra.mxu0 %v3575
        %4924 = vmatpush.bf16.msra.mxu0 %v3567
        %4925 = vmatpush.bf16.msra.mxu0 %v3559
        %4926 = vmatpush.bf16.msra.mxu0 %v3551
        %4927 = vmatmul.bf16.gmra.mxu0 %v1347
        %v4928 = vpop.f32.mrf.mxu0
        %v4929 = vadd.f32 %v4915, %v4928
        %v4930 = vpop.f32.mrf.mxu0
        %v4931 = vadd.f32 %v4917, %v4930
        %4932 = vdwg.mxu0
        %4933 = vmatpush.bf16.msra.mxu0 %v3671
        %4934 = vmatpush.bf16.msra.mxu0 %v3663
        %4935 = vmatpush.bf16.msra.mxu0 %v3655
        %4936 = vmatpush.bf16.msra.mxu0 %v3647
        %4937 = vmatpush.bf16.msra.mxu0 %v3639
        %4938 = vmatpush.bf16.msra.mxu0 %v3631
        %4939 = vmatpush.bf16.msra.mxu0 %v3623
        %4940 = vmatpush.bf16.msra.mxu0 %v3615
        %4941 = vmatmul.bf16.gmra.mxu0 %v1348
        %v4942 = vpop.f32.mrf.mxu0
        %v4943 = vadd.f32 %v4929, %v4942
        %v4944 = vpop.f32.mrf.mxu0
        %v4945 = vadd.f32 %v4931, %v4944
        %4946 = vdwg.mxu0
        %4947 = vmatpush.bf16.msra.mxu0 %v3735
        %4948 = vmatpush.bf16.msra.mxu0 %v3727
        %4949 = vmatpush.bf16.msra.mxu0 %v3719
        %4950 = vmatpush.bf16.msra.mxu0 %v3711
        %4951 = vmatpush.bf16.msra.mxu0 %v3703
        %4952 = vmatpush.bf16.msra.mxu0 %v3695
        %4953 = vmatpush.bf16.msra.mxu0 %v3687
        %4954 = vmatpush.bf16.msra.mxu0 %v3679
        %4955 = vmatmul.bf16.gmra.mxu0 %v1349
        %v4956 = vpop.f32.mrf.mxu0
        %v4957 = vadd.f32 %v4943, %v4956
        %v4958 = vpop.f32.mrf.mxu0
        %v4959 = vadd.f32 %v4945, %v4958
        %4960 = vdwg.mxu0
        %4961 = vmatpush.bf16.msra.mxu0 %v3799
        %4962 = vmatpush.bf16.msra.mxu0 %v3791
        %4963 = vmatpush.bf16.msra.mxu0 %v3783
        %4964 = vmatpush.bf16.msra.mxu0 %v3775
        %4965 = vmatpush.bf16.msra.mxu0 %v3767
        %4966 = vmatpush.bf16.msra.mxu0 %v3759
        %4967 = vmatpush.bf16.msra.mxu0 %v3751
        %4968 = vmatpush.bf16.msra.mxu0 %v3743
        %4969 = vmatmul.bf16.gmra.mxu0 %v1350
        %v4970 = vpop.f32.mrf.mxu0
        %v4971 = vadd.f32 %v4957, %v4970
        %v4972 = vpop.f32.mrf.mxu0
        %v4973 = vadd.f32 %v4959, %v4972
        %4974 = vdwg.mxu0
        %4975 = vmatpush.bf16.msra.mxu0 %v3863
        %4976 = vmatpush.bf16.msra.mxu0 %v3855
        %4977 = vmatpush.bf16.msra.mxu0 %v3847
        %4978 = vmatpush.bf16.msra.mxu0 %v3839
        %4979 = vmatpush.bf16.msra.mxu0 %v3831
        %4980 = vmatpush.bf16.msra.mxu0 %v3823
        %4981 = vmatpush.bf16.msra.mxu0 %v3815
        %4982 = vmatpush.bf16.msra.mxu0 %v3807
        %4983 = vmatmul.bf16.gmra.mxu0 %v1351
        %v4984 = vpop.f32.mrf.mxu0
        %v4985 = vadd.f32 %v4971, %v4984
        %v4986 = vpop.f32.mrf.mxu0
        %v4987 = vadd.f32 %v4973, %v4986
        %4988 = vdwg.mxu0
        %4989 = vmatpush.bf16.msra.mxu0 %v3927
        %4990 = vmatpush.bf16.msra.mxu0 %v3919
        %4991 = vmatpush.bf16.msra.mxu0 %v3911
        %4992 = vmatpush.bf16.msra.mxu0 %v3903
        %4993 = vmatpush.bf16.msra.mxu0 %v3895
        %4994 = vmatpush.bf16.msra.mxu0 %v3887
        %4995 = vmatpush.bf16.msra.mxu0 %v3879
        %4996 = vmatpush.bf16.msra.mxu0 %v3871
        %4997 = vmatmul.bf16.gmra.mxu0 %v1352
        %v4998 = vpop.f32.mrf.mxu0
        %v4999 = vadd.f32 %v4985, %v4998
        %v5000 = vpop.f32.mrf.mxu0
        %v5001 = vadd.f32 %v4987, %v5000
        %5002 = vdwg.mxu0
        %5003 = vmatpush.bf16.msra.mxu0 %v3480
        %5004 = vmatpush.bf16.msra.mxu0 %v3472
        %5005 = vmatpush.bf16.msra.mxu0 %v3464
        %5006 = vmatpush.bf16.msra.mxu0 %v3456
        %5007 = vmatpush.bf16.msra.mxu0 %v3448
        %5008 = vmatpush.bf16.msra.mxu0 %v3440
        %5009 = vmatpush.bf16.msra.mxu0 %v3432
        %5010 = vmatpush.bf16.msra.mxu0 %v3424
        %5011 = vmatmul.bf16.gmra.mxu0 %v1345
        %v5012 = vpop.f32.mrf.mxu0
        %v5013 = vadd.f32 %v1872, %v5012
        %v5014 = vpop.f32.mrf.mxu0
        %v5015 = vadd.f32 %v1872, %v5014
        %5016 = vdwg.mxu0
        %5017 = vmatpush.bf16.msra.mxu0 %v3544
        %5018 = vmatpush.bf16.msra.mxu0 %v3536
        %5019 = vmatpush.bf16.msra.mxu0 %v3528
        %5020 = vmatpush.bf16.msra.mxu0 %v3520
        %5021 = vmatpush.bf16.msra.mxu0 %v3512
        %5022 = vmatpush.bf16.msra.mxu0 %v3504
        %5023 = vmatpush.bf16.msra.mxu0 %v3496
        %5024 = vmatpush.bf16.msra.mxu0 %v3488
        %5025 = vmatmul.bf16.gmra.mxu0 %v1346
        %v5026 = vpop.f32.mrf.mxu0
        %v5027 = vadd.f32 %v5013, %v5026
        %v5028 = vpop.f32.mrf.mxu0
        %v5029 = vadd.f32 %v5015, %v5028
        %5030 = vdwg.mxu0
        %5031 = vmatpush.bf16.msra.mxu0 %v3608
        %5032 = vmatpush.bf16.msra.mxu0 %v3600
        %5033 = vmatpush.bf16.msra.mxu0 %v3592
        %5034 = vmatpush.bf16.msra.mxu0 %v3584
        %5035 = vmatpush.bf16.msra.mxu0 %v3576
        %5036 = vmatpush.bf16.msra.mxu0 %v3568
        %5037 = vmatpush.bf16.msra.mxu0 %v3560
        %5038 = vmatpush.bf16.msra.mxu0 %v3552
        %5039 = vmatmul.bf16.gmra.mxu0 %v1347
        %v5040 = vpop.f32.mrf.mxu0
        %v5041 = vadd.f32 %v5027, %v5040
        %v5042 = vpop.f32.mrf.mxu0
        %v5043 = vadd.f32 %v5029, %v5042
        %5044 = vdwg.mxu0
        %5045 = vmatpush.bf16.msra.mxu0 %v3672
        %5046 = vmatpush.bf16.msra.mxu0 %v3664
        %5047 = vmatpush.bf16.msra.mxu0 %v3656
        %5048 = vmatpush.bf16.msra.mxu0 %v3648
        %5049 = vmatpush.bf16.msra.mxu0 %v3640
        %5050 = vmatpush.bf16.msra.mxu0 %v3632
        %5051 = vmatpush.bf16.msra.mxu0 %v3624
        %5052 = vmatpush.bf16.msra.mxu0 %v3616
        %5053 = vmatmul.bf16.gmra.mxu0 %v1348
        %v5054 = vpop.f32.mrf.mxu0
        %v5055 = vadd.f32 %v5041, %v5054
        %v5056 = vpop.f32.mrf.mxu0
        %v5057 = vadd.f32 %v5043, %v5056
        %5058 = vdwg.mxu0
        %5059 = vmatpush.bf16.msra.mxu0 %v3736
        %5060 = vmatpush.bf16.msra.mxu0 %v3728
        %5061 = vmatpush.bf16.msra.mxu0 %v3720
        %5062 = vmatpush.bf16.msra.mxu0 %v3712
        %5063 = vmatpush.bf16.msra.mxu0 %v3704
        %5064 = vmatpush.bf16.msra.mxu0 %v3696
        %5065 = vmatpush.bf16.msra.mxu0 %v3688
        %5066 = vmatpush.bf16.msra.mxu0 %v3680
        %5067 = vmatmul.bf16.gmra.mxu0 %v1349
        %v5068 = vpop.f32.mrf.mxu0
        %v5069 = vadd.f32 %v5055, %v5068
        %v5070 = vpop.f32.mrf.mxu0
        %v5071 = vadd.f32 %v5057, %v5070
        %5072 = vdwg.mxu0
        %5073 = vmatpush.bf16.msra.mxu0 %v3800
        %5074 = vmatpush.bf16.msra.mxu0 %v3792
        %5075 = vmatpush.bf16.msra.mxu0 %v3784
        %5076 = vmatpush.bf16.msra.mxu0 %v3776
        %5077 = vmatpush.bf16.msra.mxu0 %v3768
        %5078 = vmatpush.bf16.msra.mxu0 %v3760
        %5079 = vmatpush.bf16.msra.mxu0 %v3752
        %5080 = vmatpush.bf16.msra.mxu0 %v3744
        %5081 = vmatmul.bf16.gmra.mxu0 %v1350
        %v5082 = vpop.f32.mrf.mxu0
        %v5083 = vadd.f32 %v5069, %v5082
        %v5084 = vpop.f32.mrf.mxu0
        %v5085 = vadd.f32 %v5071, %v5084
        %5086 = vdwg.mxu0
        %5087 = vmatpush.bf16.msra.mxu0 %v3864
        %5088 = vmatpush.bf16.msra.mxu0 %v3856
        %5089 = vmatpush.bf16.msra.mxu0 %v3848
        %5090 = vmatpush.bf16.msra.mxu0 %v3840
        %5091 = vmatpush.bf16.msra.mxu0 %v3832
        %5092 = vmatpush.bf16.msra.mxu0 %v3824
        %5093 = vmatpush.bf16.msra.mxu0 %v3816
        %5094 = vmatpush.bf16.msra.mxu0 %v3808
        %5095 = vmatmul.bf16.gmra.mxu0 %v1351
        %v5096 = vpop.f32.mrf.mxu0
        %v5097 = vadd.f32 %v5083, %v5096
        %v5098 = vpop.f32.mrf.mxu0
        %v5099 = vadd.f32 %v5085, %v5098
        %5100 = vdwg.mxu0
        %5101 = vmatpush.bf16.msra.mxu0 %v3928
        %5102 = vmatpush.bf16.msra.mxu0 %v3920
        %5103 = vmatpush.bf16.msra.mxu0 %v3912
        %5104 = vmatpush.bf16.msra.mxu0 %v3904
        %5105 = vmatpush.bf16.msra.mxu0 %v3896
        %5106 = vmatpush.bf16.msra.mxu0 %v3888
        %5107 = vmatpush.bf16.msra.mxu0 %v3880
        %5108 = vmatpush.bf16.msra.mxu0 %v3872
        %5109 = vmatmul.bf16.gmra.mxu0 %v1352
        %v5110 = vpop.f32.mrf.mxu0
        %v5111 = vadd.f32 %v5097, %v5110
        %v5112 = vpop.f32.mrf.mxu0
        %v5113 = vadd.f32 %v5099, %v5112
        %5114 = vdwg.mxu0
        %5115 = vmatpush.bf16.msra.mxu0 %v3481
        %5116 = vmatpush.bf16.msra.mxu0 %v3473
        %5117 = vmatpush.bf16.msra.mxu0 %v3465
        %5118 = vmatpush.bf16.msra.mxu0 %v3457
        %5119 = vmatpush.bf16.msra.mxu0 %v3449
        %5120 = vmatpush.bf16.msra.mxu0 %v3441
        %5121 = vmatpush.bf16.msra.mxu0 %v3433
        %5122 = vmatpush.bf16.msra.mxu0 %v3425
        %5123 = vmatmul.bf16.gmra.mxu0 %v1345
        %v5124 = vpop.f32.mrf.mxu0
        %v5125 = vadd.f32 %v1873, %v5124
        %v5126 = vpop.f32.mrf.mxu0
        %v5127 = vadd.f32 %v1873, %v5126
        %5128 = vdwg.mxu0
        %5129 = vmatpush.bf16.msra.mxu0 %v3545
        %5130 = vmatpush.bf16.msra.mxu0 %v3537
        %5131 = vmatpush.bf16.msra.mxu0 %v3529
        %5132 = vmatpush.bf16.msra.mxu0 %v3521
        %5133 = vmatpush.bf16.msra.mxu0 %v3513
        %5134 = vmatpush.bf16.msra.mxu0 %v3505
        %5135 = vmatpush.bf16.msra.mxu0 %v3497
        %5136 = vmatpush.bf16.msra.mxu0 %v3489
        %5137 = vmatmul.bf16.gmra.mxu0 %v1346
        %v5138 = vpop.f32.mrf.mxu0
        %v5139 = vadd.f32 %v5125, %v5138
        %v5140 = vpop.f32.mrf.mxu0
        %v5141 = vadd.f32 %v5127, %v5140
        %5142 = vdwg.mxu0
        %5143 = vmatpush.bf16.msra.mxu0 %v3609
        %5144 = vmatpush.bf16.msra.mxu0 %v3601
        %5145 = vmatpush.bf16.msra.mxu0 %v3593
        %5146 = vmatpush.bf16.msra.mxu0 %v3585
        %5147 = vmatpush.bf16.msra.mxu0 %v3577
        %5148 = vmatpush.bf16.msra.mxu0 %v3569
        %5149 = vmatpush.bf16.msra.mxu0 %v3561
        %5150 = vmatpush.bf16.msra.mxu0 %v3553
        %5151 = vmatmul.bf16.gmra.mxu0 %v1347
        %v5152 = vpop.f32.mrf.mxu0
        %v5153 = vadd.f32 %v5139, %v5152
        %v5154 = vpop.f32.mrf.mxu0
        %v5155 = vadd.f32 %v5141, %v5154
        %5156 = vdwg.mxu0
        %5157 = vmatpush.bf16.msra.mxu0 %v3673
        %5158 = vmatpush.bf16.msra.mxu0 %v3665
        %5159 = vmatpush.bf16.msra.mxu0 %v3657
        %5160 = vmatpush.bf16.msra.mxu0 %v3649
        %5161 = vmatpush.bf16.msra.mxu0 %v3641
        %5162 = vmatpush.bf16.msra.mxu0 %v3633
        %5163 = vmatpush.bf16.msra.mxu0 %v3625
        %5164 = vmatpush.bf16.msra.mxu0 %v3617
        %5165 = vmatmul.bf16.gmra.mxu0 %v1348
        %v5166 = vpop.f32.mrf.mxu0
        %v5167 = vadd.f32 %v5153, %v5166
        %v5168 = vpop.f32.mrf.mxu0
        %v5169 = vadd.f32 %v5155, %v5168
        %5170 = vdwg.mxu0
        %5171 = vmatpush.bf16.msra.mxu0 %v3737
        %5172 = vmatpush.bf16.msra.mxu0 %v3729
        %5173 = vmatpush.bf16.msra.mxu0 %v3721
        %5174 = vmatpush.bf16.msra.mxu0 %v3713
        %5175 = vmatpush.bf16.msra.mxu0 %v3705
        %5176 = vmatpush.bf16.msra.mxu0 %v3697
        %5177 = vmatpush.bf16.msra.mxu0 %v3689
        %5178 = vmatpush.bf16.msra.mxu0 %v3681
        %5179 = vmatmul.bf16.gmra.mxu0 %v1349
        %v5180 = vpop.f32.mrf.mxu0
        %v5181 = vadd.f32 %v5167, %v5180
        %v5182 = vpop.f32.mrf.mxu0
        %v5183 = vadd.f32 %v5169, %v5182
        %5184 = vdwg.mxu0
        %5185 = vmatpush.bf16.msra.mxu0 %v3801
        %5186 = vmatpush.bf16.msra.mxu0 %v3793
        %5187 = vmatpush.bf16.msra.mxu0 %v3785
        %5188 = vmatpush.bf16.msra.mxu0 %v3777
        %5189 = vmatpush.bf16.msra.mxu0 %v3769
        %5190 = vmatpush.bf16.msra.mxu0 %v3761
        %5191 = vmatpush.bf16.msra.mxu0 %v3753
        %5192 = vmatpush.bf16.msra.mxu0 %v3745
        %5193 = vmatmul.bf16.gmra.mxu0 %v1350
        %v5194 = vpop.f32.mrf.mxu0
        %v5195 = vadd.f32 %v5181, %v5194
        %v5196 = vpop.f32.mrf.mxu0
        %v5197 = vadd.f32 %v5183, %v5196
        %5198 = vdwg.mxu0
        %5199 = vmatpush.bf16.msra.mxu0 %v3865
        %5200 = vmatpush.bf16.msra.mxu0 %v3857
        %5201 = vmatpush.bf16.msra.mxu0 %v3849
        %5202 = vmatpush.bf16.msra.mxu0 %v3841
        %5203 = vmatpush.bf16.msra.mxu0 %v3833
        %5204 = vmatpush.bf16.msra.mxu0 %v3825
        %5205 = vmatpush.bf16.msra.mxu0 %v3817
        %5206 = vmatpush.bf16.msra.mxu0 %v3809
        %5207 = vmatmul.bf16.gmra.mxu0 %v1351
        %v5208 = vpop.f32.mrf.mxu0
        %v5209 = vadd.f32 %v5195, %v5208
        %v5210 = vpop.f32.mrf.mxu0
        %v5211 = vadd.f32 %v5197, %v5210
        %5212 = vdwg.mxu0
        %5213 = vmatpush.bf16.msra.mxu0 %v3929
        %5214 = vmatpush.bf16.msra.mxu0 %v3921
        %5215 = vmatpush.bf16.msra.mxu0 %v3913
        %5216 = vmatpush.bf16.msra.mxu0 %v3905
        %5217 = vmatpush.bf16.msra.mxu0 %v3897
        %5218 = vmatpush.bf16.msra.mxu0 %v3889
        %5219 = vmatpush.bf16.msra.mxu0 %v3881
        %5220 = vmatpush.bf16.msra.mxu0 %v3873
        %5221 = vmatmul.bf16.gmra.mxu0 %v1352
        %v5222 = vpop.f32.mrf.mxu0
        %v5223 = vadd.f32 %v5209, %v5222
        %v5224 = vpop.f32.mrf.mxu0
        %v5225 = vadd.f32 %v5211, %v5224
        %5226 = vdwg.mxu0
        %5227 = vmatpush.bf16.msra.mxu0 %v3482
        %5228 = vmatpush.bf16.msra.mxu0 %v3474
        %5229 = vmatpush.bf16.msra.mxu0 %v3466
        %5230 = vmatpush.bf16.msra.mxu0 %v3458
        %5231 = vmatpush.bf16.msra.mxu0 %v3450
        %5232 = vmatpush.bf16.msra.mxu0 %v3442
        %5233 = vmatpush.bf16.msra.mxu0 %v3434
        %5234 = vmatpush.bf16.msra.mxu0 %v3426
        %5235 = vmatmul.bf16.gmra.mxu0 %v1345
        %v5236 = vpop.f32.mrf.mxu0
        %v5237 = vadd.f32 %v1874, %v5236
        %v5238 = vpop.f32.mrf.mxu0
        %v5239 = vadd.f32 %v1874, %v5238
        %5240 = vdwg.mxu0
        %5241 = vmatpush.bf16.msra.mxu0 %v3546
        %5242 = vmatpush.bf16.msra.mxu0 %v3538
        %5243 = vmatpush.bf16.msra.mxu0 %v3530
        %5244 = vmatpush.bf16.msra.mxu0 %v3522
        %5245 = vmatpush.bf16.msra.mxu0 %v3514
        %5246 = vmatpush.bf16.msra.mxu0 %v3506
        %5247 = vmatpush.bf16.msra.mxu0 %v3498
        %5248 = vmatpush.bf16.msra.mxu0 %v3490
        %5249 = vmatmul.bf16.gmra.mxu0 %v1346
        %v5250 = vpop.f32.mrf.mxu0
        %v5251 = vadd.f32 %v5237, %v5250
        %v5252 = vpop.f32.mrf.mxu0
        %v5253 = vadd.f32 %v5239, %v5252
        %5254 = vdwg.mxu0
        %5255 = vmatpush.bf16.msra.mxu0 %v3610
        %5256 = vmatpush.bf16.msra.mxu0 %v3602
        %5257 = vmatpush.bf16.msra.mxu0 %v3594
        %5258 = vmatpush.bf16.msra.mxu0 %v3586
        %5259 = vmatpush.bf16.msra.mxu0 %v3578
        %5260 = vmatpush.bf16.msra.mxu0 %v3570
        %5261 = vmatpush.bf16.msra.mxu0 %v3562
        %5262 = vmatpush.bf16.msra.mxu0 %v3554
        %5263 = vmatmul.bf16.gmra.mxu0 %v1347
        %v5264 = vpop.f32.mrf.mxu0
        %v5265 = vadd.f32 %v5251, %v5264
        %v5266 = vpop.f32.mrf.mxu0
        %v5267 = vadd.f32 %v5253, %v5266
        %5268 = vdwg.mxu0
        %5269 = vmatpush.bf16.msra.mxu0 %v3674
        %5270 = vmatpush.bf16.msra.mxu0 %v3666
        %5271 = vmatpush.bf16.msra.mxu0 %v3658
        %5272 = vmatpush.bf16.msra.mxu0 %v3650
        %5273 = vmatpush.bf16.msra.mxu0 %v3642
        %5274 = vmatpush.bf16.msra.mxu0 %v3634
        %5275 = vmatpush.bf16.msra.mxu0 %v3626
        %5276 = vmatpush.bf16.msra.mxu0 %v3618
        %5277 = vmatmul.bf16.gmra.mxu0 %v1348
        %v5278 = vpop.f32.mrf.mxu0
        %v5279 = vadd.f32 %v5265, %v5278
        %v5280 = vpop.f32.mrf.mxu0
        %v5281 = vadd.f32 %v5267, %v5280
        %5282 = vdwg.mxu0
        %5283 = vmatpush.bf16.msra.mxu0 %v3738
        %5284 = vmatpush.bf16.msra.mxu0 %v3730
        %5285 = vmatpush.bf16.msra.mxu0 %v3722
        %5286 = vmatpush.bf16.msra.mxu0 %v3714
        %5287 = vmatpush.bf16.msra.mxu0 %v3706
        %5288 = vmatpush.bf16.msra.mxu0 %v3698
        %5289 = vmatpush.bf16.msra.mxu0 %v3690
        %5290 = vmatpush.bf16.msra.mxu0 %v3682
        %5291 = vmatmul.bf16.gmra.mxu0 %v1349
        %v5292 = vpop.f32.mrf.mxu0
        %v5293 = vadd.f32 %v5279, %v5292
        %v5294 = vpop.f32.mrf.mxu0
        %v5295 = vadd.f32 %v5281, %v5294
        %5296 = vdwg.mxu0
        %5297 = vmatpush.bf16.msra.mxu0 %v3802
        %5298 = vmatpush.bf16.msra.mxu0 %v3794
        %5299 = vmatpush.bf16.msra.mxu0 %v3786
        %5300 = vmatpush.bf16.msra.mxu0 %v3778
        %5301 = vmatpush.bf16.msra.mxu0 %v3770
        %5302 = vmatpush.bf16.msra.mxu0 %v3762
        %5303 = vmatpush.bf16.msra.mxu0 %v3754
        %5304 = vmatpush.bf16.msra.mxu0 %v3746
        %5305 = vmatmul.bf16.gmra.mxu0 %v1350
        %v5306 = vpop.f32.mrf.mxu0
        %v5307 = vadd.f32 %v5293, %v5306
        %v5308 = vpop.f32.mrf.mxu0
        %v5309 = vadd.f32 %v5295, %v5308
        %5310 = vdwg.mxu0
        %5311 = vmatpush.bf16.msra.mxu0 %v3866
        %5312 = vmatpush.bf16.msra.mxu0 %v3858
        %5313 = vmatpush.bf16.msra.mxu0 %v3850
        %5314 = vmatpush.bf16.msra.mxu0 %v3842
        %5315 = vmatpush.bf16.msra.mxu0 %v3834
        %5316 = vmatpush.bf16.msra.mxu0 %v3826
        %5317 = vmatpush.bf16.msra.mxu0 %v3818
        %5318 = vmatpush.bf16.msra.mxu0 %v3810
        %5319 = vmatmul.bf16.gmra.mxu0 %v1351
        %v5320 = vpop.f32.mrf.mxu0
        %v5321 = vadd.f32 %v5307, %v5320
        %v5322 = vpop.f32.mrf.mxu0
        %v5323 = vadd.f32 %v5309, %v5322
        %5324 = vdwg.mxu0
        %5325 = vmatpush.bf16.msra.mxu0 %v3930
        %5326 = vmatpush.bf16.msra.mxu0 %v3922
        %5327 = vmatpush.bf16.msra.mxu0 %v3914
        %5328 = vmatpush.bf16.msra.mxu0 %v3906
        %5329 = vmatpush.bf16.msra.mxu0 %v3898
        %5330 = vmatpush.bf16.msra.mxu0 %v3890
        %5331 = vmatpush.bf16.msra.mxu0 %v3882
        %5332 = vmatpush.bf16.msra.mxu0 %v3874
        %5333 = vmatmul.bf16.gmra.mxu0 %v1352
        %v5334 = vpop.f32.mrf.mxu0
        %v5335 = vadd.f32 %v5321, %v5334
        %v5336 = vpop.f32.mrf.mxu0
        %v5337 = vadd.f32 %v5323, %v5336
        %5338 = vdwg.mxu0
        %v5339 = vsub.f32 0.0, %v4551
        %v5340 = vsub.f32 0.0, %v4663
        %v5341 = vsub.f32 0.0, %v4775
        %v5342 = vsub.f32 0.0, %v4887
        %v5343 = vsub.f32 0.0, %v4999
        %v5344 = vsub.f32 0.0, %v5111
        %v5345 = vsub.f32 0.0, %v5223
        %v5346 = vsub.f32 0.0, %v5335
        %v5347 = vsub.f32 0.0, %v4553
        %v5348 = vsub.f32 0.0, %v4665
        %v5349 = vsub.f32 0.0, %v4777
        %v5350 = vsub.f32 0.0, %v4889
        %v5351 = vsub.f32 0.0, %v5001
        %v5352 = vsub.f32 0.0, %v5113
        %v5353 = vsub.f32 0.0, %v5225
        %v5354 = vsub.f32 0.0, %v5337
        %v5355 = vmul.f32 %v5339, 1.442695
        %v5356 = vpow.pop %v5355
        %v5357 = vmul.f32 %v5340, 1.442695
        %v5358 = vpow.pop %v5357
        %v5359 = vmul.f32 %v5341, 1.442695
        %v5360 = vpow.pop %v5359
        %v5361 = vmul.f32 %v5342, 1.442695
        %v5362 = vpow.pop %v5361
        %v5363 = vmul.f32 %v5343, 1.442695
        %v5364 = vpow.pop %v5363
        %v5365 = vmul.f32 %v5344, 1.442695
        %v5366 = vpow.pop %v5365
        %v5367 = vmul.f32 %v5345, 1.442695
        %v5368 = vpow.pop %v5367
        %v5369 = vmul.f32 %v5346, 1.442695
        %v5370 = vpow.pop %v5369
        %v5371 = vmul.f32 %v5347, 1.442695
        %v5372 = vpow.pop %v5371
        %v5373 = vmul.f32 %v5348, 1.442695
        %v5374 = vpow.pop %v5373
        %v5375 = vmul.f32 %v5349, 1.442695
        %v5376 = vpow.pop %v5375
        %v5377 = vmul.f32 %v5350, 1.442695
        %v5378 = vpow.pop %v5377
        %v5379 = vmul.f32 %v5351, 1.442695
        %v5380 = vpow.pop %v5379
        %v5381 = vmul.f32 %v5352, 1.442695
        %v5382 = vpow.pop %v5381
        %v5383 = vmul.f32 %v5353, 1.442695
        %v5384 = vpow.pop %v5383
        %v5385 = vmul.f32 %v5354, 1.442695
        %v5386 = vpow.pop %v5385
        %v5387 = vadd.f32 %v5356, 1.0
        %v5388 = vadd.f32 %v5358, 1.0
        %v5389 = vadd.f32 %v5360, 1.0
        %v5390 = vadd.f32 %v5362, 1.0
        %v5391 = vadd.f32 %v5364, 1.0
        %v5392 = vadd.f32 %v5366, 1.0
        %v5393 = vadd.f32 %v5368, 1.0
        %v5394 = vadd.f32 %v5370, 1.0
        %v5395 = vadd.f32 %v5372, 1.0
        %v5396 = vadd.f32 %v5374, 1.0
        %v5397 = vadd.f32 %v5376, 1.0
        %v5398 = vadd.f32 %v5378, 1.0
        %v5399 = vadd.f32 %v5380, 1.0
        %v5400 = vadd.f32 %v5382, 1.0
        %v5401 = vadd.f32 %v5384, 1.0
        %v5402 = vadd.f32 %v5386, 1.0
        %v5403 = vrcp.pop %v5387
        %v5404 = vmul.f32 %v5387, %v5403
        %v5405 = vsub.f32 1.0, %v5404
        %v5406 = vmul.f32 %v5403, %v5405
        %v5407 = vadd.f32 %v5403, %v5406
        %vm5408 = vweird.f32 %v5387
        %vm5409 = vweird.f32 %v5403
        %vm5410 = vmor %vm5408, %vm5409
        %v5411 = vsel %vm5410, %v5403, %v5407
        %v5412 = vand.u32 2147483647, %v5387
        %vm5413 = vcmp.eq.f32.partialorder %v5412, 8.507059e+37
        %v5414 = vand.u32 %v5387, 2147483648
        %v5415 = vor.u32 1.1754944e-38, %v5414
        %v5416 = vsel %vm5413, %v5415, %v5411
        %v5417 = vmul.f32 1.0, %v5416
        %v5418 = vrcp.pop %v5388
        %v5419 = vmul.f32 %v5388, %v5418
        %v5420 = vsub.f32 1.0, %v5419
        %v5421 = vmul.f32 %v5418, %v5420
        %v5422 = vadd.f32 %v5418, %v5421
        %vm5423 = vweird.f32 %v5388
        %vm5424 = vweird.f32 %v5418
        %vm5425 = vmor %vm5423, %vm5424
        %v5426 = vsel %vm5425, %v5418, %v5422
        %v5427 = vand.u32 2147483647, %v5388
        %vm5428 = vcmp.eq.f32.partialorder %v5427, 8.507059e+37
        %v5429 = vand.u32 %v5388, 2147483648
        %v5430 = vor.u32 1.1754944e-38, %v5429
        %v5431 = vsel %vm5428, %v5430, %v5426
        %v5432 = vmul.f32 1.0, %v5431
        %v5433 = vrcp.pop %v5389
        %v5434 = vmul.f32 %v5389, %v5433
        %v5435 = vsub.f32 1.0, %v5434
        %v5436 = vmul.f32 %v5433, %v5435
        %v5437 = vadd.f32 %v5433, %v5436
        %vm5438 = vweird.f32 %v5389
        %vm5439 = vweird.f32 %v5433
        %vm5440 = vmor %vm5438, %vm5439
        %v5441 = vsel %vm5440, %v5433, %v5437
        %v5442 = vand.u32 2147483647, %v5389
        %vm5443 = vcmp.eq.f32.partialorder %v5442, 8.507059e+37
        %v5444 = vand.u32 %v5389, 2147483648
        %v5445 = vor.u32 1.1754944e-38, %v5444
        %v5446 = vsel %vm5443, %v5445, %v5441
        %v5447 = vmul.f32 1.0, %v5446
        %v5448 = vrcp.pop %v5390
        %v5449 = vmul.f32 %v5390, %v5448
        %v5450 = vsub.f32 1.0, %v5449
        %v5451 = vmul.f32 %v5448, %v5450
        %v5452 = vadd.f32 %v5448, %v5451
        %vm5453 = vweird.f32 %v5390
        %vm5454 = vweird.f32 %v5448
        %vm5455 = vmor %vm5453, %vm5454
        %v5456 = vsel %vm5455, %v5448, %v5452
        %v5457 = vand.u32 2147483647, %v5390
        %vm5458 = vcmp.eq.f32.partialorder %v5457, 8.507059e+37
        %v5459 = vand.u32 %v5390, 2147483648
        %v5460 = vor.u32 1.1754944e-38, %v5459
        %v5461 = vsel %vm5458, %v5460, %v5456
        %v5462 = vmul.f32 1.0, %v5461
        %v5463 = vrcp.pop %v5391
        %v5464 = vmul.f32 %v5391, %v5463
        %v5465 = vsub.f32 1.0, %v5464
        %v5466 = vmul.f32 %v5463, %v5465
        %v5467 = vadd.f32 %v5463, %v5466
        %vm5468 = vweird.f32 %v5391
        %vm5469 = vweird.f32 %v5463
        %vm5470 = vmor %vm5468, %vm5469
        %v5471 = vsel %vm5470, %v5463, %v5467
        %v5472 = vand.u32 2147483647, %v5391
        %vm5473 = vcmp.eq.f32.partialorder %v5472, 8.507059e+37
        %v5474 = vand.u32 %v5391, 2147483648
        %v5475 = vor.u32 1.1754944e-38, %v5474
        %v5476 = vsel %vm5473, %v5475, %v5471
        %v5477 = vmul.f32 1.0, %v5476
        %v5478 = vrcp.pop %v5392
        %v5479 = vmul.f32 %v5392, %v5478
        %v5480 = vsub.f32 1.0, %v5479
        %v5481 = vmul.f32 %v5478, %v5480
        %v5482 = vadd.f32 %v5478, %v5481
        %vm5483 = vweird.f32 %v5392
        %vm5484 = vweird.f32 %v5478
        %vm5485 = vmor %vm5483, %vm5484
        %v5486 = vsel %vm5485, %v5478, %v5482
        %v5487 = vand.u32 2147483647, %v5392
        %vm5488 = vcmp.eq.f32.partialorder %v5487, 8.507059e+37
        %v5489 = vand.u32 %v5392, 2147483648
        %v5490 = vor.u32 1.1754944e-38, %v5489
        %v5491 = vsel %vm5488, %v5490, %v5486
        %v5492 = vmul.f32 1.0, %v5491
        %v5493 = vrcp.pop %v5393
        %v5494 = vmul.f32 %v5393, %v5493
        %v5495 = vsub.f32 1.0, %v5494
        %v5496 = vmul.f32 %v5493, %v5495
        %v5497 = vadd.f32 %v5493, %v5496
        %vm5498 = vweird.f32 %v5393
        %vm5499 = vweird.f32 %v5493
        %vm5500 = vmor %vm5498, %vm5499
        %v5501 = vsel %vm5500, %v5493, %v5497
        %v5502 = vand.u32 2147483647, %v5393
        %vm5503 = vcmp.eq.f32.partialorder %v5502, 8.507059e+37
        %v5504 = vand.u32 %v5393, 2147483648
        %v5505 = vor.u32 1.1754944e-38, %v5504
        %v5506 = vsel %vm5503, %v5505, %v5501
        %v5507 = vmul.f32 1.0, %v5506
        %v5508 = vrcp.pop %v5394
        %v5509 = vmul.f32 %v5394, %v5508
        %v5510 = vsub.f32 1.0, %v5509
        %v5511 = vmul.f32 %v5508, %v5510
        %v5512 = vadd.f32 %v5508, %v5511
        %vm5513 = vweird.f32 %v5394
        %vm5514 = vweird.f32 %v5508
        %vm5515 = vmor %vm5513, %vm5514
        %v5516 = vsel %vm5515, %v5508, %v5512
        %v5517 = vand.u32 2147483647, %v5394
        %vm5518 = vcmp.eq.f32.partialorder %v5517, 8.507059e+37
        %v5519 = vand.u32 %v5394, 2147483648
        %v5520 = vor.u32 1.1754944e-38, %v5519
        %v5521 = vsel %vm5518, %v5520, %v5516
        %v5522 = vmul.f32 1.0, %v5521
        %v5523 = vrcp.pop %v5395
        %v5524 = vmul.f32 %v5395, %v5523
        %v5525 = vsub.f32 1.0, %v5524
        %v5526 = vmul.f32 %v5523, %v5525
        %v5527 = vadd.f32 %v5523, %v5526
        %vm5528 = vweird.f32 %v5395
        %vm5529 = vweird.f32 %v5523
        %vm5530 = vmor %vm5528, %vm5529
        %v5531 = vsel %vm5530, %v5523, %v5527
        %v5532 = vand.u32 2147483647, %v5395
        %vm5533 = vcmp.eq.f32.partialorder %v5532, 8.507059e+37
        %v5534 = vand.u32 %v5395, 2147483648
        %v5535 = vor.u32 1.1754944e-38, %v5534
        %v5536 = vsel %vm5533, %v5535, %v5531
        %v5537 = vmul.f32 1.0, %v5536
        %v5538 = vrcp.pop %v5396
        %v5539 = vmul.f32 %v5396, %v5538
        %v5540 = vsub.f32 1.0, %v5539
        %v5541 = vmul.f32 %v5538, %v5540
        %v5542 = vadd.f32 %v5538, %v5541
        %vm5543 = vweird.f32 %v5396
        %vm5544 = vweird.f32 %v5538
        %vm5545 = vmor %vm5543, %vm5544
        %v5546 = vsel %vm5545, %v5538, %v5542
        %v5547 = vand.u32 2147483647, %v5396
        %vm5548 = vcmp.eq.f32.partialorder %v5547, 8.507059e+37
        %v5549 = vand.u32 %v5396, 2147483648
        %v5550 = vor.u32 1.1754944e-38, %v5549
        %v5551 = vsel %vm5548, %v5550, %v5546
        %v5552 = vmul.f32 1.0, %v5551
        %v5553 = vrcp.pop %v5397
        %v5554 = vmul.f32 %v5397, %v5553
        %v5555 = vsub.f32 1.0, %v5554
        %v5556 = vmul.f32 %v5553, %v5555
        %v5557 = vadd.f32 %v5553, %v5556
        %vm5558 = vweird.f32 %v5397
        %vm5559 = vweird.f32 %v5553
        %vm5560 = vmor %vm5558, %vm5559
        %v5561 = vsel %vm5560, %v5553, %v5557
        %v5562 = vand.u32 2147483647, %v5397
        %vm5563 = vcmp.eq.f32.partialorder %v5562, 8.507059e+37
        %v5564 = vand.u32 %v5397, 2147483648
        %v5565 = vor.u32 1.1754944e-38, %v5564
        %v5566 = vsel %vm5563, %v5565, %v5561
        %v5567 = vmul.f32 1.0, %v5566
        %v5568 = vrcp.pop %v5398
        %v5569 = vmul.f32 %v5398, %v5568
        %v5570 = vsub.f32 1.0, %v5569
        %v5571 = vmul.f32 %v5568, %v5570
        %v5572 = vadd.f32 %v5568, %v5571
        %vm5573 = vweird.f32 %v5398
        %vm5574 = vweird.f32 %v5568
        %vm5575 = vmor %vm5573, %vm5574
        %v5576 = vsel %vm5575, %v5568, %v5572
        %v5577 = vand.u32 2147483647, %v5398
        %vm5578 = vcmp.eq.f32.partialorder %v5577, 8.507059e+37
        %v5579 = vand.u32 %v5398, 2147483648
        %v5580 = vor.u32 1.1754944e-38, %v5579
        %v5581 = vsel %vm5578, %v5580, %v5576
        %v5582 = vmul.f32 1.0, %v5581
        %v5583 = vrcp.pop %v5399
        %v5584 = vmul.f32 %v5399, %v5583
        %v5585 = vsub.f32 1.0, %v5584
        %v5586 = vmul.f32 %v5583, %v5585
        %v5587 = vadd.f32 %v5583, %v5586
        %vm5588 = vweird.f32 %v5399
        %vm5589 = vweird.f32 %v5583
        %vm5590 = vmor %vm5588, %vm5589
        %v5591 = vsel %vm5590, %v5583, %v5587
        %v5592 = vand.u32 2147483647, %v5399
        %vm5593 = vcmp.eq.f32.partialorder %v5592, 8.507059e+37
        %v5594 = vand.u32 %v5399, 2147483648
        %v5595 = vor.u32 1.1754944e-38, %v5594
        %v5596 = vsel %vm5593, %v5595, %v5591
        %v5597 = vmul.f32 1.0, %v5596
        %v5598 = vrcp.pop %v5400
        %v5599 = vmul.f32 %v5400, %v5598
        %v5600 = vsub.f32 1.0, %v5599
        %v5601 = vmul.f32 %v5598, %v5600
        %v5602 = vadd.f32 %v5598, %v5601
        %vm5603 = vweird.f32 %v5400
        %vm5604 = vweird.f32 %v5598
        %vm5605 = vmor %vm5603, %vm5604
        %v5606 = vsel %vm5605, %v5598, %v5602
        %v5607 = vand.u32 2147483647, %v5400
        %vm5608 = vcmp.eq.f32.partialorder %v5607, 8.507059e+37
        %v5609 = vand.u32 %v5400, 2147483648
        %v5610 = vor.u32 1.1754944e-38, %v5609
        %v5611 = vsel %vm5608, %v5610, %v5606
        %v5612 = vmul.f32 1.0, %v5611
        %v5613 = vrcp.pop %v5401
        %v5614 = vmul.f32 %v5401, %v5613
        %v5615 = vsub.f32 1.0, %v5614
        %v5616 = vmul.f32 %v5613, %v5615
        %v5617 = vadd.f32 %v5613, %v5616
        %vm5618 = vweird.f32 %v5401
        %vm5619 = vweird.f32 %v5613
        %vm5620 = vmor %vm5618, %vm5619
        %v5621 = vsel %vm5620, %v5613, %v5617
        %v5622 = vand.u32 2147483647, %v5401
        %vm5623 = vcmp.eq.f32.partialorder %v5622, 8.507059e+37
        %v5624 = vand.u32 %v5401, 2147483648
        %v5625 = vor.u32 1.1754944e-38, %v5624
        %v5626 = vsel %vm5623, %v5625, %v5621
        %v5627 = vmul.f32 1.0, %v5626
        %v5628 = vrcp.pop %v5402
        %v5629 = vmul.f32 %v5402, %v5628
        %v5630 = vsub.f32 1.0, %v5629
        %v5631 = vmul.f32 %v5628, %v5630
        %v5632 = vadd.f32 %v5628, %v5631
        %vm5633 = vweird.f32 %v5402
        %vm5634 = vweird.f32 %v5628
        %vm5635 = vmor %vm5633, %vm5634
        %v5636 = vsel %vm5635, %v5628, %v5632
        %v5637 = vand.u32 2147483647, %v5402
        %vm5638 = vcmp.eq.f32.partialorder %v5637, 8.507059e+37
        %v5639 = vand.u32 %v5402, 2147483648
        %v5640 = vor.u32 1.1754944e-38, %v5639
        %v5641 = vsel %vm5638, %v5640, %v5636
        %v5642 = vmul.f32 1.0, %v5641
        %v5643 = vpack.c.bf16 %v5537, %v5417
        %v5644 = vpack.c.bf16 %v5552, %v5432
        %v5645 = vpack.c.bf16 %v5567, %v5447
        %v5646 = vpack.c.bf16 %v5582, %v5462
        %v5647 = vpack.c.bf16 %v5597, %v5477
        %v5648 = vpack.c.bf16 %v5612, %v5492
        %v5649 = vpack.c.bf16 %v5627, %v5507
        %v5650 = vpack.c.bf16 %v5642, %v5522
        %v5651 = vld [vmem:[%s843] sm:$0xf]
        %v5652 = vld [vmem:[%s843 + $0x4] sm:$0xf]
        %v5653 = vld [vmem:[%s843 + $0x8] sm:$0xf]
        %v5654 = vld [vmem:[%s843 + $0xc] sm:$0xf]
        %v5655 = vld [vmem:[%s843 + $0x10] sm:$0xf]
        %v5656 = vld [vmem:[%s843 + $0x14] sm:$0xf]
        %v5657 = vld [vmem:[%s843 + $0x18] sm:$0xf]
        %v5658 = vld [vmem:[%s843 + $0x1c] sm:$0xf]
        %v5659 = vld [vmem:[%s843 + $0x20] sm:$0xf]
        %v5660 = vld [vmem:[%s843 + $0x24] sm:$0xf]
        %v5661 = vld [vmem:[%s843 + $0x28] sm:$0xf]
        %v5662 = vld [vmem:[%s843 + $0x2c] sm:$0xf]
        %v5663 = vld [vmem:[%s843 + $0x30] sm:$0xf]
        %v5664 = vld [vmem:[%s843 + $0x34] sm:$0xf]
        %v5665 = vld [vmem:[%s843 + $0x38] sm:$0xf]
        %v5666 = vld [vmem:[%s843 + $0x3c] sm:$0xf]
        %v5667 = vld [vmem:[%s843 + $0x40] sm:$0xf]
        %v5668 = vld [vmem:[%s843 + $0x44] sm:$0xf]
        %v5669 = vld [vmem:[%s843 + $0x48] sm:$0xf]
        %v5670 = vld [vmem:[%s843 + $0x4c] sm:$0xf]
        %v5671 = vld [vmem:[%s843 + $0x50] sm:$0xf]
        %v5672 = vld [vmem:[%s843 + $0x54] sm:$0xf]
        %v5673 = vld [vmem:[%s843 + $0x58] sm:$0xf]
        %v5674 = vld [vmem:[%s843 + $0x5c] sm:$0xf]
        %v5675 = vld [vmem:[%s843 + $0x60] sm:$0xf]
        %v5676 = vld [vmem:[%s843 + $0x64] sm:$0xf]
        %v5677 = vld [vmem:[%s843 + $0x68] sm:$0xf]
        %v5678 = vld [vmem:[%s843 + $0x6c] sm:$0xf]
        %v5679 = vld [vmem:[%s843 + $0x70] sm:$0xf]
        %v5680 = vld [vmem:[%s843 + $0x74] sm:$0xf]
        %v5681 = vld [vmem:[%s843 + $0x78] sm:$0xf]
        %v5682 = vld [vmem:[%s843 + $0x7c] sm:$0xf]
        %v5683 = vld [vmem:[%s843 + $0x80] sm:$0xf]
        %v5684 = vld [vmem:[%s843 + $0x84] sm:$0xf]
        %v5685 = vld [vmem:[%s843 + $0x88] sm:$0xf]
        %v5686 = vld [vmem:[%s843 + $0x8c] sm:$0xf]
        %v5687 = vld [vmem:[%s843 + $0x90] sm:$0xf]
        %v5688 = vld [vmem:[%s843 + $0x94] sm:$0xf]
        %v5689 = vld [vmem:[%s843 + $0x98] sm:$0xf]
        %v5690 = vld [vmem:[%s843 + $0x9c] sm:$0xf]
        %v5691 = vld [vmem:[%s843 + $0xa0] sm:$0xf]
        %v5692 = vld [vmem:[%s843 + $0xa4] sm:$0xf]
        %v5693 = vld [vmem:[%s843 + $0xa8] sm:$0xf]
        %v5694 = vld [vmem:[%s843 + $0xac] sm:$0xf]
        %v5695 = vld [vmem:[%s843 + $0xb0] sm:$0xf]
        %v5696 = vld [vmem:[%s843 + $0xb4] sm:$0xf]
        %v5697 = vld [vmem:[%s843 + $0xb8] sm:$0xf]
        %v5698 = vld [vmem:[%s843 + $0xbc] sm:$0xf]
        %v5699 = vld [vmem:[%s843 + $0xc0] sm:$0xf]
        %v5700 = vld [vmem:[%s843 + $0xc4] sm:$0xf]
        %v5701 = vld [vmem:[%s843 + $0xc8] sm:$0xf]
        %v5702 = vld [vmem:[%s843 + $0xcc] sm:$0xf]
        %v5703 = vld [vmem:[%s843 + $0xd0] sm:$0xf]
        %v5704 = vld [vmem:[%s843 + $0xd4] sm:$0xf]
        %v5705 = vld [vmem:[%s843 + $0xd8] sm:$0xf]
        %v5706 = vld [vmem:[%s843 + $0xdc] sm:$0xf]
        %v5707 = vld [vmem:[%s843 + $0xe0] sm:$0xf]
        %v5708 = vld [vmem:[%s843 + $0xe4] sm:$0xf]
        %v5709 = vld [vmem:[%s843 + $0xe8] sm:$0xf]
        %v5710 = vld [vmem:[%s843 + $0xec] sm:$0xf]
        %v5711 = vld [vmem:[%s843 + $0xf0] sm:$0xf]
        %v5712 = vld [vmem:[%s843 + $0xf4] sm:$0xf]
        %v5713 = vld [vmem:[%s843 + $0xf8] sm:$0xf]
        %v5714 = vld [vmem:[%s843 + $0xfc] sm:$0xf]
        %v5715 = vld [vmem:[%s843 + $0x100] sm:$0xf]
        %v5716 = vld [vmem:[%s843 + $0x104] sm:$0xf]
        %v5717 = vld [vmem:[%s843 + $0x108] sm:$0xf]
        %v5718 = vld [vmem:[%s843 + $0x10c] sm:$0xf]
        %v5719 = vld [vmem:[%s843 + $0x110] sm:$0xf]
        %v5720 = vld [vmem:[%s843 + $0x114] sm:$0xf]
        %v5721 = vld [vmem:[%s843 + $0x118] sm:$0xf]
        %v5722 = vld [vmem:[%s843 + $0x11c] sm:$0xf]
        %v5723 = vld [vmem:[%s843 + $0x120] sm:$0xf]
        %v5724 = vld [vmem:[%s843 + $0x124] sm:$0xf]
        %v5725 = vld [vmem:[%s843 + $0x128] sm:$0xf]
        %v5726 = vld [vmem:[%s843 + $0x12c] sm:$0xf]
        %v5727 = vld [vmem:[%s843 + $0x130] sm:$0xf]
        %v5728 = vld [vmem:[%s843 + $0x134] sm:$0xf]
        %v5729 = vld [vmem:[%s843 + $0x138] sm:$0xf]
        %v5730 = vld [vmem:[%s843 + $0x13c] sm:$0xf]
        %v5731 = vld [vmem:[%s843 + $0x140] sm:$0xf]
        %v5732 = vld [vmem:[%s843 + $0x144] sm:$0xf]
        %v5733 = vld [vmem:[%s843 + $0x148] sm:$0xf]
        %v5734 = vld [vmem:[%s843 + $0x14c] sm:$0xf]
        %v5735 = vld [vmem:[%s843 + $0x150] sm:$0xf]
        %v5736 = vld [vmem:[%s843 + $0x154] sm:$0xf]
        %v5737 = vld [vmem:[%s843 + $0x158] sm:$0xf]
        %v5738 = vld [vmem:[%s843 + $0x15c] sm:$0xf]
        %v5739 = vld [vmem:[%s843 + $0x160] sm:$0xf]
        %v5740 = vld [vmem:[%s843 + $0x164] sm:$0xf]
        %v5741 = vld [vmem:[%s843 + $0x168] sm:$0xf]
        %v5742 = vld [vmem:[%s843 + $0x16c] sm:$0xf]
        %v5743 = vld [vmem:[%s843 + $0x170] sm:$0xf]
        %v5744 = vld [vmem:[%s843 + $0x174] sm:$0xf]
        %v5745 = vld [vmem:[%s843 + $0x178] sm:$0xf]
        %v5746 = vld [vmem:[%s843 + $0x17c] sm:$0xf]
        %v5747 = vld [vmem:[%s843 + $0x180] sm:$0xf]
        %v5748 = vld [vmem:[%s843 + $0x184] sm:$0xf]
        %v5749 = vld [vmem:[%s843 + $0x188] sm:$0xf]
        %v5750 = vld [vmem:[%s843 + $0x18c] sm:$0xf]
        %v5751 = vld [vmem:[%s843 + $0x190] sm:$0xf]
        %v5752 = vld [vmem:[%s843 + $0x194] sm:$0xf]
        %v5753 = vld [vmem:[%s843 + $0x198] sm:$0xf]
        %v5754 = vld [vmem:[%s843 + $0x19c] sm:$0xf]
        %v5755 = vld [vmem:[%s843 + $0x1a0] sm:$0xf]
        %v5756 = vld [vmem:[%s843 + $0x1a4] sm:$0xf]
        %v5757 = vld [vmem:[%s843 + $0x1a8] sm:$0xf]
        %v5758 = vld [vmem:[%s843 + $0x1ac] sm:$0xf]
        %v5759 = vld [vmem:[%s843 + $0x1b0] sm:$0xf]
        %v5760 = vld [vmem:[%s843 + $0x1b4] sm:$0xf]
        %v5761 = vld [vmem:[%s843 + $0x1b8] sm:$0xf]
        %v5762 = vld [vmem:[%s843 + $0x1bc] sm:$0xf]
        %v5763 = vld [vmem:[%s843 + $0x1c0] sm:$0xf]
        %v5764 = vld [vmem:[%s843 + $0x1c4] sm:$0xf]
        %v5765 = vld [vmem:[%s843 + $0x1c8] sm:$0xf]
        %v5766 = vld [vmem:[%s843 + $0x1cc] sm:$0xf]
        %v5767 = vld [vmem:[%s843 + $0x1d0] sm:$0xf]
        %v5768 = vld [vmem:[%s843 + $0x1d4] sm:$0xf]
        %v5769 = vld [vmem:[%s843 + $0x1d8] sm:$0xf]
        %v5770 = vld [vmem:[%s843 + $0x1dc] sm:$0xf]
        %v5771 = vld [vmem:[%s843 + $0x1e0] sm:$0xf]
        %v5772 = vld [vmem:[%s843 + $0x1e4] sm:$0xf]
        %v5773 = vld [vmem:[%s843 + $0x1e8] sm:$0xf]
        %v5774 = vld [vmem:[%s843 + $0x1ec] sm:$0xf]
        %v5775 = vld [vmem:[%s843 + $0x1f0] sm:$0xf]
        %v5776 = vld [vmem:[%s843 + $0x1f4] sm:$0xf]
        %v5777 = vld [vmem:[%s843 + $0x1f8] sm:$0xf]
        %v5778 = vld [vmem:[%s843 + $0x1fc] sm:$0xf]
        %v5779 = vld [vmem:[%s685] sm:$0x1]
        %v5781 = vperm.slane %v5779, 0
        %v5911 = vunpack.c.l.b16 %v5651
        %v5912 = vunpack.c.l.b16 %v5652
        %v5913 = vunpack.c.l.b16 %v5653
        %v5914 = vunpack.c.l.b16 %v5654
        %v5915 = vunpack.c.l.b16 %v5655
        %v5916 = vunpack.c.l.b16 %v5656
        %v5917 = vunpack.c.l.b16 %v5657
        %v5918 = vunpack.c.l.b16 %v5658
        %v5919 = vunpack.c.l.b16 %v5659
        %v5920 = vunpack.c.l.b16 %v5660
        %v5921 = vunpack.c.l.b16 %v5661
        %v5922 = vunpack.c.l.b16 %v5662
        %v5923 = vunpack.c.l.b16 %v5663
        %v5924 = vunpack.c.l.b16 %v5664
        %v5925 = vunpack.c.l.b16 %v5665
        %v5926 = vunpack.c.l.b16 %v5666
        %v5927 = vunpack.c.l.b16 %v5667
        %v5928 = vunpack.c.l.b16 %v5668
        %v5929 = vunpack.c.l.b16 %v5669
        %v5930 = vunpack.c.l.b16 %v5670
        %v5931 = vunpack.c.l.b16 %v5671
        %v5932 = vunpack.c.l.b16 %v5672
        %v5933 = vunpack.c.l.b16 %v5673
        %v5934 = vunpack.c.l.b16 %v5674
        %v5935 = vunpack.c.l.b16 %v5675
        %v5936 = vunpack.c.l.b16 %v5676
        %v5937 = vunpack.c.l.b16 %v5677
        %v5938 = vunpack.c.l.b16 %v5678
        %v5939 = vunpack.c.l.b16 %v5679
        %v5940 = vunpack.c.l.b16 %v5680
        %v5941 = vunpack.c.l.b16 %v5681
        %v5942 = vunpack.c.l.b16 %v5682
        %v5943 = vunpack.c.l.b16 %v5683
        %v5944 = vunpack.c.l.b16 %v5684
        %v5945 = vunpack.c.l.b16 %v5685
        %v5946 = vunpack.c.l.b16 %v5686
        %v5947 = vunpack.c.l.b16 %v5687
        %v5948 = vunpack.c.l.b16 %v5688
        %v5949 = vunpack.c.l.b16 %v5689
        %v5950 = vunpack.c.l.b16 %v5690
        %v5951 = vunpack.c.l.b16 %v5691
        %v5952 = vunpack.c.l.b16 %v5692
        %v5953 = vunpack.c.l.b16 %v5693
        %v5954 = vunpack.c.l.b16 %v5694
        %v5955 = vunpack.c.l.b16 %v5695
        %v5956 = vunpack.c.l.b16 %v5696
        %v5957 = vunpack.c.l.b16 %v5697
        %v5958 = vunpack.c.l.b16 %v5698
        %v5959 = vunpack.c.l.b16 %v5699
        %v5960 = vunpack.c.l.b16 %v5700
        %v5961 = vunpack.c.l.b16 %v5701
        %v5962 = vunpack.c.l.b16 %v5702
        %v5963 = vunpack.c.l.b16 %v5703
        %v5964 = vunpack.c.l.b16 %v5704
        %v5965 = vunpack.c.l.b16 %v5705
        %v5966 = vunpack.c.l.b16 %v5706
        %v5967 = vunpack.c.l.b16 %v5707
        %v5968 = vunpack.c.l.b16 %v5708
        %v5969 = vunpack.c.l.b16 %v5709
        %v5970 = vunpack.c.l.b16 %v5710
        %v5971 = vunpack.c.l.b16 %v5711
        %v5972 = vunpack.c.l.b16 %v5712
        %v5973 = vunpack.c.l.b16 %v5713
        %v5974 = vunpack.c.l.b16 %v5714
        %v5975 = vunpack.c.l.b16 %v5715
        %v5976 = vunpack.c.l.b16 %v5716
        %v5977 = vunpack.c.l.b16 %v5717
        %v5978 = vunpack.c.l.b16 %v5718
        %v5979 = vunpack.c.l.b16 %v5719
        %v5980 = vunpack.c.l.b16 %v5720
        %v5981 = vunpack.c.l.b16 %v5721
        %v5982 = vunpack.c.l.b16 %v5722
        %v5983 = vunpack.c.l.b16 %v5723
        %v5984 = vunpack.c.l.b16 %v5724
        %v5985 = vunpack.c.l.b16 %v5725
        %v5986 = vunpack.c.l.b16 %v5726
        %v5987 = vunpack.c.l.b16 %v5727
        %v5988 = vunpack.c.l.b16 %v5728
        %v5989 = vunpack.c.l.b16 %v5729
        %v5990 = vunpack.c.l.b16 %v5730
        %v5991 = vunpack.c.l.b16 %v5731
        %v5992 = vunpack.c.l.b16 %v5732
        %v5993 = vunpack.c.l.b16 %v5733
        %v5994 = vunpack.c.l.b16 %v5734
        %v5995 = vunpack.c.l.b16 %v5735
        %v5996 = vunpack.c.l.b16 %v5736
        %v5997 = vunpack.c.l.b16 %v5737
        %v5998 = vunpack.c.l.b16 %v5738
        %v5999 = vunpack.c.l.b16 %v5739
        %v6000 = vunpack.c.l.b16 %v5740
        %v6001 = vunpack.c.l.b16 %v5741
        %v6002 = vunpack.c.l.b16 %v5742
        %v6003 = vunpack.c.l.b16 %v5743
        %v6004 = vunpack.c.l.b16 %v5744
        %v6005 = vunpack.c.l.b16 %v5745
        %v6006 = vunpack.c.l.b16 %v5746
        %v6007 = vunpack.c.l.b16 %v5747
        %v6008 = vunpack.c.l.b16 %v5748
        %v6009 = vunpack.c.l.b16 %v5749
        %v6010 = vunpack.c.l.b16 %v5750
        %v6011 = vunpack.c.l.b16 %v5751
        %v6012 = vunpack.c.l.b16 %v5752
        %v6013 = vunpack.c.l.b16 %v5753
        %v6014 = vunpack.c.l.b16 %v5754
        %v6015 = vunpack.c.l.b16 %v5755
        %v6016 = vunpack.c.l.b16 %v5756
        %v6017 = vunpack.c.l.b16 %v5757
        %v6018 = vunpack.c.l.b16 %v5758
        %v6019 = vunpack.c.l.b16 %v5759
        %v6020 = vunpack.c.l.b16 %v5760
        %v6021 = vunpack.c.l.b16 %v5761
        %v6022 = vunpack.c.l.b16 %v5762
        %v6023 = vunpack.c.l.b16 %v5763
        %v6024 = vunpack.c.l.b16 %v5764
        %v6025 = vunpack.c.l.b16 %v5765
        %v6026 = vunpack.c.l.b16 %v5766
        %v6027 = vunpack.c.l.b16 %v5767
        %v6028 = vunpack.c.l.b16 %v5768
        %v6029 = vunpack.c.l.b16 %v5769
        %v6030 = vunpack.c.l.b16 %v5770
        %v6031 = vunpack.c.l.b16 %v5771
        %v6032 = vunpack.c.l.b16 %v5772
        %v6033 = vunpack.c.l.b16 %v5773
        %v6034 = vunpack.c.l.b16 %v5774
        %v6035 = vunpack.c.l.b16 %v5775
        %v6036 = vunpack.c.l.b16 %v5776
        %v6037 = vunpack.c.l.b16 %v5777
        %v6038 = vunpack.c.l.b16 %v5778
        %v6039 = vpack.c.b16 %v5912, %v5911
        %v6040 = vpack.c.b16 %v5914, %v5913
        %v6041 = vpack.c.b16 %v5916, %v5915
        %v6042 = vpack.c.b16 %v5918, %v5917
        %v6043 = vpack.c.b16 %v5920, %v5919
        %v6044 = vpack.c.b16 %v5922, %v5921
        %v6045 = vpack.c.b16 %v5924, %v5923
        %v6046 = vpack.c.b16 %v5926, %v5925
        %v6047 = vpack.c.b16 %v5928, %v5927
        %v6048 = vpack.c.b16 %v5930, %v5929
        %v6049 = vpack.c.b16 %v5932, %v5931
        %v6050 = vpack.c.b16 %v5934, %v5933
        %v6051 = vpack.c.b16 %v5936, %v5935
        %v6052 = vpack.c.b16 %v5938, %v5937
        %v6053 = vpack.c.b16 %v5940, %v5939
        %v6054 = vpack.c.b16 %v5942, %v5941
        %v6055 = vpack.c.b16 %v5944, %v5943
        %v6056 = vpack.c.b16 %v5946, %v5945
        %v6057 = vpack.c.b16 %v5948, %v5947
        %v6058 = vpack.c.b16 %v5950, %v5949
        %v6059 = vpack.c.b16 %v5952, %v5951
        %v6060 = vpack.c.b16 %v5954, %v5953
        %v6061 = vpack.c.b16 %v5956, %v5955
        %v6062 = vpack.c.b16 %v5958, %v5957
        %v6063 = vpack.c.b16 %v5960, %v5959
        %v6064 = vpack.c.b16 %v5962, %v5961
        %v6065 = vpack.c.b16 %v5964, %v5963
        %v6066 = vpack.c.b16 %v5966, %v5965
        %v6067 = vpack.c.b16 %v5968, %v5967
        %v6068 = vpack.c.b16 %v5970, %v5969
        %v6069 = vpack.c.b16 %v5972, %v5971
        %v6070 = vpack.c.b16 %v5974, %v5973
        %v6071 = vpack.c.b16 %v5976, %v5975
        %v6072 = vpack.c.b16 %v5978, %v5977
        %v6073 = vpack.c.b16 %v5980, %v5979
        %v6074 = vpack.c.b16 %v5982, %v5981
        %v6075 = vpack.c.b16 %v5984, %v5983
        %v6076 = vpack.c.b16 %v5986, %v5985
        %v6077 = vpack.c.b16 %v5988, %v5987
        %v6078 = vpack.c.b16 %v5990, %v5989
        %v6079 = vpack.c.b16 %v5992, %v5991
        %v6080 = vpack.c.b16 %v5994, %v5993
        %v6081 = vpack.c.b16 %v5996, %v5995
        %v6082 = vpack.c.b16 %v5998, %v5997
        %v6083 = vpack.c.b16 %v6000, %v5999
        %v6084 = vpack.c.b16 %v6002, %v6001
        %v6085 = vpack.c.b16 %v6004, %v6003
        %v6086 = vpack.c.b16 %v6006, %v6005
        %v6087 = vpack.c.b16 %v6008, %v6007
        %v6088 = vpack.c.b16 %v6010, %v6009
        %v6089 = vpack.c.b16 %v6012, %v6011
        %v6090 = vpack.c.b16 %v6014, %v6013
        %v6091 = vpack.c.b16 %v6016, %v6015
        %v6092 = vpack.c.b16 %v6018, %v6017
        %v6093 = vpack.c.b16 %v6020, %v6019
        %v6094 = vpack.c.b16 %v6022, %v6021
        %v6095 = vpack.c.b16 %v6024, %v6023
        %v6096 = vpack.c.b16 %v6026, %v6025
        %v6097 = vpack.c.b16 %v6028, %v6027
        %v6098 = vpack.c.b16 %v6030, %v6029
        %v6099 = vpack.c.b16 %v6032, %v6031
        %v6100 = vpack.c.b16 %v6034, %v6033
        %v6101 = vpack.c.b16 %v6036, %v6035
        %v6102 = vpack.c.b16 %v6038, %v6037
        %6167 = vmatpush.bf16.msra.mxu0 %v6046
        %6168 = vmatpush.bf16.msra.mxu0 %v6045
        %6169 = vmatpush.bf16.msra.mxu0 %v6044
        %6170 = vmatpush.bf16.msra.mxu0 %v6043
        %6171 = vmatpush.bf16.msra.mxu0 %v6042
        %6172 = vmatpush.bf16.msra.mxu0 %v6041
        %6173 = vmatpush.bf16.msra.mxu0 %v6040
        %6174 = vmatpush.bf16.msra.mxu0 %v6039
        %6175 = vmatmul.bf16.gmra.mxu0 %v5643
        %v6176 = vpop.f32.mrf.mxu0
        %v6177 = vadd.f32 %v5781, %v6176
        %v6178 = vpop.f32.mrf.mxu0
        %v6179 = vadd.f32 %v5781, %v6178
        %6180 = vdwg.mxu0
        %6181 = vmatpush.bf16.msra.mxu0 %v6054
        %6182 = vmatpush.bf16.msra.mxu0 %v6053
        %6183 = vmatpush.bf16.msra.mxu0 %v6052
        %6184 = vmatpush.bf16.msra.mxu0 %v6051
        %6185 = vmatpush.bf16.msra.mxu0 %v6050
        %6186 = vmatpush.bf16.msra.mxu0 %v6049
        %6187 = vmatpush.bf16.msra.mxu0 %v6048
        %6188 = vmatpush.bf16.msra.mxu0 %v6047
        %6189 = vmatmul.bf16.gmra.mxu0 %v5644
        %v6190 = vpop.f32.mrf.mxu0
        %v6191 = vadd.f32 %v6177, %v6190
        %v6192 = vpop.f32.mrf.mxu0
        %v6193 = vadd.f32 %v6179, %v6192
        %6194 = vdwg.mxu0
        %6195 = vmatpush.bf16.msra.mxu0 %v6062
        %6196 = vmatpush.bf16.msra.mxu0 %v6061
        %6197 = vmatpush.bf16.msra.mxu0 %v6060
        %6198 = vmatpush.bf16.msra.mxu0 %v6059
        %6199 = vmatpush.bf16.msra.mxu0 %v6058
        %6200 = vmatpush.bf16.msra.mxu0 %v6057
        %6201 = vmatpush.bf16.msra.mxu0 %v6056
        %6202 = vmatpush.bf16.msra.mxu0 %v6055
        %6203 = vmatmul.bf16.gmra.mxu0 %v5645
        %v6204 = vpop.f32.mrf.mxu0
        %v6205 = vadd.f32 %v6191, %v6204
        %v6206 = vpop.f32.mrf.mxu0
        %v6207 = vadd.f32 %v6193, %v6206
        %6208 = vdwg.mxu0
        %6209 = vmatpush.bf16.msra.mxu0 %v6070
        %6210 = vmatpush.bf16.msra.mxu0 %v6069
        %6211 = vmatpush.bf16.msra.mxu0 %v6068
        %6212 = vmatpush.bf16.msra.mxu0 %v6067
        %6213 = vmatpush.bf16.msra.mxu0 %v6066
        %6214 = vmatpush.bf16.msra.mxu0 %v6065
        %6215 = vmatpush.bf16.msra.mxu0 %v6064
        %6216 = vmatpush.bf16.msra.mxu0 %v6063
        %6217 = vmatmul.bf16.gmra.mxu0 %v5646
        %v6218 = vpop.f32.mrf.mxu0
        %v6219 = vadd.f32 %v6205, %v6218
        %v6220 = vpop.f32.mrf.mxu0
        %v6221 = vadd.f32 %v6207, %v6220
        %6222 = vdwg.mxu0
        %6223 = vmatpush.bf16.msra.mxu0 %v6078
        %6224 = vmatpush.bf16.msra.mxu0 %v6077
        %6225 = vmatpush.bf16.msra.mxu0 %v6076
        %6226 = vmatpush.bf16.msra.mxu0 %v6075
        %6227 = vmatpush.bf16.msra.mxu0 %v6074
        %6228 = vmatpush.bf16.msra.mxu0 %v6073
        %6229 = vmatpush.bf16.msra.mxu0 %v6072
        %6230 = vmatpush.bf16.msra.mxu0 %v6071
        %6231 = vmatmul.bf16.gmra.mxu0 %v5647
        %v6232 = vpop.f32.mrf.mxu0
        %v6233 = vadd.f32 %v6219, %v6232
        %v6234 = vpop.f32.mrf.mxu0
        %v6235 = vadd.f32 %v6221, %v6234
        %6236 = vdwg.mxu0
        %6237 = vmatpush.bf16.msra.mxu0 %v6086
        %6238 = vmatpush.bf16.msra.mxu0 %v6085
        %6239 = vmatpush.bf16.msra.mxu0 %v6084
        %6240 = vmatpush.bf16.msra.mxu0 %v6083
        %6241 = vmatpush.bf16.msra.mxu0 %v6082
        %6242 = vmatpush.bf16.msra.mxu0 %v6081
        %6243 = vmatpush.bf16.msra.mxu0 %v6080
        %6244 = vmatpush.bf16.msra.mxu0 %v6079
        %6245 = vmatmul.bf16.gmra.mxu0 %v5648
        %v6246 = vpop.f32.mrf.mxu0
        %v6247 = vadd.f32 %v6233, %v6246
        %v6248 = vpop.f32.mrf.mxu0
        %v6249 = vadd.f32 %v6235, %v6248
        %6250 = vdwg.mxu0
        %6251 = vmatpush.bf16.msra.mxu0 %v6094
        %6252 = vmatpush.bf16.msra.mxu0 %v6093
        %6253 = vmatpush.bf16.msra.mxu0 %v6092
        %6254 = vmatpush.bf16.msra.mxu0 %v6091
        %6255 = vmatpush.bf16.msra.mxu0 %v6090
        %6256 = vmatpush.bf16.msra.mxu0 %v6089
        %6257 = vmatpush.bf16.msra.mxu0 %v6088
        %6258 = vmatpush.bf16.msra.mxu0 %v6087
        %6259 = vmatmul.bf16.gmra.mxu0 %v5649
        %v6260 = vpop.f32.mrf.mxu0
        %v6261 = vadd.f32 %v6247, %v6260
        %v6262 = vpop.f32.mrf.mxu0
        %v6263 = vadd.f32 %v6249, %v6262
        %6264 = vdwg.mxu0
        %6265 = vmatpush.bf16.msra.mxu0 %v6102
        %6266 = vmatpush.bf16.msra.mxu0 %v6101
        %6267 = vmatpush.bf16.msra.mxu0 %v6100
        %6268 = vmatpush.bf16.msra.mxu0 %v6099
        %6269 = vmatpush.bf16.msra.mxu0 %v6098
        %6270 = vmatpush.bf16.msra.mxu0 %v6097
        %6271 = vmatpush.bf16.msra.mxu0 %v6096
        %6272 = vmatpush.bf16.msra.mxu0 %v6095
        %6273 = vmatmul.bf16.gmra.mxu0 %v5650
        %v6274 = vpop.f32.mrf.mxu0
        %v6275 = vadd.f32 %v6261, %v6274
        %v6276 = vpop.f32.mrf.mxu0
        %v6277 = vadd.f32 %v6263, %v6276
        %6278 = vdwg.mxu0
        %v6279 = vsub.f32 0.0, %v6275
        %v6280 = vsub.f32 0.0, %v6277
        %v6281 = vmul.f32 %v6279, 1.442695
        %v6282 = vpow.pop %v6281
        %v6283 = vmul.f32 %v6280, 1.442695
        %v6284 = vpow.pop %v6283
        %v6285 = vadd.f32 %v6282, 1.0
        %v6286 = vadd.f32 %v6284, 1.0
        %v6287 = vrcp.pop %v6285
        %v6288 = vmul.f32 %v6285, %v6287
        %v6289 = vsub.f32 1.0, %v6288
        %v6290 = vmul.f32 %v6287, %v6289
        %v6291 = vadd.f32 %v6287, %v6290
        %vm6292 = vweird.f32 %v6285
        %vm6293 = vweird.f32 %v6287
        %vm6294 = vmor %vm6292, %vm6293
        %v6295 = vsel %vm6294, %v6287, %v6291
        %v6296 = vand.u32 2147483647, %v6285
        %vm6297 = vcmp.eq.f32.partialorder %v6296, 8.507059e+37
        %v6298 = vand.u32 %v6285, 2147483648
        %v6299 = vor.u32 1.1754944e-38, %v6298
        %v6300 = vsel %vm6297, %v6299, %v6295
        %v6301 = vmul.f32 1.0, %v6300
        %v6302 = vrcp.pop %v6286
        %v6303 = vmul.f32 %v6286, %v6302
        %v6304 = vsub.f32 1.0, %v6303
        %v6305 = vmul.f32 %v6302, %v6304
        %v6306 = vadd.f32 %v6302, %v6305
        %vm6307 = vweird.f32 %v6286
        %vm6308 = vweird.f32 %v6302
        %vm6309 = vmor %vm6307, %vm6308
        %v6310 = vsel %vm6309, %v6302, %v6306
        %v6311 = vand.u32 2147483647, %v6286
        %vm6312 = vcmp.eq.f32.partialorder %v6311, 8.507059e+37
        %v6313 = vand.u32 %v6286, 2147483648
        %v6314 = vor.u32 1.1754944e-38, %v6313
        %v6315 = vsel %vm6312, %v6314, %v6310
        %v6316 = vmul.f32 1.0, %v6315
        %v6317 = vld [vmem:[%s695] sm:$0xff]
        %v6318 = vld [vmem:[%s695 + $0x8] sm:$0xff]
        %vm6319 = vcmask 130048
        %v6321 = vsel %vm6319, %v6317, 0
        %v6324 = vsel %vm6319, %v6318, 0
        %6326 = vmatpush.msra.mxu0 0.0
        %6327 = vmatpush.msra.mxu0 0.0
        %6328 = vmatpush.msra.mxu0 0.0
        %6329 = vmatpush.msra.mxu0 0.0
        %6330 = vmatpush.msra.mxu0 0.0
        %6331 = vmatpush.msra.mxu0 0.0
        %6332 = vmatpush.msra.mxu0 0.0
        %6333 = vmatpush.msra.mxu0 0.0
        %6334 = vmatpush.msra.mxu0 0.0
        %6335 = vmatpush.msra.mxu0 0.0
        %6336 = vmatpush.msra.mxu0 0.0
        %6337 = vmatpush.msra.mxu0 0.0
        %6338 = vmatpush.msra.mxu0 0.0
        %6339 = vmatpush.msra.mxu0 0.0
        %6340 = vmatpush.msra.mxu0 %v6316
        %6341 = vmatpush.msra.mxu0 %v6301
        %6342 = vmatmul.f32.gmra.mxu0 %v6321
        %v6343 = vpop.f32.mrf.mxu0
        %v6344 = vadd.f32 0.0, %v6343
        %6345 = vmatmul.f32.gmra.mxu0 %v6324
        %v6346 = vpop.f32.mrf.mxu0
        %v6347 = vadd.f32 0.0, %v6346
        %6348 = vdwg.mxu0
        %v6349 = vld [vmem:[%s848] sm:$0xff]
        %v6350 = vld [vmem:[%s848 + $0x8] sm:$0xff]
        %v6351 = vld [vmem:[%s705] sm:$0xff]
        %v6352 = vld [vmem:[%s724] sm:$0x1]
        %v6354 = vperm.slane %v6352, 0
        %v6357 = vsel %vm900, %v6344, 0
        %v6360 = vsel %vm900, %v6347, 0
        %6362 = vmatpush.msra.mxu0 0.0
        %6363 = vmatpush.msra.mxu0 0.0
        %6364 = vmatpush.msra.mxu0 0.0
        %6365 = vmatpush.msra.mxu0 0.0
        %6366 = vmatpush.msra.mxu0 0.0
        %6367 = vmatpush.msra.mxu0 0.0
        %6368 = vmatpush.msra.mxu0 0.0
        %6369 = vmatpush.msra.mxu0 0.0
        %6370 = vmatpush.msra.mxu0 0.0
        %6371 = vmatpush.msra.mxu0 0.0
        %6372 = vmatpush.msra.mxu0 0.0
        %6373 = vmatpush.msra.mxu0 0.0
        %6374 = vmatpush.msra.mxu0 0.0
        %6375 = vmatpush.msra.mxu0 0.0
        %6376 = vmatpush.msra.mxu0 0.0
        %6377 = vmatpush.msra.mxu0 %v6351
        %6378 = vmatmul.f32.gmra.mxu0 %v6357
        %v6379 = vpop.f32.mrf.mxu0
        %v6380 = vadd.f32 %v6354, %v6379
        %6381 = vmatmul.f32.gmra.mxu0 %v6360
        %v6382 = vpop.f32.mrf.mxu0
        %v6383 = vadd.f32 %v6354, %v6382
        %6384 = vdwg.mxu0
        %v6385 = vld [vmem:[%s715] sm:$0xff]
        %v6386 = vld [vmem:[%s733] sm:$0x1]
        %v6388 = vperm.slane %v6386, 0
        %v6391 = vsel %vm900, %v6349, 0
        %v6394 = vsel %vm900, %v6350, 0
        %6396 = vmatpush.msra.mxu0 0.0
        %6397 = vmatpush.msra.mxu0 0.0
        %6398 = vmatpush.msra.mxu0 0.0
        %6399 = vmatpush.msra.mxu0 0.0
        %6400 = vmatpush.msra.mxu0 0.0
        %6401 = vmatpush.msra.mxu0 0.0
        %6402 = vmatpush.msra.mxu0 0.0
        %6403 = vmatpush.msra.mxu0 0.0
        %6404 = vmatpush.msra.mxu0 0.0
        %6405 = vmatpush.msra.mxu0 0.0
        %6406 = vmatpush.msra.mxu0 0.0
        %6407 = vmatpush.msra.mxu0 0.0
        %6408 = vmatpush.msra.mxu0 0.0
        %6409 = vmatpush.msra.mxu0 0.0
        %6410 = vmatpush.msra.mxu0 0.0
        %6411 = vmatpush.msra.mxu0 %v6385
        %6412 = vmatmul.f32.gmra.mxu0 %v6391
        %v6413 = vpop.f32.mrf.mxu0
        %v6414 = vadd.f32 %v6388, %v6413
        %6415 = vmatmul.f32.gmra.mxu0 %v6394
        %v6416 = vpop.f32.mrf.mxu0
        %v6417 = vadd.f32 %v6388, %v6416
        %6418 = vdwg.mxu0
        %v6419 = vadd.f32 %v6380, %v6414
        %v6420 = vadd.f32 %v6383, %v6417
        %v6421 = vsub.f32 0.0, %v6419
        %v6422 = vsub.f32 0.0, %v6420
        %v6423 = vmul.f32 %v6421, 1.442695
        %v6424 = vpow.pop %v6423
        %v6425 = vmul.f32 %v6422, 1.442695
        %v6426 = vpow.pop %v6425
        %v6427 = vadd.f32 %v6424, 1.0
        %v6428 = vadd.f32 %v6426, 1.0
        %v6429 = vrcp.pop %v6427
        %v6430 = vmul.f32 %v6427, %v6429
        %v6431 = vsub.f32 1.0, %v6430
        %v6432 = vmul.f32 %v6429, %v6431
        %v6433 = vadd.f32 %v6429, %v6432
        %vm6434 = vweird.f32 %v6427
        %vm6435 = vweird.f32 %v6429
        %vm6436 = vmor %vm6434, %vm6435
        %v6437 = vsel %vm6436, %v6429, %v6433
        %v6438 = vand.u32 2147483647, %v6427
        %vm6439 = vcmp.eq.f32.partialorder %v6438, 8.507059e+37
        %v6440 = vand.u32 %v6427, 2147483648
        %v6441 = vor.u32 1.1754944e-38, %v6440
        %v6442 = vsel %vm6439, %v6441, %v6437
        %v6443 = vmul.f32 1.0, %v6442
        %v6444 = vrcp.pop %v6428
        %v6445 = vmul.f32 %v6428, %v6444
        %v6446 = vsub.f32 1.0, %v6445
        %v6447 = vmul.f32 %v6444, %v6446
        %v6448 = vadd.f32 %v6444, %v6447
        %vm6449 = vweird.f32 %v6428
        %vm6450 = vweird.f32 %v6444
        %vm6451 = vmor %vm6449, %vm6450
        %v6452 = vsel %vm6451, %v6444, %v6448
        %v6453 = vand.u32 2147483647, %v6428
        %vm6454 = vcmp.eq.f32.partialorder %v6453, 8.507059e+37
        %v6455 = vand.u32 %v6428, 2147483648
        %v6456 = vor.u32 1.1754944e-38, %v6455
        %v6457 = vsel %vm6454, %v6456, %v6452
        %v6458 = vmul.f32 1.0, %v6457
        %6461 = vrot.lane.b32.xlu0 %v6414, 112
        %v6462 = vpop.permute.xlu0 %6461
        %6463 = vrot.lane.b32.xlu0 %v6417, 112
        %v6464 = vpop.permute.xlu0 %6463
        %v6467 = vmul.f32 %v6443, %v6462
        %v6468 = vmul.f32 %v6458, %v6464
        %6471 = vrot.lane.b32.xlu0 %v6467, 16
        %v6472 = vpop.permute.xlu0 %6471
        %6473 = vrot.lane.b32.xlu0 %v6468, 16
        %v6474 = vpop.permute.xlu0 %6473
        %v6477 = vadd.f32 %v6380, %v6472
        %v6478 = vadd.f32 %v6383, %v6474
        %v6479 = vtanh.pop %v6477
        %v6480 = vtanh.pop %v6478
        %v6481 = vsub.f32 1.0, %v6443
        %v6482 = vsub.f32 1.0, %v6458
        %6485 = vrot.lane.b32.xlu0 %v6479, 120
        %v6486 = vpop.permute.xlu0 %6485
        %6487 = vrot.lane.b32.xlu0 %v6480, 120
        %v6488 = vpop.permute.xlu0 %6487
        %v6491 = vmul.f32 %v6481, %v6486
        %v6492 = vmul.f32 %v6482, %v6488
        %6493 = vrot.lane.b32.xlu0 %v6349, 8
        %v6494 = vpop.permute.xlu0 %6493
        %6495 = vrot.lane.b32.xlu0 %v6350, 8
        %v6496 = vpop.permute.xlu0 %6495
        %v6499 = vmul.f32 %v6443, %v6494
        %v6500 = vmul.f32 %v6458, %v6496
        %v6501 = vadd.f32 %v6491, %v6499
        %v6502 = vadd.f32 %v6492, %v6500
        %6505 = vrot.lane.b32.xlu0 %v6501, 120
        %v6506 = vpop.permute.xlu0 %6505
        %6507 = vrot.lane.b32.xlu0 %v6502, 120
        %v6508 = vpop.permute.xlu0 %6507
        %6511 = vst.msk [vmem:[%s853] sm:$0xff] %vm900, %v6506
        %6512 = vst.msk [vmem:[%s853 + $0x8] sm:$0xff] %vm900, %v6508
        %p6513 = scmp.lt.s32.totalorder %s42, 1
        %s6514 = scalar_select %p6513, %s42, 1
        %s6515 = smul.addr %s6514, 2
        %s6516 = smul.addr %s6515, 8
        %s6517 = scalar_lea.vmem %s13, %s6516
        // Predicated region
        $region113: #{feature_network_forward.1} parent=71 // pred_check
          %p6518 = pneg %p398
        $region114: #{feature_network_forward.1} parent=71 // pred_check_branch
          %6520 = sbr.rel (%p6518) target = $region116
        $region115: #{feature_network_forward.1} parent=71 // pred_region
          _
        $region116: #{feature_network_forward.1} parent=71 // pred_fallthru
          _
      $region72: #{feature_network_forward.1} parent=5 // pred_fallthru
        _
      %p6521 = scmp.le.s32.totalorder 2, %s37
      // Predicated region
      $region117: #{feature_network_forward.1} parent=5 // pred_check
        %p6522 = pneg %p6521
      $region118: #{feature_network_forward.1} parent=5 // pred_check_branch
        %6524 = sbr.rel (%p6522) target = $region120
      $region119: #{feature_network_forward.1} parent=5 // pred_region
        %s6525 = ssub.s32 %s37, 2
        // Predicated region
        $region121: #{feature_network_forward.1} parent=119 // pred_check
          %p6526 = pneg %p404
        $region122: #{feature_network_forward.1} parent=119 // pred_check_branch
          %6528 = sbr.rel (%p6526) target = $region124
        $region123: #{feature_network_forward.1} parent=119 // pred_region
          %p6529 = scmp.lt.s32.totalorder %s43, 1
          %s6530 = scalar_select %p6529, %s43, 1
          %s6531 = smul.addr %s6530, 2
          %s6532 = smul.addr %s6531, 8
          %s6533 = scalar_lea.vmem %s13, %s6532
        $region124: #{feature_network_forward.1} parent=119 // pred_fallthru
          _
      $region120: #{feature_network_forward.1} parent=5 // pred_fallthru
        _
    $region6: #{feature_network_forward.1} parent=1 // loop_footer
      %s41 = sadd.s32 1, %s37
    $region7: #{feature_network_forward.1} parent=1 // loop_footer_branch
      %36 = sbr.rel target = $region3
    $region8: #{feature_network_forward.1} parent=1 // loop_exit
      _
    %6534 = vsyncpa [#allocation3], 1
    %s6535 = scalar_lea.sflag [#allocation3], 1
    %6536 = vsyncpa %s6535, 1
    %6537 = vsyncpa [#allocation5], 1
    %s6538 = scalar_lea.sflag [#allocation5], 1
    %6539 = vsyncpa %s6538, 1
    %6540 = vsyncpa [#allocation8], 1
    %s6541 = scalar_lea.sflag [#allocation8], 1
    %6542 = vsyncpa %s6541, 1
    %6543 = vsyncpa [#allocation11], 1
    %s6544 = scalar_lea.sflag [#allocation11], 1
    %6545 = vsyncpa %s6544, 1
    %6546 = vsyncpa [#allocation14], 1
    %s6547 = scalar_lea.sflag [#allocation14], 1
    %6548 = vsyncpa %s6547, 1
    %6549 = vsyncpa [#allocation17], 1
    %s6550 = scalar_lea.sflag [#allocation17], 1
    %6551 = vsyncpa %s6550, 1

</llo_original>
